<compile_context>
chip_gen: v5e
topology: v5e:2x2
jax: 0.10.0
libtpu: 0.0.40
codegen_flags: <defaults>
</compile_context>

<pallas_src>
import numpy as np

import jax
import jax.numpy as jnp
from jax.experimental import pallas as pl
from jax.experimental.pallas import tpu as pltpu

_VMEM = pl.BlockSpec(memory_space=pltpu.MemorySpace.VMEM)


# --------------------- trace-time constant constructions ---------------------

def _tap_sel(h, w, ks, stride, pad):
    """Per-sample 0/1 tap-selection tensor, shape (ks*ks, oh*ow, h*w).

    S[t, p, q] = 1 iff input pixel q feeds tap t of output position p (zero when
    the tap falls into the zero padding).  Batch-independent (no O(N^2) blowup).
    """
    oh = (h + 2 * pad - ks) // stride + 1
    ow = (w + 2 * pad - ks) // stride + 1
    s = np.zeros((ks * ks, oh * ow, h * w), np.float32)
    for kh in range(ks):
        for kw in range(ks):
            t = kh * ks + kw
            for i in range(oh):
                hi = stride * i + kh - pad
                if not (0 <= hi < h):
                    continue
                for j in range(ow):
                    wj = stride * j + kw - pad
                    if 0 <= wj < w:
                        s[t, i * ow + j, hi * w + wj] = 1.0
    return s


def _conv_mat(w_oihw, sel):
    """Fold selection + weights into one (Q*IC, P*OC) bf16 matmul operand.

    B[q*IC + c, p*OC + o] = sum_t sel[t, p, q] * W[o, c, kh, kw].
    At most one tap relates a (p, q) pair, so entries are single (bf16-rounded)
    weights or exact zeros.
    """
    oc, ic, kh, kw = w_oihw.shape
    wt = jnp.transpose(w_oihw, (2, 3, 1, 0)).reshape(kh * kw, ic, oc)  # (T, IC, OC)
    b = jnp.einsum('tpq,tco->qcpo', jnp.asarray(sel), wt)
    q, p = sel.shape[2], sel.shape[1]
    return b.reshape(q * ic, p * oc).astype(jnp.bfloat16)


def _pool_mat(c):
    """MaxPool 3x3 s2 p1 gather on an 8x8 map: (64*c, 9*16*c) 0/1 bf16 matrix.

    Column block t (128-lane aligned) holds tap t for every (output pos, chan).
    """
    sel = _tap_sel(8, 8, 3, 2, 1)                                # (9, 16, 64)
    g = np.einsum('tpq,ce->qctpe', sel, np.eye(c, dtype=np.float32))
    return jnp.asarray(g.reshape(64 * c, 9 * 16 * c), dtype=jnp.bfloat16)


def _bn_group_mats(p, c):
    """(P*C, C) channel group-reduce matrix and its transpose (group-broadcast)."""
    m = np.tile(np.eye(c, dtype=np.float32), (p, 1))
    return jnp.asarray(m), jnp.asarray(m.T)


# --------------------------------- the kernel --------------------------------

def _rpm_kernel(
    x_ref,                                     # (N, 256)       f32  input image
    stem_b_ref,                                # (256, 512)     bf16 stem conv
    bn1_g_ref, bn1_b_ref,                      # (1, 8)         f32
    m64_ref, mt64_ref,                         # (512, 8)/(8, 512)  f32  P=64,C=8
    pool_g_ref,                                # (512, 1152)    bf16 maxpool gather
    m16_ref, mt16_ref,                         # (128, 8)/(8, 128)  f32  P=16,C=8
    l1c1_b_ref, l1c1_bias_ref, l1g1_ref, l1b1_ref,
    l1c2_b_ref, l1c2_bias_ref, l1g2_ref, l1b2_ref,
    m4_ref, mt4_ref,                           # (64, 16)/(16, 64)  f32  P=4,C=16
    l2c1_b_ref, l2c1_bias_ref, l2g1_ref, l2b1_ref,
    l2sc_b_ref, l2sc_bias_ref, l2gs_ref, l2bs_ref,
    l2c2_b_ref, l2c2_bias_ref, l2g2_ref, l2b2_ref,
    l3c1_b_ref, l3c1_bias_ref, l3g1_ref, l3b1_ref,
    l3sc_b_ref, l3sc_bias_ref, l3gs_ref, l3bs_ref,
    l3c2_b_ref, l3c2_bias_ref, l3g2_ref, l3b2_ref,
    out_ref,                                   # (N, 32)        f32
):
    f32, bf16 = jnp.float32, jnp.bfloat16

    def conv(x, b_ref, bias_ref=None):
        # One MXU matmul per conv: bf16 operands, f32 accumulation.
        y = jnp.dot(x.astype(bf16), b_ref[...], preferred_element_type=f32)
        return y if bias_ref is None else y + bias_ref[...]

    def bn(y, g_ref, b_ref, m_ref=None, mt_ref=None, relu=False):
        # Training-mode BatchNorm over (batch rows, spatial lane-groups) per
        # channel.  Single-pass biased variance (clamped, cannot NaN); all f32.
        c = g_ref.shape[-1]
        count = y.shape[0] * (y.shape[1] // c)
        s1 = jnp.sum(y, axis=0, keepdims=True)
        s2 = jnp.sum(y * y, axis=0, keepdims=True)
        if m_ref is not None:                       # lane-group reduce -> (1, C)
            s1 = jnp.dot(s1, m_ref[...], preferred_element_type=f32)
            s2 = jnp.dot(s2, m_ref[...], preferred_element_type=f32)
        mean = s1 * (1.0 / count)
        var = jnp.maximum(s2 * (1.0 / count) - mean * mean, 0.0)
        scale = g_ref[...] * jax.lax.rsqrt(var + 1e-5)
        shift = b_ref[...] - mean * scale
        if mt_ref is not None:                      # broadcast back to (1, P*C)
            scale = jnp.dot(scale, mt_ref[...], preferred_element_type=f32)
            shift = jnp.dot(shift, mt_ref[...], preferred_element_type=f32)
        y = y * scale + shift
        return jnp.maximum(y, 0.0) if relu else y

    # ---- stem: 7x7 s2 p3 conv (bias=False) + BN + ReLU -> (N, 64*8) ----
    x0 = conv(x_ref[...], stem_b_ref)
    x0 = bn(x0, bn1_g_ref, bn1_b_ref, m64_ref, mt64_ref, relu=True)

    # ---- maxpool 3x3 s2 p1 -> (N, 16*8); taps live in 128-lane blocks ----
    taps = jnp.dot(x0.astype(bf16), pool_g_ref[...], preferred_element_type=f32)
    x1 = taps[:, 0:128]
    for t in range(1, 9):
        x1 = jnp.maximum(x1, taps[:, t * 128:(t + 1) * 128])

    # ---- layer1: IBlock(8 -> 8), two 3x3 s1 p1 convs, residual add ----
    y = conv(x1, l1c1_b_ref, l1c1_bias_ref)
    y = bn(y, l1g1_ref, l1b1_ref, m16_ref, mt16_ref, relu=True)
    y = conv(y, l1c2_b_ref, l1c2_bias_ref)
    y = bn(y, l1g2_ref, l1b2_ref, m16_ref, mt16_ref, relu=False)
    x1 = x1 + y                                              # (N, 128)

    # ---- layer2: DBlock(8 -> 16), strides [2, 1] ----
    sc = conv(x1, l2sc_b_ref, l2sc_bias_ref)                 # 1x1 s2 shortcut
    sc = bn(sc, l2gs_ref, l2bs_ref, m4_ref, mt4_ref, relu=False)
    y = conv(x1, l2c1_b_ref, l2c1_bias_ref)                  # 3x3 s2
    y = bn(y, l2g1_ref, l2b1_ref, m4_ref, mt4_ref, relu=True)
    y = conv(y, l2c2_b_ref, l2c2_bias_ref)                   # 3x3 s1
    y = bn(y, l2g2_ref, l2b2_ref, m4_ref, mt4_ref, relu=False)
    x2 = sc + y                                              # (N, 64)

    # ---- layer3: DBlock(16 -> 32), strides [2, 1]; output spatial 1x1 so the
    # BN lane-group reduce/broadcast is the identity (m/mt omitted) ----
    sc = conv(x2, l3sc_b_ref, l3sc_bias_ref)
    sc = bn(sc, l3gs_ref, l3bs_ref, relu=False)
    y = conv(x2, l3c1_b_ref, l3c1_bias_ref)
    y = bn(y, l3g1_ref, l3b1_ref, relu=True)
    y = conv(y, l3c2_b_ref, l3c2_bias_ref)
    y = bn(y, l3g2_ref, l3b2_ref, relu=False)
    out_ref[...] = sc + y                                    # (N, 32)


# --------------------------- parameter creation ------------------------------

def _kaiming_fan_out(key, shape):
    # shape = (OC, IC, KH, KW); kaiming_normal_(mode='fan_out', relu)
    fan_out = shape[0] * shape[2] * shape[3]
    std = (2.0 / fan_out) ** 0.5
    return std * jax.random.normal(key, shape, jnp.float32)


def _bias_init(key, oc, fan_in):
    bound = 1.0 / (fan_in ** 0.5)
    return jax.random.uniform(key, (oc,), jnp.float32, -bound, bound)


def _conv_params(key, ic, oc, ks):
    kw_, kb_ = jax.random.split(key)
    return _kaiming_fan_out(kw_, (oc, ic, ks, ks)), _bias_init(kb_, oc, ic * ks * ks)


def init_params(key):
    ks = jax.random.split(key, 8)
    p = {}
    p["conv1_w"] = _kaiming_fan_out(ks[0], (8, 1, 7, 7))          # bias=False
    p["bn1_g"] = jnp.ones((8,), jnp.float32)
    p["bn1_b"] = jnp.zeros((8,), jnp.float32)
    p["l1_w1"], p["l1_b1"] = _conv_params(ks[1], 8, 8, 3)
    p["l1_bn1_g"], p["l1_bn1_b"] = jnp.ones((8,), jnp.float32), jnp.zeros((8,), jnp.float32)
    p["l1_w2"], p["l1_b2"] = _conv_params(ks[2], 8, 8, 3)
    p["l1_bn2_g"], p["l1_bn2_b"] = jnp.ones((8,), jnp.float32), jnp.zeros((8,), jnp.float32)

    def dblock_params(k, ic, oc):
        k1, k2, k3 = jax.random.split(k, 3)
        d = {}
        d["w1"], d["b1"] = _conv_params(k1, ic, oc, 3)
        d["bn1_g"], d["bn1_b"] = jnp.ones((oc,), jnp.float32), jnp.zeros((oc,), jnp.float32)
        d["w2"], d["b2"] = _conv_params(k2, oc, oc, 3)
        d["bn2_g"], d["bn2_b"] = jnp.ones((oc,), jnp.float32), jnp.zeros((oc,), jnp.float32)
        d["ws"], d["bs"] = _conv_params(k3, ic, oc, 1)
        d["bns_g"], d["bns_b"] = jnp.ones((oc,), jnp.float32), jnp.zeros((oc,), jnp.float32)
        return d

    p["l2"] = dblock_params(ks[3], 8, 16)    # DBlock(8, 16, 3, [2, 1], 1)
    p["l3"] = dblock_params(ks[4], 16, 32)   # DBlock(16, 32, 3, [2, 1], 1)
    return p


# ------------------------------- forward pass --------------------------------

def rpm_resnet_forward(x_nchw, params):
    n = x_nchw.shape[0]
    assert x_nchw.shape[1:] == (1, 16, 16), x_nchw.shape
    # Lane layout everywhere: (spatial position, channel), spatial-major.
    x_in = x_nchw.reshape(n, 256).astype(jnp.float32)        # C=1 -> lanes = h*16+w

    # Per-sample (batch-independent) tap selections -- O(1) in batch size.
    sel_stem = _tap_sel(16, 16, 7, 2, 3)     # (49, 64, 256)
    sel_l1   = _tap_sel(4, 4, 3, 1, 1)       # (9, 16, 16)
    sel_l2a  = _tap_sel(4, 4, 3, 2, 1)       # (9, 4, 16)
    sel_l2s  = _tap_sel(4, 4, 1, 2, 0)       # (1, 4, 16)
    sel_l2b  = _tap_sel(2, 2, 3, 1, 1)       # (9, 4, 4)
    sel_l3a  = _tap_sel(2, 2, 3, 2, 1)       # (9, 1, 4)
    sel_l3s  = _tap_sel(2, 2, 1, 2, 0)       # (1, 1, 4)
    sel_l3b  = _tap_sel(1, 1, 3, 1, 1)       # (9, 1, 1)

    m64, mt64 = _bn_group_mats(64, 8)        # stem BN       (512, 8)
    m16, mt16 = _bn_group_mats(16, 8)        # layer1 BNs    (128, 8)
    m4, mt4 = _bn_group_mats(4, 16)          # layer2 BNs    (64, 16)

    def g(v):                                # BN affine params as (1, C) lanes
        return v.reshape(1, -1).astype(jnp.float32)

    def bias_lanes(b, p):                    # conv bias as (1, P*OC) lanes
        return jnp.tile(b, p).reshape(1, -1).astype(jnp.float32)

    l2, l3 = params["l2"], params["l3"]
    args = (
        x_in,
        _conv_mat(params["conv1_w"], sel_stem),
        g(params["bn1_g"]), g(params["bn1_b"]),
        m64, mt64,
        _pool_mat(8),
        m16, mt16,
        # layer1
        _conv_mat(params["l1_w1"], sel_l1), bias_lanes(params["l1_b1"], 16),
        g(params["l1_bn1_g"]), g(params["l1_bn1_b"]),
        _conv_mat(params["l1_w2"], sel_l1), bias_lanes(params["l1_b2"], 16),
        g(params["l1_bn2_g"]), g(params["l1_bn2_b"]),
        m4, mt4,
        # layer2 (conv1, shortcut, conv2)
        _conv_mat(l2["w1"], sel_l2a), bias_lanes(l2["b1"], 4),
        g(l2["bn1_g"]), g(l2["bn1_b"]),
        _conv_mat(l2["ws"], sel_l2s), bias_lanes(l2["bs"], 4),
        g(l2["bns_g"]), g(l2["bns_b"]),
        _conv_mat(l2["w2"], sel_l2b), bias_lanes(l2["b2"], 4),
        g(l2["bn2_g"]), g(l2["bn2_b"]),
        # layer3 (conv1, shortcut, conv2)
        _conv_mat(l3["w1"], sel_l3a), bias_lanes(l3["b1"], 1),
        g(l3["bn1_g"]), g(l3["bn1_b"]),
        _conv_mat(l3["ws"], sel_l3s), bias_lanes(l3["bs"], 1),
        g(l3["bns_g"]), g(l3["bns_b"]),
        _conv_mat(l3["w2"], sel_l3b), bias_lanes(l3["b2"], 1),
        g(l3["bn2_g"]), g(l3["bn2_b"]),
    )

    # VMEM budget derived from the actual argument footprint (~2 MiB); fits the
    # v7x 64 MiB VMEM with wide margin and never exceeds the default scope.
    arg_bytes = sum(int(np.prod(a.shape)) * a.dtype.itemsize for a in args)
    vmem_limit = int(min(max(4 * arg_bytes + (4 << 20), 16 << 20), 32 << 20))

    out = pl.pallas_call(
        _rpm_kernel,
        out_shape=jax.ShapeDtypeStruct((n, 32), jnp.float32),
        in_specs=[_VMEM] * len(args),
        out_specs=_VMEM,
        compiler_params=pltpu.CompilerParams(vmem_limit_bytes=vmem_limit),
    )(*args)
    return out.reshape(n, 32, 1, 1)          # NCHW (H = W = 1)


if __name__ == "__main__":
    key = jax.random.PRNGKey(0)
    pkey, xkey = jax.random.split(key)
    params = init_params(pkey)
    x = jax.random.normal(xkey, (2, 1, 16, 16), jnp.float32)

    fwd = jax.jit(lambda inp: rpm_resnet_forward(inp, params))
    out = jax.block_until_ready(fwd(x))

    assert out.shape == (2, 32, 1, 1), out.shape
    assert out.dtype == jnp.float32
    assert bool(jnp.all(jnp.isfinite(out)))
    print("KERNEL_OK")
</pallas_src>

<mosaic_0001>
module attributes {stable_mosaic.version = 11 : i64} {
  func.func @_rpm_kernel(%arg0: memref<2x256xf32, #tpu.memory_space<vmem>>, %arg1: memref<256x512xbf16, #tpu.memory_space<vmem>>, %arg2: memref<1x8xf32, #tpu.memory_space<vmem>>, %arg3: memref<1x8xf32, #tpu.memory_space<vmem>>, %arg4: memref<512x8xf32, #tpu.memory_space<vmem>>, %arg5: memref<8x512xf32, #tpu.memory_space<vmem>>, %arg6: memref<512x1152xbf16, #tpu.memory_space<vmem>>, %arg7: memref<128x8xf32, #tpu.memory_space<vmem>>, %arg8: memref<8x128xf32, #tpu.memory_space<vmem>>, %arg9: memref<128x128xbf16, #tpu.memory_space<vmem>>, %arg10: memref<1x128xf32, #tpu.memory_space<vmem>>, %arg11: memref<1x8xf32, #tpu.memory_space<vmem>>, %arg12: memref<1x8xf32, #tpu.memory_space<vmem>>, %arg13: memref<128x128xbf16, #tpu.memory_space<vmem>>, %arg14: memref<1x128xf32, #tpu.memory_space<vmem>>, %arg15: memref<1x8xf32, #tpu.memory_space<vmem>>, %arg16: memref<1x8xf32, #tpu.memory_space<vmem>>, %arg17: memref<64x16xf32, #tpu.memory_space<vmem>>, %arg18: memref<16x64xf32, #tpu.memory_space<vmem>>, %arg19: memref<128x64xbf16, #tpu.memory_space<vmem>>, %arg20: memref<1x64xf32, #tpu.memory_space<vmem>>, %arg21: memref<1x16xf32, #tpu.memory_space<vmem>>, %arg22: memref<1x16xf32, #tpu.memory_space<vmem>>, %arg23: memref<128x64xbf16, #tpu.memory_space<vmem>>, %arg24: memref<1x64xf32, #tpu.memory_space<vmem>>, %arg25: memref<1x16xf32, #tpu.memory_space<vmem>>, %arg26: memref<1x16xf32, #tpu.memory_space<vmem>>, %arg27: memref<64x64xbf16, #tpu.memory_space<vmem>>, %arg28: memref<1x64xf32, #tpu.memory_space<vmem>>, %arg29: memref<1x16xf32, #tpu.memory_space<vmem>>, %arg30: memref<1x16xf32, #tpu.memory_space<vmem>>, %arg31: memref<64x32xbf16, #tpu.memory_space<vmem>>, %arg32: memref<1x32xf32, #tpu.memory_space<vmem>>, %arg33: memref<1x32xf32, #tpu.memory_space<vmem>>, %arg34: memref<1x32xf32, #tpu.memory_space<vmem>>, %arg35: memref<64x32xbf16, #tpu.memory_space<vmem>>, %arg36: memref<1x32xf32, #tpu.memory_space<vmem>>, %arg37: memref<1x32xf32, #tpu.memory_space<vmem>>, %arg38: memref<1x32xf32, #tpu.memory_space<vmem>>, %arg39: memref<32x32xbf16, #tpu.memory_space<vmem>>, %arg40: memref<1x32xf32, #tpu.memory_space<vmem>>, %arg41: memref<1x32xf32, #tpu.memory_space<vmem>>, %arg42: memref<1x32xf32, #tpu.memory_space<vmem>>, %arg43: memref<2x32xf32, #tpu.memory_space<vmem>>) attributes {dimension_semantics = [], scalar_prefetch = 0 : i64, scratch_operands = 0 : i64, tpu.core_type = #tpu.core_type<tc>} {
    %c0 = arith.constant 0 : index
    %c0_0 = arith.constant 0 : index
    %0 = vector.load %arg0[%c0, %c0_0] : memref<2x256xf32, #tpu.memory_space<vmem>>, vector<2x256xf32>
    %1 = arith.truncf %0 : vector<2x256xf32> to vector<2x256xbf16>
    %c0_1 = arith.constant 0 : index
    %c0_2 = arith.constant 0 : index
    %2 = vector.load %arg1[%c0_1, %c0_2] : memref<256x512xbf16, #tpu.memory_space<vmem>>, vector<256x512xbf16>
    %cst = arith.constant dense<0.000000e+00> : vector<2x512xf32>
    %3 = tpu.matmul %1, %2, %cst {dimension_numbers = #tpu.dot_dimension_numbers<[1], [0], [0], [1], [0, 0, 1, 1], [], []>} : vector<2x256xbf16>, vector<256x512xbf16>, vector<2x512xf32> -> vector<2x512xf32>
    %cst_3 = arith.constant dense<0.000000e+00> : vector<512xf32>
    %4 = vector.multi_reduction <add>, %3, %cst_3 [0] : vector<2x512xf32> to vector<512xf32>
    %5 = vector.shape_cast %4 : vector<512xf32> to vector<1x512xf32>
    %6 = arith.mulf %3, %3 : vector<2x512xf32>
    %cst_4 = arith.constant dense<0.000000e+00> : vector<512xf32>
    %7 = vector.multi_reduction <add>, %6, %cst_4 [0] : vector<2x512xf32> to vector<512xf32>
    %8 = vector.shape_cast %7 : vector<512xf32> to vector<1x512xf32>
    %c0_5 = arith.constant 0 : index
    %c0_6 = arith.constant 0 : index
    %9 = vector.load %arg4[%c0_5, %c0_6] : memref<512x8xf32, #tpu.memory_space<vmem>>, vector<512x8xf32>
    %cst_7 = arith.constant dense<0.000000e+00> : vector<1x8xf32>
    %10 = tpu.matmul %5, %9, %cst_7 {dimension_numbers = #tpu.dot_dimension_numbers<[1], [0], [0], [1], [0, 0, 1, 1], [], []>} : vector<1x512xf32>, vector<512x8xf32>, vector<1x8xf32> -> vector<1x8xf32>
    %c0_8 = arith.constant 0 : index
    %c0_9 = arith.constant 0 : index
    %11 = vector.load %arg4[%c0_8, %c0_9] : memref<512x8xf32, #tpu.memory_space<vmem>>, vector<512x8xf32>
    %cst_10 = arith.constant dense<0.000000e+00> : vector<1x8xf32>
    %12 = tpu.matmul %8, %11, %cst_10 {dimension_numbers = #tpu.dot_dimension_numbers<[1], [0], [0], [1], [0, 0, 1, 1], [], []>} : vector<1x512xf32>, vector<512x8xf32>, vector<1x8xf32> -> vector<1x8xf32>
    %cst_11 = arith.constant 7.812500e-03 : f32
    %13 = vector.broadcast %cst_11 : f32 to vector<1x8xf32>
    %14 = arith.mulf %10, %13 : vector<1x8xf32>
    %cst_12 = arith.constant 7.812500e-03 : f32
    %15 = vector.broadcast %cst_12 : f32 to vector<1x8xf32>
    %16 = arith.mulf %12, %15 : vector<1x8xf32>
    %17 = arith.mulf %14, %14 : vector<1x8xf32>
    %18 = arith.subf %16, %17 : vector<1x8xf32>
    %cst_13 = arith.constant 0.000000e+00 : f32
    %19 = vector.broadcast %cst_13 : f32 to vector<1x8xf32>
    %20 = arith.maximumf %18, %19 : vector<1x8xf32>
    %c0_14 = arith.constant 0 : index
    %c0_15 = arith.constant 0 : index
    %21 = vector.load %arg2[%c0_14, %c0_15] : memref<1x8xf32, #tpu.memory_space<vmem>>, vector<1x8xf32>
    %cst_16 = arith.constant 9.99999974E-6 : f32
    %22 = vector.broadcast %cst_16 : f32 to vector<1x8xf32>
    %23 = arith.addf %20, %22 : vector<1x8xf32>
    %24 = math.rsqrt %23 : vector<1x8xf32>
    %25 = arith.mulf %21, %24 : vector<1x8xf32>
    %c0_17 = arith.constant 0 : index
    %c0_18 = arith.constant 0 : index
    %26 = vector.load %arg3[%c0_17, %c0_18] : memref<1x8xf32, #tpu.memory_space<vmem>>, vector<1x8xf32>
    %27 = arith.mulf %14, %25 : vector<1x8xf32>
    %28 = arith.subf %26, %27 : vector<1x8xf32>
    %c0_19 = arith.constant 0 : index
    %c0_20 = arith.constant 0 : index
    %29 = vector.load %arg5[%c0_19, %c0_20] : memref<8x512xf32, #tpu.memory_space<vmem>>, vector<8x512xf32>
    %cst_21 = arith.constant dense<0.000000e+00> : vector<1x512xf32>
    %30 = tpu.matmul %25, %29, %cst_21 {dimension_numbers = #tpu.dot_dimension_numbers<[1], [0], [0], [1], [0, 0, 1, 1], [], []>} : vector<1x8xf32>, vector<8x512xf32>, vector<1x512xf32> -> vector<1x512xf32>
    %c0_22 = arith.constant 0 : index
    %c0_23 = arith.constant 0 : index
    %31 = vector.load %arg5[%c0_22, %c0_23] : memref<8x512xf32, #tpu.memory_space<vmem>>, vector<8x512xf32>
    %cst_24 = arith.constant dense<0.000000e+00> : vector<1x512xf32>
    %32 = tpu.matmul %28, %31, %cst_24 {dimension_numbers = #tpu.dot_dimension_numbers<[1], [0], [0], [1], [0, 0, 1, 1], [], []>} : vector<1x8xf32>, vector<8x512xf32>, vector<1x512xf32> -> vector<1x512xf32>
    %33 = vector.broadcast %30 : vector<1x512xf32> to vector<2x512xf32>
    %34 = arith.mulf %3, %33 : vector<2x512xf32>
    %35 = vector.broadcast %32 : vector<1x512xf32> to vector<2x512xf32>
    %36 = arith.addf %34, %35 : vector<2x512xf32>
    %cst_25 = arith.constant 0.000000e+00 : f32
    %37 = vector.broadcast %cst_25 : f32 to vector<2x512xf32>
    %38 = arith.maximumf %36, %37 : vector<2x512xf32>
    %39 = arith.truncf %38 : vector<2x512xf32> to vector<2x512xbf16>
    %c0_26 = arith.constant 0 : index
    %c0_27 = arith.constant 0 : index
    %40 = vector.load %arg6[%c0_26, %c0_27] : memref<512x1152xbf16, #tpu.memory_space<vmem>>, vector<512x1152xbf16>
    %cst_28 = arith.constant dense<0.000000e+00> : vector<2x1152xf32>
    %41 = tpu.matmul %39, %40, %cst_28 {dimension_numbers = #tpu.dot_dimension_numbers<[1], [0], [0], [1], [0, 0, 1, 1], [], []>} : vector<2x512xbf16>, vector<512x1152xbf16>, vector<2x1152xf32> -> vector<2x1152xf32>
    %42 = vector.extract_strided_slice %41 {offsets = [0, 0], sizes = [2, 128], strides = [1, 1]} : vector<2x1152xf32> to vector<2x128xf32>
    %43 = vector.extract_strided_slice %41 {offsets = [0, 128], sizes = [2, 128], strides = [1, 1]} : vector<2x1152xf32> to vector<2x128xf32>
    %44 = arith.maximumf %42, %43 : vector<2x128xf32>
    %45 = vector.extract_strided_slice %41 {offsets = [0, 256], sizes = [2, 128], strides = [1, 1]} : vector<2x1152xf32> to vector<2x128xf32>
    %46 = arith.maximumf %44, %45 : vector<2x128xf32>
    %47 = vector.extract_strided_slice %41 {offsets = [0, 384], sizes = [2, 128], strides = [1, 1]} : vector<2x1152xf32> to vector<2x128xf32>
    %48 = arith.maximumf %46, %47 : vector<2x128xf32>
    %49 = vector.extract_strided_slice %41 {offsets = [0, 512], sizes = [2, 128], strides = [1, 1]} : vector<2x1152xf32> to vector<2x128xf32>
    %50 = arith.maximumf %48, %49 : vector<2x128xf32>
    %51 = vector.extract_strided_slice %41 {offsets = [0, 640], sizes = [2, 128], strides = [1, 1]} : vector<2x1152xf32> to vector<2x128xf32>
    %52 = arith.maximumf %50, %51 : vector<2x128xf32>
    %53 = vector.extract_strided_slice %41 {offsets = [0, 768], sizes = [2, 128], strides = [1, 1]} : vector<2x1152xf32> to vector<2x128xf32>
    %54 = arith.maximumf %52, %53 : vector<2x128xf32>
    %55 = vector.extract_strided_slice %41 {offsets = [0, 896], sizes = [2, 128], strides = [1, 1]} : vector<2x1152xf32> to vector<2x128xf32>
    %56 = arith.maximumf %54, %55 : vector<2x128xf32>
    %57 = vector.extract_strided_slice %41 {offsets = [0, 1024], sizes = [2, 128], strides = [1, 1]} : vector<2x1152xf32> to vector<2x128xf32>
    %58 = arith.maximumf %56, %57 : vector<2x128xf32>
    %59 = arith.truncf %58 : vector<2x128xf32> to vector<2x128xbf16>
    %c0_29 = arith.constant 0 : index
    %c0_30 = arith.constant 0 : index
    %60 = vector.load %arg9[%c0_29, %c0_30] : memref<128x128xbf16, #tpu.memory_space<vmem>>, vector<128x128xbf16>
    %cst_31 = arith.constant dense<0.000000e+00> : vector<2x128xf32>
    %61 = tpu.matmul %59, %60, %cst_31 {dimension_numbers = #tpu.dot_dimension_numbers<[1], [0], [0], [1], [0, 0, 1, 1], [], []>} : vector<2x128xbf16>, vector<128x128xbf16>, vector<2x128xf32> -> vector<2x128xf32>
    %c0_32 = arith.constant 0 : index
    %c0_33 = arith.constant 0 : index
    %62 = vector.load %arg10[%c0_32, %c0_33] : memref<1x128xf32, #tpu.memory_space<vmem>>, vector<1x128xf32>
    %63 = vector.broadcast %62 : vector<1x128xf32> to vector<2x128xf32>
    %64 = arith.addf %61, %63 : vector<2x128xf32>
    %cst_34 = arith.constant dense<0.000000e+00> : vector<128xf32>
    %65 = vector.multi_reduction <add>, %64, %cst_34 [0] : vector<2x128xf32> to vector<128xf32>
    %66 = vector.shape_cast %65 : vector<128xf32> to vector<1x128xf32>
    %67 = arith.mulf %64, %64 : vector<2x128xf32>
    %cst_35 = arith.constant dense<0.000000e+00> : vector<128xf32>
    %68 = vector.multi_reduction <add>, %67, %cst_35 [0] : vector<2x128xf32> to vector<128xf32>
    %69 = vector.shape_cast %68 : vector<128xf32> to vector<1x128xf32>
    %c0_36 = arith.constant 0 : index
    %c0_37 = arith.constant 0 : index
    %70 = vector.load %arg7[%c0_36, %c0_37] : memref<128x8xf32, #tpu.memory_space<vmem>>, vector<128x8xf32>
    %cst_38 = arith.constant dense<0.000000e+00> : vector<1x8xf32>
    %71 = tpu.matmul %66, %70, %cst_38 {dimension_numbers = #tpu.dot_dimension_numbers<[1], [0], [0], [1], [0, 0, 1, 1], [], []>} : vector<1x128xf32>, vector<128x8xf32>, vector<1x8xf32> -> vector<1x8xf32>
    %c0_39 = arith.constant 0 : index
    %c0_40 = arith.constant 0 : index
    %72 = vector.load %arg7[%c0_39, %c0_40] : memref<128x8xf32, #tpu.memory_space<vmem>>, vector<128x8xf32>
    %cst_41 = arith.constant dense<0.000000e+00> : vector<1x8xf32>
    %73 = tpu.matmul %69, %72, %cst_41 {dimension_numbers = #tpu.dot_dimension_numbers<[1], [0], [0], [1], [0, 0, 1, 1], [], []>} : vector<1x128xf32>, vector<128x8xf32>, vector<1x8xf32> -> vector<1x8xf32>
    %cst_42 = arith.constant 3.125000e-02 : f32
    %74 = vector.broadcast %cst_42 : f32 to vector<1x8xf32>
    %75 = arith.mulf %71, %74 : vector<1x8xf32>
    %cst_43 = arith.constant 3.125000e-02 : f32
    %76 = vector.broadcast %cst_43 : f32 to vector<1x8xf32>
    %77 = arith.mulf %73, %76 : vector<1x8xf32>
    %78 = arith.mulf %75, %75 : vector<1x8xf32>
    %79 = arith.subf %77, %78 : vector<1x8xf32>
    %cst_44 = arith.constant 0.000000e+00 : f32
    %80 = vector.broadcast %cst_44 : f32 to vector<1x8xf32>
    %81 = arith.maximumf %79, %80 : vector<1x8xf32>
    %c0_45 = arith.constant 0 : index
    %c0_46 = arith.constant 0 : index
    %82 = vector.load %arg11[%c0_45, %c0_46] : memref<1x8xf32, #tpu.memory_space<vmem>>, vector<1x8xf32>
    %cst_47 = arith.constant 9.99999974E-6 : f32
    %83 = vector.broadcast %cst_47 : f32 to vector<1x8xf32>
    %84 = arith.addf %81, %83 : vector<1x8xf32>
    %85 = math.rsqrt %84 : vector<1x8xf32>
    %86 = arith.mulf %82, %85 : vector<1x8xf32>
    %c0_48 = arith.constant 0 : index
    %c0_49 = arith.constant 0 : index
    %87 = vector.load %arg12[%c0_48, %c0_49] : memref<1x8xf32, #tpu.memory_space<vmem>>, vector<1x8xf32>
    %88 = arith.mulf %75, %86 : vector<1x8xf32>
    %89 = arith.subf %87, %88 : vector<1x8xf32>
    %c0_50 = arith.constant 0 : index
    %c0_51 = arith.constant 0 : index
    %90 = vector.load %arg8[%c0_50, %c0_51] : memref<8x128xf32, #tpu.memory_space<vmem>>, vector<8x128xf32>
    %cst_52 = arith.constant dense<0.000000e+00> : vector<1x128xf32>
    %91 = tpu.matmul %86, %90, %cst_52 {dimension_numbers = #tpu.dot_dimension_numbers<[1], [0], [0], [1], [0, 0, 1, 1], [], []>} : vector<1x8xf32>, vector<8x128xf32>, vector<1x128xf32> -> vector<1x128xf32>
    %c0_53 = arith.constant 0 : index
    %c0_54 = arith.constant 0 : index
    %92 = vector.load %arg8[%c0_53, %c0_54] : memref<8x128xf32, #tpu.memory_space<vmem>>, vector<8x128xf32>
    %cst_55 = arith.constant dense<0.000000e+00> : vector<1x128xf32>
    %93 = tpu.matmul %89, %92, %cst_55 {dimension_numbers = #tpu.dot_dimension_numbers<[1], [0], [0], [1], [0, 0, 1, 1], [], []>} : vector<1x8xf32>, vector<8x128xf32>, vector<1x128xf32> -> vector<1x128xf32>
    %94 = vector.broadcast %91 : vector<1x128xf32> to vector<2x128xf32>
    %95 = arith.mulf %64, %94 : vector<2x128xf32>
    %96 = vector.broadcast %93 : vector<1x128xf32> to vector<2x128xf32>
    %97 = arith.addf %95, %96 : vector<2x128xf32>
    %cst_56 = arith.constant 0.000000e+00 : f32
    %98 = vector.broadcast %cst_56 : f32 to vector<2x128xf32>
    %99 = arith.maximumf %97, %98 : vector<2x128xf32>
    %100 = arith.truncf %99 : vector<2x128xf32> to vector<2x128xbf16>
    %c0_57 = arith.constant 0 : index
    %c0_58 = arith.constant 0 : index
    %101 = vector.load %arg13[%c0_57, %c0_58] : memref<128x128xbf16, #tpu.memory_space<vmem>>, vector<128x128xbf16>
    %cst_59 = arith.constant dense<0.000000e+00> : vector<2x128xf32>
    %102 = tpu.matmul %100, %101, %cst_59 {dimension_numbers = #tpu.dot_dimension_numbers<[1], [0], [0], [1], [0, 0, 1, 1], [], []>} : vector<2x128xbf16>, vector<128x128xbf16>, vector<2x128xf32> -> vector<2x128xf32>
    %c0_60 = arith.constant 0 : index
    %c0_61 = arith.constant 0 : index
    %103 = vector.load %arg14[%c0_60, %c0_61] : memref<1x128xf32, #tpu.memory_space<vmem>>, vector<1x128xf32>
    %104 = vector.broadcast %103 : vector<1x128xf32> to vector<2x128xf32>
    %105 = arith.addf %102, %104 : vector<2x128xf32>
    %cst_62 = arith.constant dense<0.000000e+00> : vector<128xf32>
    %106 = vector.multi_reduction <add>, %105, %cst_62 [0] : vector<2x128xf32> to vector<128xf32>
    %107 = vector.shape_cast %106 : vector<128xf32> to vector<1x128xf32>
    %108 = arith.mulf %105, %105 : vector<2x128xf32>
    %cst_63 = arith.constant dense<0.000000e+00> : vector<128xf32>
    %109 = vector.multi_reduction <add>, %108, %cst_63 [0] : vector<2x128xf32> to vector<128xf32>
    %110 = vector.shape_cast %109 : vector<128xf32> to vector<1x128xf32>
    %c0_64 = arith.constant 0 : index
    %c0_65 = arith.constant 0 : index
    %111 = vector.load %arg7[%c0_64, %c0_65] : memref<128x8xf32, #tpu.memory_space<vmem>>, vector<128x8xf32>
    %cst_66 = arith.constant dense<0.000000e+00> : vector<1x8xf32>
    %112 = tpu.matmul %107, %111, %cst_66 {dimension_numbers = #tpu.dot_dimension_numbers<[1], [0], [0], [1], [0, 0, 1, 1], [], []>} : vector<1x128xf32>, vector<128x8xf32>, vector<1x8xf32> -> vector<1x8xf32>
    %c0_67 = arith.constant 0 : index
    %c0_68 = arith.constant 0 : index
    %113 = vector.load %arg7[%c0_67, %c0_68] : memref<128x8xf32, #tpu.memory_space<vmem>>, vector<128x8xf32>
    %cst_69 = arith.constant dense<0.000000e+00> : vector<1x8xf32>
    %114 = tpu.matmul %110, %113, %cst_69 {dimension_numbers = #tpu.dot_dimension_numbers<[1], [0], [0], [1], [0, 0, 1, 1], [], []>} : vector<1x128xf32>, vector<128x8xf32>, vector<1x8xf32> -> vector<1x8xf32>
    %cst_70 = arith.constant 3.125000e-02 : f32
    %115 = vector.broadcast %cst_70 : f32 to vector<1x8xf32>
    %116 = arith.mulf %112, %115 : vector<1x8xf32>
    %cst_71 = arith.constant 3.125000e-02 : f32
    %117 = vector.broadcast %cst_71 : f32 to vector<1x8xf32>
    %118 = arith.mulf %114, %117 : vector<1x8xf32>
    %119 = arith.mulf %116, %116 : vector<1x8xf32>
    %120 = arith.subf %118, %119 : vector<1x8xf32>
    %cst_72 = arith.constant 0.000000e+00 : f32
    %121 = vector.broadcast %cst_72 : f32 to vector<1x8xf32>
    %122 = arith.maximumf %120, %121 : vector<1x8xf32>
    %c0_73 = arith.constant 0 : index
    %c0_74 = arith.constant 0 : index
    %123 = vector.load %arg15[%c0_73, %c0_74] : memref<1x8xf32, #tpu.memory_space<vmem>>, vector<1x8xf32>
    %cst_75 = arith.constant 9.99999974E-6 : f32
    %124 = vector.broadcast %cst_75 : f32 to vector<1x8xf32>
    %125 = arith.addf %122, %124 : vector<1x8xf32>
    %126 = math.rsqrt %125 : vector<1x8xf32>
    %127 = arith.mulf %123, %126 : vector<1x8xf32>
    %c0_76 = arith.constant 0 : index
    %c0_77 = arith.constant 0 : index
    %128 = vector.load %arg16[%c0_76, %c0_77] : memref<1x8xf32, #tpu.memory_space<vmem>>, vector<1x8xf32>
    %129 = arith.mulf %116, %127 : vector<1x8xf32>
    %130 = arith.subf %128, %129 : vector<1x8xf32>
    %c0_78 = arith.constant 0 : index
    %c0_79 = arith.constant 0 : index
    %131 = vector.load %arg8[%c0_78, %c0_79] : memref<8x128xf32, #tpu.memory_space<vmem>>, vector<8x128xf32>
    %cst_80 = arith.constant dense<0.000000e+00> : vector<1x128xf32>
    %132 = tpu.matmul %127, %131, %cst_80 {dimension_numbers = #tpu.dot_dimension_numbers<[1], [0], [0], [1], [0, 0, 1, 1], [], []>} : vector<1x8xf32>, vector<8x128xf32>, vector<1x128xf32> -> vector<1x128xf32>
    %c0_81 = arith.constant 0 : index
    %c0_82 = arith.constant 0 : index
    %133 = vector.load %arg8[%c0_81, %c0_82] : memref<8x128xf32, #tpu.memory_space<vmem>>, vector<8x128xf32>
    %cst_83 = arith.constant dense<0.000000e+00> : vector<1x128xf32>
    %134 = tpu.matmul %130, %133, %cst_83 {dimension_numbers = #tpu.dot_dimension_numbers<[1], [0], [0], [1], [0, 0, 1, 1], [], []>} : vector<1x8xf32>, vector<8x128xf32>, vector<1x128xf32> -> vector<1x128xf32>
    %135 = vector.broadcast %132 : vector<1x128xf32> to vector<2x128xf32>
    %136 = arith.mulf %105, %135 : vector<2x128xf32>
    %137 = vector.broadcast %134 : vector<1x128xf32> to vector<2x128xf32>
    %138 = arith.addf %136, %137 : vector<2x128xf32>
    %139 = arith.addf %58, %138 : vector<2x128xf32>
    %140 = arith.truncf %139 : vector<2x128xf32> to vector<2x128xbf16>
    %c0_84 = arith.constant 0 : index
    %c0_85 = arith.constant 0 : index
    %141 = vector.load %arg23[%c0_84, %c0_85] : memref<128x64xbf16, #tpu.memory_space<vmem>>, vector<128x64xbf16>
    %cst_86 = arith.constant dense<0.000000e+00> : vector<2x64xf32>
    %142 = tpu.matmul %140, %141, %cst_86 {dimension_numbers = #tpu.dot_dimension_numbers<[1], [0], [0], [1], [0, 0, 1, 1], [], []>} : vector<2x128xbf16>, vector<128x64xbf16>, vector<2x64xf32> -> vector<2x64xf32>
    %c0_87 = arith.constant 0 : index
    %c0_88 = arith.constant 0 : index
    %143 = vector.load %arg24[%c0_87, %c0_88] : memref<1x64xf32, #tpu.memory_space<vmem>>, vector<1x64xf32>
    %144 = vector.broadcast %143 : vector<1x64xf32> to vector<2x64xf32>
    %145 = arith.addf %142, %144 : vector<2x64xf32>
    %cst_89 = arith.constant dense<0.000000e+00> : vector<64xf32>
    %146 = vector.multi_reduction <add>, %145, %cst_89 [0] : vector<2x64xf32> to vector<64xf32>
    %147 = vector.shape_cast %146 : vector<64xf32> to vector<1x64xf32>
    %148 = arith.mulf %145, %145 : vector<2x64xf32>
    %cst_90 = arith.constant dense<0.000000e+00> : vector<64xf32>
    %149 = vector.multi_reduction <add>, %148, %cst_90 [0] : vector<2x64xf32> to vector<64xf32>
    %150 = vector.shape_cast %149 : vector<64xf32> to vector<1x64xf32>
    %c0_91 = arith.constant 0 : index
    %c0_92 = arith.constant 0 : index
    %151 = vector.load %arg17[%c0_91, %c0_92] : memref<64x16xf32, #tpu.memory_space<vmem>>, vector<64x16xf32>
    %cst_93 = arith.constant dense<0.000000e+00> : vector<1x16xf32>
    %152 = tpu.matmul %147, %151, %cst_93 {dimension_numbers = #tpu.dot_dimension_numbers<[1], [0], [0], [1], [0, 0, 1, 1], [], []>} : vector<1x64xf32>, vector<64x16xf32>, vector<1x16xf32> -> vector<1x16xf32>
    %c0_94 = arith.constant 0 : index
    %c0_95 = arith.constant 0 : index
    %153 = vector.load %arg17[%c0_94, %c0_95] : memref<64x16xf32, #tpu.memory_space<vmem>>, vector<64x16xf32>
    %cst_96 = arith.constant dense<0.000000e+00> : vector<1x16xf32>
    %154 = tpu.matmul %150, %153, %cst_96 {dimension_numbers = #tpu.dot_dimension_numbers<[1], [0], [0], [1], [0, 0, 1, 1], [], []>} : vector<1x64xf32>, vector<64x16xf32>, vector<1x16xf32> -> vector<1x16xf32>
    %cst_97 = arith.constant 1.250000e-01 : f32
    %155 = vector.broadcast %cst_97 : f32 to vector<1x16xf32>
    %156 = arith.mulf %152, %155 : vector<1x16xf32>
    %cst_98 = arith.constant 1.250000e-01 : f32
    %157 = vector.broadcast %cst_98 : f32 to vector<1x16xf32>
    %158 = arith.mulf %154, %157 : vector<1x16xf32>
    %159 = arith.mulf %156, %156 : vector<1x16xf32>
    %160 = arith.subf %158, %159 : vector<1x16xf32>
    %cst_99 = arith.constant 0.000000e+00 : f32
    %161 = vector.broadcast %cst_99 : f32 to vector<1x16xf32>
    %162 = arith.maximumf %160, %161 : vector<1x16xf32>
    %c0_100 = arith.constant 0 : index
    %c0_101 = arith.constant 0 : index
    %163 = vector.load %arg25[%c0_100, %c0_101] : memref<1x16xf32, #tpu.memory_space<vmem>>, vector<1x16xf32>
    %cst_102 = arith.constant 9.99999974E-6 : f32
    %164 = vector.broadcast %cst_102 : f32 to vector<1x16xf32>
    %165 = arith.addf %162, %164 : vector<1x16xf32>
    %166 = math.rsqrt %165 : vector<1x16xf32>
    %167 = arith.mulf %163, %166 : vector<1x16xf32>
    %c0_103 = arith.constant 0 : index
    %c0_104 = arith.constant 0 : index
    %168 = vector.load %arg26[%c0_103, %c0_104] : memref<1x16xf32, #tpu.memory_space<vmem>>, vector<1x16xf32>
    %169 = arith.mulf %156, %167 : vector<1x16xf32>
    %170 = arith.subf %168, %169 : vector<1x16xf32>
    %c0_105 = arith.constant 0 : index
    %c0_106 = arith.constant 0 : index
    %171 = vector.load %arg18[%c0_105, %c0_106] : memref<16x64xf32, #tpu.memory_space<vmem>>, vector<16x64xf32>
    %cst_107 = arith.constant dense<0.000000e+00> : vector<1x64xf32>
    %172 = tpu.matmul %167, %171, %cst_107 {dimension_numbers = #tpu.dot_dimension_numbers<[1], [0], [0], [1], [0, 0, 1, 1], [], []>} : vector<1x16xf32>, vector<16x64xf32>, vector<1x64xf32> -> vector<1x64xf32>
    %c0_108 = arith.constant 0 : index
    %c0_109 = arith.constant 0 : index
    %173 = vector.load %arg18[%c0_108, %c0_109] : memref<16x64xf32, #tpu.memory_space<vmem>>, vector<16x64xf32>
    %cst_110 = arith.constant dense<0.000000e+00> : vector<1x64xf32>
    %174 = tpu.matmul %170, %173, %cst_110 {dimension_numbers = #tpu.dot_dimension_numbers<[1], [0], [0], [1], [0, 0, 1, 1], [], []>} : vector<1x16xf32>, vector<16x64xf32>, vector<1x64xf32> -> vector<1x64xf32>
    %175 = vector.broadcast %172 : vector<1x64xf32> to vector<2x64xf32>
    %176 = arith.mulf %145, %175 : vector<2x64xf32>
    %177 = vector.broadcast %174 : vector<1x64xf32> to vector<2x64xf32>
    %178 = arith.addf %176, %177 : vector<2x64xf32>
    %179 = arith.truncf %139 : vector<2x128xf32> to vector<2x128xbf16>
    %c0_111 = arith.constant 0 : index
    %c0_112 = arith.constant 0 : index
    %180 = vector.load %arg19[%c0_111, %c0_112] : memref<128x64xbf16, #tpu.memory_space<vmem>>, vector<128x64xbf16>
    %cst_113 = arith.constant dense<0.000000e+00> : vector<2x64xf32>
    %181 = tpu.matmul %179, %180, %cst_113 {dimension_numbers = #tpu.dot_dimension_numbers<[1], [0], [0], [1], [0, 0, 1, 1], [], []>} : vector<2x128xbf16>, vector<128x64xbf16>, vector<2x64xf32> -> vector<2x64xf32>
    %c0_114 = arith.constant 0 : index
    %c0_115 = arith.constant 0 : index
    %182 = vector.load %arg20[%c0_114, %c0_115] : memref<1x64xf32, #tpu.memory_space<vmem>>, vector<1x64xf32>
    %183 = vector.broadcast %182 : vector<1x64xf32> to vector<2x64xf32>
    %184 = arith.addf %181, %183 : vector<2x64xf32>
    %cst_116 = arith.constant dense<0.000000e+00> : vector<64xf32>
    %185 = vector.multi_reduction <add>, %184, %cst_116 [0] : vector<2x64xf32> to vector<64xf32>
    %186 = vector.shape_cast %185 : vector<64xf32> to vector<1x64xf32>
    %187 = arith.mulf %184, %184 : vector<2x64xf32>
    %cst_117 = arith.constant dense<0.000000e+00> : vector<64xf32>
    %188 = vector.multi_reduction <add>, %187, %cst_117 [0] : vector<2x64xf32> to vector<64xf32>
    %189 = vector.shape_cast %188 : vector<64xf32> to vector<1x64xf32>
    %c0_118 = arith.constant 0 : index
    %c0_119 = arith.constant 0 : index
    %190 = vector.load %arg17[%c0_118, %c0_119] : memref<64x16xf32, #tpu.memory_space<vmem>>, vector<64x16xf32>
    %cst_120 = arith.constant dense<0.000000e+00> : vector<1x16xf32>
    %191 = tpu.matmul %186, %190, %cst_120 {dimension_numbers = #tpu.dot_dimension_numbers<[1], [0], [0], [1], [0, 0, 1, 1], [], []>} : vector<1x64xf32>, vector<64x16xf32>, vector<1x16xf32> -> vector<1x16xf32>
    %c0_121 = arith.constant 0 : index
    %c0_122 = arith.constant 0 : index
    %192 = vector.load %arg17[%c0_121, %c0_122] : memref<64x16xf32, #tpu.memory_space<vmem>>, vector<64x16xf32>
    %cst_123 = arith.constant dense<0.000000e+00> : vector<1x16xf32>
    %193 = tpu.matmul %189, %192, %cst_123 {dimension_numbers = #tpu.dot_dimension_numbers<[1], [0], [0], [1], [0, 0, 1, 1], [], []>} : vector<1x64xf32>, vector<64x16xf32>, vector<1x16xf32> -> vector<1x16xf32>
    %cst_124 = arith.constant 1.250000e-01 : f32
    %194 = vector.broadcast %cst_124 : f32 to vector<1x16xf32>
    %195 = arith.mulf %191, %194 : vector<1x16xf32>
    %cst_125 = arith.constant 1.250000e-01 : f32
    %196 = vector.broadcast %cst_125 : f32 to vector<1x16xf32>
    %197 = arith.mulf %193, %196 : vector<1x16xf32>
    %198 = arith.mulf %195, %195 : vector<1x16xf32>
    %199 = arith.subf %197, %198 : vector<1x16xf32>
    %cst_126 = arith.constant 0.000000e+00 : f32
    %200 = vector.broadcast %cst_126 : f32 to vector<1x16xf32>
    %201 = arith.maximumf %199, %200 : vector<1x16xf32>
    %c0_127 = arith.constant 0 : index
    %c0_128 = arith.constant 0 : index
    %202 = vector.load %arg21[%c0_127, %c0_128] : memref<1x16xf32, #tpu.memory_space<vmem>>, vector<1x16xf32>
    %cst_129 = arith.constant 9.99999974E-6 : f32
    %203 = vector.broadcast %cst_129 : f32 to vector<1x16xf32>
    %204 = arith.addf %201, %203 : vector<1x16xf32>
    %205 = math.rsqrt %204 : vector<1x16xf32>
    %206 = arith.mulf %202, %205 : vector<1x16xf32>
    %c0_130 = arith.constant 0 : index
    %c0_131 = arith.constant 0 : index
    %207 = vector.load %arg22[%c0_130, %c0_131] : memref<1x16xf32, #tpu.memory_space<vmem>>, vector<1x16xf32>
    %208 = arith.mulf %195, %206 : vector<1x16xf32>
    %209 = arith.subf %207, %208 : vector<1x16xf32>
    %c0_132 = arith.constant 0 : index
    %c0_133 = arith.constant 0 : index
    %210 = vector.load %arg18[%c0_132, %c0_133] : memref<16x64xf32, #tpu.memory_space<vmem>>, vector<16x64xf32>
    %cst_134 = arith.constant dense<0.000000e+00> : vector<1x64xf32>
    %211 = tpu.matmul %206, %210, %cst_134 {dimension_numbers = #tpu.dot_dimension_numbers<[1], [0], [0], [1], [0, 0, 1, 1], [], []>} : vector<1x16xf32>, vector<16x64xf32>, vector<1x64xf32> -> vector<1x64xf32>
    %c0_135 = arith.constant 0 : index
    %c0_136 = arith.constant 0 : index
    %212 = vector.load %arg18[%c0_135, %c0_136] : memref<16x64xf32, #tpu.memory_space<vmem>>, vector<16x64xf32>
    %cst_137 = arith.constant dense<0.000000e+00> : vector<1x64xf32>
    %213 = tpu.matmul %209, %212, %cst_137 {dimension_numbers = #tpu.dot_dimension_numbers<[1], [0], [0], [1], [0, 0, 1, 1], [], []>} : vector<1x16xf32>, vector<16x64xf32>, vector<1x64xf32> -> vector<1x64xf32>
    %214 = vector.broadcast %211 : vector<1x64xf32> to vector<2x64xf32>
    %215 = arith.mulf %184, %214 : vector<2x64xf32>
    %216 = vector.broadcast %213 : vector<1x64xf32> to vector<2x64xf32>
    %217 = arith.addf %215, %216 : vector<2x64xf32>
    %cst_138 = arith.constant 0.000000e+00 : f32
    %218 = vector.broadcast %cst_138 : f32 to vector<2x64xf32>
    %219 = arith.maximumf %217, %218 : vector<2x64xf32>
    %220 = arith.truncf %219 : vector<2x64xf32> to vector<2x64xbf16>
    %c0_139 = arith.constant 0 : index
    %c0_140 = arith.constant 0 : index
    %221 = vector.load %arg27[%c0_139, %c0_140] : memref<64x64xbf16, #tpu.memory_space<vmem>>, vector<64x64xbf16>
    %cst_141 = arith.constant dense<0.000000e+00> : vector<2x64xf32>
    %222 = tpu.matmul %220, %221, %cst_141 {dimension_numbers = #tpu.dot_dimension_numbers<[1], [0], [0], [1], [0, 0, 1, 1], [], []>} : vector<2x64xbf16>, vector<64x64xbf16>, vector<2x64xf32> -> vector<2x64xf32>
    %c0_142 = arith.constant 0 : index
    %c0_143 = arith.constant 0 : index
    %223 = vector.load %arg28[%c0_142, %c0_143] : memref<1x64xf32, #tpu.memory_space<vmem>>, vector<1x64xf32>
    %224 = vector.broadcast %223 : vector<1x64xf32> to vector<2x64xf32>
    %225 = arith.addf %222, %224 : vector<2x64xf32>
    %cst_144 = arith.constant dense<0.000000e+00> : vector<64xf32>
    %226 = vector.multi_reduction <add>, %225, %cst_144 [0] : vector<2x64xf32> to vector<64xf32>
    %227 = vector.shape_cast %226 : vector<64xf32> to vector<1x64xf32>
    %228 = arith.mulf %225, %225 : vector<2x64xf32>
    %cst_145 = arith.constant dense<0.000000e+00> : vector<64xf32>
    %229 = vector.multi_reduction <add>, %228, %cst_145 [0] : vector<2x64xf32> to vector<64xf32>
    %230 = vector.shape_cast %229 : vector<64xf32> to vector<1x64xf32>
    %c0_146 = arith.constant 0 : index
    %c0_147 = arith.constant 0 : index
    %231 = vector.load %arg17[%c0_146, %c0_147] : memref<64x16xf32, #tpu.memory_space<vmem>>, vector<64x16xf32>
    %cst_148 = arith.constant dense<0.000000e+00> : vector<1x16xf32>
    %232 = tpu.matmul %227, %231, %cst_148 {dimension_numbers = #tpu.dot_dimension_numbers<[1], [0], [0], [1], [0, 0, 1, 1], [], []>} : vector<1x64xf32>, vector<64x16xf32>, vector<1x16xf32> -> vector<1x16xf32>
    %c0_149 = arith.constant 0 : index
    %c0_150 = arith.constant 0 : index
    %233 = vector.load %arg17[%c0_149, %c0_150] : memref<64x16xf32, #tpu.memory_space<vmem>>, vector<64x16xf32>
    %cst_151 = arith.constant dense<0.000000e+00> : vector<1x16xf32>
    %234 = tpu.matmul %230, %233, %cst_151 {dimension_numbers = #tpu.dot_dimension_numbers<[1], [0], [0], [1], [0, 0, 1, 1], [], []>} : vector<1x64xf32>, vector<64x16xf32>, vector<1x16xf32> -> vector<1x16xf32>
    %cst_152 = arith.constant 1.250000e-01 : f32
    %235 = vector.broadcast %cst_152 : f32 to vector<1x16xf32>
    %236 = arith.mulf %232, %235 : vector<1x16xf32>
    %cst_153 = arith.constant 1.250000e-01 : f32
    %237 = vector.broadcast %cst_153 : f32 to vector<1x16xf32>
    %238 = arith.mulf %234, %237 : vector<1x16xf32>
    %239 = arith.mulf %236, %236 : vector<1x16xf32>
    %240 = arith.subf %238, %239 : vector<1x16xf32>
    %cst_154 = arith.constant 0.000000e+00 : f32
    %241 = vector.broadcast %cst_154 : f32 to vector<1x16xf32>
    %242 = arith.maximumf %240, %241 : vector<1x16xf32>
    %c0_155 = arith.constant 0 : index
    %c0_156 = arith.constant 0 : index
    %243 = vector.load %arg29[%c0_155, %c0_156] : memref<1x16xf32, #tpu.memory_space<vmem>>, vector<1x16xf32>
    %cst_157 = arith.constant 9.99999974E-6 : f32
    %244 = vector.broadcast %cst_157 : f32 to vector<1x16xf32>
    %245 = arith.addf %242, %244 : vector<1x16xf32>
    %246 = math.rsqrt %245 : vector<1x16xf32>
    %247 = arith.mulf %243, %246 : vector<1x16xf32>
    %c0_158 = arith.constant 0 : index
    %c0_159 = arith.constant 0 : index
    %248 = vector.load %arg30[%c0_158, %c0_159] : memref<1x16xf32, #tpu.memory_space<vmem>>, vector<1x16xf32>
    %249 = arith.mulf %236, %247 : vector<1x16xf32>
    %250 = arith.subf %248, %249 : vector<1x16xf32>
    %c0_160 = arith.constant 0 : index
    %c0_161 = arith.constant 0 : index
    %251 = vector.load %arg18[%c0_160, %c0_161] : memref<16x64xf32, #tpu.memory_space<vmem>>, vector<16x64xf32>
    %cst_162 = arith.constant dense<0.000000e+00> : vector<1x64xf32>
    %252 = tpu.matmul %247, %251, %cst_162 {dimension_numbers = #tpu.dot_dimension_numbers<[1], [0], [0], [1], [0, 0, 1, 1], [], []>} : vector<1x16xf32>, vector<16x64xf32>, vector<1x64xf32> -> vector<1x64xf32>
    %c0_163 = arith.constant 0 : index
    %c0_164 = arith.constant 0 : index
    %253 = vector.load %arg18[%c0_163, %c0_164] : memref<16x64xf32, #tpu.memory_space<vmem>>, vector<16x64xf32>
    %cst_165 = arith.constant dense<0.000000e+00> : vector<1x64xf32>
    %254 = tpu.matmul %250, %253, %cst_165 {dimension_numbers = #tpu.dot_dimension_numbers<[1], [0], [0], [1], [0, 0, 1, 1], [], []>} : vector<1x16xf32>, vector<16x64xf32>, vector<1x64xf32> -> vector<1x64xf32>
    %255 = vector.broadcast %252 : vector<1x64xf32> to vector<2x64xf32>
    %256 = arith.mulf %225, %255 : vector<2x64xf32>
    %257 = vector.broadcast %254 : vector<1x64xf32> to vector<2x64xf32>
    %258 = arith.addf %256, %257 : vector<2x64xf32>
    %259 = arith.addf %178, %258 : vector<2x64xf32>
    %260 = arith.truncf %259 : vector<2x64xf32> to vector<2x64xbf16>
    %c0_166 = arith.constant 0 : index
    %c0_167 = arith.constant 0 : index
    %261 = vector.load %arg35[%c0_166, %c0_167] : memref<64x32xbf16, #tpu.memory_space<vmem>>, vector<64x32xbf16>
    %cst_168 = arith.constant dense<0.000000e+00> : vector<2x32xf32>
    %262 = tpu.matmul %260, %261, %cst_168 {dimension_numbers = #tpu.dot_dimension_numbers<[1], [0], [0], [1], [0, 0, 1, 1], [], []>} : vector<2x64xbf16>, vector<64x32xbf16>, vector<2x32xf32> -> vector<2x32xf32>
    %c0_169 = arith.constant 0 : index
    %c0_170 = arith.constant 0 : index
    %263 = vector.load %arg36[%c0_169, %c0_170] : memref<1x32xf32, #tpu.memory_space<vmem>>, vector<1x32xf32>
    %264 = vector.broadcast %263 : vector<1x32xf32> to vector<2x32xf32>
    %265 = arith.addf %262, %264 : vector<2x32xf32>
    %cst_171 = arith.constant dense<0.000000e+00> : vector<32xf32>
    %266 = vector.multi_reduction <add>, %265, %cst_171 [0] : vector<2x32xf32> to vector<32xf32>
    %267 = vector.shape_cast %266 : vector<32xf32> to vector<1x32xf32>
    %268 = arith.mulf %265, %265 : vector<2x32xf32>
    %cst_172 = arith.constant dense<0.000000e+00> : vector<32xf32>
    %269 = vector.multi_reduction <add>, %268, %cst_172 [0] : vector<2x32xf32> to vector<32xf32>
    %270 = vector.shape_cast %269 : vector<32xf32> to vector<1x32xf32>
    %cst_173 = arith.constant 5.000000e-01 : f32
    %271 = vector.broadcast %cst_173 : f32 to vector<1x32xf32>
    %272 = arith.mulf %267, %271 : vector<1x32xf32>
    %cst_174 = arith.constant 5.000000e-01 : f32
    %273 = vector.broadcast %cst_174 : f32 to vector<1x32xf32>
    %274 = arith.mulf %270, %273 : vector<1x32xf32>
    %275 = arith.mulf %272, %272 : vector<1x32xf32>
    %276 = arith.subf %274, %275 : vector<1x32xf32>
    %cst_175 = arith.constant 0.000000e+00 : f32
    %277 = vector.broadcast %cst_175 : f32 to vector<1x32xf32>
    %278 = arith.maximumf %276, %277 : vector<1x32xf32>
    %c0_176 = arith.constant 0 : index
    %c0_177 = arith.constant 0 : index
    %279 = vector.load %arg37[%c0_176, %c0_177] : memref<1x32xf32, #tpu.memory_space<vmem>>, vector<1x32xf32>
    %cst_178 = arith.constant 9.99999974E-6 : f32
    %280 = vector.broadcast %cst_178 : f32 to vector<1x32xf32>
    %281 = arith.addf %278, %280 : vector<1x32xf32>
    %282 = math.rsqrt %281 : vector<1x32xf32>
    %283 = arith.mulf %279, %282 : vector<1x32xf32>
    %c0_179 = arith.constant 0 : index
    %c0_180 = arith.constant 0 : index
    %284 = vector.load %arg38[%c0_179, %c0_180] : memref<1x32xf32, #tpu.memory_space<vmem>>, vector<1x32xf32>
    %285 = arith.mulf %272, %283 : vector<1x32xf32>
    %286 = arith.subf %284, %285 : vector<1x32xf32>
    %287 = vector.broadcast %283 : vector<1x32xf32> to vector<2x32xf32>
    %288 = arith.mulf %265, %287 : vector<2x32xf32>
    %289 = vector.broadcast %286 : vector<1x32xf32> to vector<2x32xf32>
    %290 = arith.addf %288, %289 : vector<2x32xf32>
    %291 = arith.truncf %259 : vector<2x64xf32> to vector<2x64xbf16>
    %c0_181 = arith.constant 0 : index
    %c0_182 = arith.constant 0 : index
    %292 = vector.load %arg31[%c0_181, %c0_182] : memref<64x32xbf16, #tpu.memory_space<vmem>>, vector<64x32xbf16>
    %cst_183 = arith.constant dense<0.000000e+00> : vector<2x32xf32>
    %293 = tpu.matmul %291, %292, %cst_183 {dimension_numbers = #tpu.dot_dimension_numbers<[1], [0], [0], [1], [0, 0, 1, 1], [], []>} : vector<2x64xbf16>, vector<64x32xbf16>, vector<2x32xf32> -> vector<2x32xf32>
    %c0_184 = arith.constant 0 : index
    %c0_185 = arith.constant 0 : index
    %294 = vector.load %arg32[%c0_184, %c0_185] : memref<1x32xf32, #tpu.memory_space<vmem>>, vector<1x32xf32>
    %295 = vector.broadcast %294 : vector<1x32xf32> to vector<2x32xf32>
    %296 = arith.addf %293, %295 : vector<2x32xf32>
    %cst_186 = arith.constant dense<0.000000e+00> : vector<32xf32>
    %297 = vector.multi_reduction <add>, %296, %cst_186 [0] : vector<2x32xf32> to vector<32xf32>
    %298 = vector.shape_cast %297 : vector<32xf32> to vector<1x32xf32>
    %299 = arith.mulf %296, %296 : vector<2x32xf32>
    %cst_187 = arith.constant dense<0.000000e+00> : vector<32xf32>
    %300 = vector.multi_reduction <add>, %299, %cst_187 [0] : vector<2x32xf32> to vector<32xf32>
    %301 = vector.shape_cast %300 : vector<32xf32> to vector<1x32xf32>
    %cst_188 = arith.constant 5.000000e-01 : f32
    %302 = vector.broadcast %cst_188 : f32 to vector<1x32xf32>
    %303 = arith.mulf %298, %302 : vector<1x32xf32>
    %cst_189 = arith.constant 5.000000e-01 : f32
    %304 = vector.broadcast %cst_189 : f32 to vector<1x32xf32>
    %305 = arith.mulf %301, %304 : vector<1x32xf32>
    %306 = arith.mulf %303, %303 : vector<1x32xf32>
    %307 = arith.subf %305, %306 : vector<1x32xf32>
    %cst_190 = arith.constant 0.000000e+00 : f32
    %308 = vector.broadcast %cst_190 : f32 to vector<1x32xf32>
    %309 = arith.maximumf %307, %308 : vector<1x32xf32>
    %c0_191 = arith.constant 0 : index
    %c0_192 = arith.constant 0 : index
    %310 = vector.load %arg33[%c0_191, %c0_192] : memref<1x32xf32, #tpu.memory_space<vmem>>, vector<1x32xf32>
    %cst_193 = arith.constant 9.99999974E-6 : f32
    %311 = vector.broadcast %cst_193 : f32 to vector<1x32xf32>
    %312 = arith.addf %309, %311 : vector<1x32xf32>
    %313 = math.rsqrt %312 : vector<1x32xf32>
    %314 = arith.mulf %310, %313 : vector<1x32xf32>
    %c0_194 = arith.constant 0 : index
    %c0_195 = arith.constant 0 : index
    %315 = vector.load %arg34[%c0_194, %c0_195] : memref<1x32xf32, #tpu.memory_space<vmem>>, vector<1x32xf32>
    %316 = arith.mulf %303, %314 : vector<1x32xf32>
    %317 = arith.subf %315, %316 : vector<1x32xf32>
    %318 = vector.broadcast %314 : vector<1x32xf32> to vector<2x32xf32>
    %319 = arith.mulf %296, %318 : vector<2x32xf32>
    %320 = vector.broadcast %317 : vector<1x32xf32> to vector<2x32xf32>
    %321 = arith.addf %319, %320 : vector<2x32xf32>
    %cst_196 = arith.constant 0.000000e+00 : f32
    %322 = vector.broadcast %cst_196 : f32 to vector<2x32xf32>
    %323 = arith.maximumf %321, %322 : vector<2x32xf32>
    %324 = arith.truncf %323 : vector<2x32xf32> to vector<2x32xbf16>
    %c0_197 = arith.constant 0 : index
    %c0_198 = arith.constant 0 : index
    %325 = vector.load %arg39[%c0_197, %c0_198] : memref<32x32xbf16, #tpu.memory_space<vmem>>, vector<32x32xbf16>
    %cst_199 = arith.constant dense<0.000000e+00> : vector<2x32xf32>
    %326 = tpu.matmul %324, %325, %cst_199 {dimension_numbers = #tpu.dot_dimension_numbers<[1], [0], [0], [1], [0, 0, 1, 1], [], []>} : vector<2x32xbf16>, vector<32x32xbf16>, vector<2x32xf32> -> vector<2x32xf32>
    %c0_200 = arith.constant 0 : index
    %c0_201 = arith.constant 0 : index
    %327 = vector.load %arg40[%c0_200, %c0_201] : memref<1x32xf32, #tpu.memory_space<vmem>>, vector<1x32xf32>
    %328 = vector.broadcast %327 : vector<1x32xf32> to vector<2x32xf32>
    %329 = arith.addf %326, %328 : vector<2x32xf32>
    %cst_202 = arith.constant dense<0.000000e+00> : vector<32xf32>
    %330 = vector.multi_reduction <add>, %329, %cst_202 [0] : vector<2x32xf32> to vector<32xf32>
    %331 = vector.shape_cast %330 : vector<32xf32> to vector<1x32xf32>
    %332 = arith.mulf %329, %329 : vector<2x32xf32>
    %cst_203 = arith.constant dense<0.000000e+00> : vector<32xf32>
    %333 = vector.multi_reduction <add>, %332, %cst_203 [0] : vector<2x32xf32> to vector<32xf32>
    %334 = vector.shape_cast %333 : vector<32xf32> to vector<1x32xf32>
    %cst_204 = arith.constant 5.000000e-01 : f32
    %335 = vector.broadcast %cst_204 : f32 to vector<1x32xf32>
    %336 = arith.mulf %331, %335 : vector<1x32xf32>
    %cst_205 = arith.constant 5.000000e-01 : f32
    %337 = vector.broadcast %cst_205 : f32 to vector<1x32xf32>
    %338 = arith.mulf %334, %337 : vector<1x32xf32>
    %339 = arith.mulf %336, %336 : vector<1x32xf32>
    %340 = arith.subf %338, %339 : vector<1x32xf32>
    %cst_206 = arith.constant 0.000000e+00 : f32
    %341 = vector.broadcast %cst_206 : f32 to vector<1x32xf32>
    %342 = arith.maximumf %340, %341 : vector<1x32xf32>
    %c0_207 = arith.constant 0 : index
    %c0_208 = arith.constant 0 : index
    %343 = vector.load %arg41[%c0_207, %c0_208] : memref<1x32xf32, #tpu.memory_space<vmem>>, vector<1x32xf32>
    %cst_209 = arith.constant 9.99999974E-6 : f32
    %344 = vector.broadcast %cst_209 : f32 to vector<1x32xf32>
    %345 = arith.addf %342, %344 : vector<1x32xf32>
    %346 = math.rsqrt %345 : vector<1x32xf32>
    %347 = arith.mulf %343, %346 : vector<1x32xf32>
    %c0_210 = arith.constant 0 : index
    %c0_211 = arith.constant 0 : index
    %348 = vector.load %arg42[%c0_210, %c0_211] : memref<1x32xf32, #tpu.memory_space<vmem>>, vector<1x32xf32>
    %349 = arith.mulf %336, %347 : vector<1x32xf32>
    %350 = arith.subf %348, %349 : vector<1x32xf32>
    %351 = vector.broadcast %347 : vector<1x32xf32> to vector<2x32xf32>
    %352 = arith.mulf %329, %351 : vector<2x32xf32>
    %353 = vector.broadcast %350 : vector<1x32xf32> to vector<2x32xf32>
    %354 = arith.addf %352, %353 : vector<2x32xf32>
    %355 = arith.addf %290, %354 : vector<2x32xf32>
    %c0_212 = arith.constant 0 : index
    %c0_213 = arith.constant 0 : index
    %356 = vector.load %arg43[%c0_212, %c0_213] : memref<2x32xf32, #tpu.memory_space<vmem>>, vector<2x32xf32>
    tpu.vector_store %arg43[%c0_212, %c0_213], %355 {strides = array<i32>} : memref<2x32xf32, #tpu.memory_space<vmem>>, vector<2x32xf32>,
    return
  }
}

</mosaic_0001>

<llo_original>
// kernel: tile.31
$region0: #{tile.31}
  %s0 = inlined_call_operand.vmem [shape: f32[4,16], index: 0, kind: input, shape index: {}]
  %s1 = inlined_call_operand.vmem [shape: f32[1,64], index: 1, kind: output, shape index: {}]
  $region1: #{tile.31} parent=0
    #allocation0 [shape = 'u8[4096]{0}', space=vmem, size = 0x1000, scoped, tag = 'scoped mem for output reshape']
    #allocation1 [shape = 'u8[4096]{0}', space=vmem, size = 0x1000, scoped, tag = 'scoped mem for input reshape']
    %s3 = ssub.s32 16, 1
    %v4 = vld [vmem:[%s0] sm:%s3]
    %5 = vst [vmem:[#allocation1] sm:%s3] %v4
    %v6 = vld [vmem:[#allocation1] sm:$0x1]
    %vm7 = vcmask 130048
    %8 = vst.msk [vmem:[#allocation0] sm:$0x1] %vm7, %v6
    %s9 = scalar_lea.vmem [#allocation1], 3
    %v10 = vld [vmem:[%s9] sm:$0x1]
    %11 = vrot.lane.b32.xlu0 %v10, 48
    %v12 = vpop.permute.xlu0 %11
    %vm13 = vcmask 523648
    %14 = vst.msk [vmem:[#allocation0] sm:$0x1] %vm13, %v12
    %s15 = scalar_lea.vmem [#allocation1], 2
    %v16 = vld [vmem:[%s15] sm:$0x1]
    %17 = vrot.lane.b32.xlu0 %v16, 32
    %v18 = vpop.permute.xlu0 %17
    %vm19 = vcmask 392448
    %20 = vst.msk [vmem:[#allocation0] sm:$0x1] %vm19, %v18
    %s21 = scalar_lea.vmem [#allocation1], 1
    %v22 = vld [vmem:[%s21] sm:$0x1]
    %23 = vrot.lane.b32.xlu0 %v22, 16
    %v24 = vpop.permute.xlu0 %23
    %vm25 = vcmask 261248
    %26 = vst.msk [vmem:[#allocation0] sm:$0x1] %vm25, %v24
    %s28 = ssub.s32 2, 1
    %v29 = vld [vmem:[#allocation0] sm:%s28]
    %s31 = ssub.s32 2, 1
    %32 = vst [vmem:[%s1] sm:%s31] %v29

// kernel: tile.23
$region0: #{tile.23}
  %s0 = inlined_call_operand.vmem [shape: f32[16,8], index: 0, kind: input, shape index: {}]
  %s1 = inlined_call_operand.vmem [shape: f32[1,128], index: 1, kind: output, shape index: {}]
  $region1: #{tile.23} parent=0
    #allocation0 [shape = 'u8[4096]{0}', space=vmem, size = 0x1000, scoped, tag = 'scoped mem for output reshape']
    %v2 = vld [vmem:[%s0] sm:$0x1]
    %vm3 = vcmask 64512
    %4 = vst.msk [vmem:[#allocation0] sm:$0x1] %vm3, %v2
    %s5 = scalar_lea.vmem %s0, 15
    %v6 = vld [vmem:[%s5] sm:$0x1]
    %7 = vrot.lane.b32.xlu0 %v6, 120
    %v8 = vpop.permute.xlu0 %7
    %vm9 = vcmask 1048512
    %10 = vst.msk [vmem:[#allocation0] sm:$0x1] %vm9, %v8
    %s11 = scalar_lea.vmem %s0, 14
    %v12 = vld [vmem:[%s11] sm:$0x1]
    %13 = vrot.lane.b32.xlu0 %v12, 112
    %v14 = vpop.permute.xlu0 %13
    %vm15 = vcmask 982912
    %16 = vst.msk [vmem:[#allocation0] sm:$0x1] %vm15, %v14
    %s17 = scalar_lea.vmem %s0, 13
    %v18 = vld [vmem:[%s17] sm:$0x1]
    %19 = vrot.lane.b32.xlu0 %v18, 104
    %v20 = vpop.permute.xlu0 %19
    %vm21 = vcmask 917312
    %22 = vst.msk [vmem:[#allocation0] sm:$0x1] %vm21, %v20
    %s23 = scalar_lea.vmem %s0, 12
    %v24 = vld [vmem:[%s23] sm:$0x1]
    %25 = vrot.lane.b32.xlu0 %v24, 96
    %v26 = vpop.permute.xlu0 %25
    %vm27 = vcmask 851712
    %28 = vst.msk [vmem:[#allocation0] sm:$0x1] %vm27, %v26
    %s29 = scalar_lea.vmem %s0, 11
    %v30 = vld [vmem:[%s29] sm:$0x1]
    %31 = vrot.lane.b32.xlu0 %v30, 88
    %v32 = vpop.permute.xlu0 %31
    %vm33 = vcmask 786112
    %34 = vst.msk [vmem:[#allocation0] sm:$0x1] %vm33, %v32
    %s35 = scalar_lea.vmem %s0, 10
    %v36 = vld [vmem:[%s35] sm:$0x1]
    %37 = vrot.lane.b32.xlu0 %v36, 80
    %v38 = vpop.permute.xlu0 %37
    %vm39 = vcmask 720512
    %40 = vst.msk [vmem:[#allocation0] sm:$0x1] %vm39, %v38
    %s41 = scalar_lea.vmem %s0, 9
    %v42 = vld [vmem:[%s41] sm:$0x1]
    %43 = vrot.lane.b32.xlu0 %v42, 72
    %v44 = vpop.permute.xlu0 %43
    %vm45 = vcmask 654912
    %46 = vst.msk [vmem:[#allocation0] sm:$0x1] %vm45, %v44
    %s47 = scalar_lea.vmem %s0, 8
    %v48 = vld [vmem:[%s47] sm:$0x1]
    %49 = vrot.lane.b32.xlu0 %v48, 64
    %v50 = vpop.permute.xlu0 %49
    %vm51 = vcmask 589312
    %52 = vst.msk [vmem:[#allocation0] sm:$0x1] %vm51, %v50
    %s53 = scalar_lea.vmem %s0, 7
    %v54 = vld [vmem:[%s53] sm:$0x1]
    %55 = vrot.lane.b32.xlu0 %v54, 56
    %v56 = vpop.permute.xlu0 %55
    %vm57 = vcmask 523712
    %58 = vst.msk [vmem:[#allocation0] sm:$0x1] %vm57, %v56
    %s59 = scalar_lea.vmem %s0, 6
    %v60 = vld [vmem:[%s59] sm:$0x1]
    %61 = vrot.lane.b32.xlu0 %v60, 48
    %v62 = vpop.permute.xlu0 %61
    %vm63 = vcmask 458112
    %64 = vst.msk [vmem:[#allocation0] sm:$0x1] %vm63, %v62
    %s65 = scalar_lea.vmem %s0, 5
    %v66 = vld [vmem:[%s65] sm:$0x1]
    %67 = vrot.lane.b32.xlu0 %v66, 40
    %v68 = vpop.permute.xlu0 %67
    %vm69 = vcmask 392512
    %70 = vst.msk [vmem:[#allocation0] sm:$0x1] %vm69, %v68
    %s71 = scalar_lea.vmem %s0, 4
    %v72 = vld [vmem:[%s71] sm:$0x1]
    %73 = vrot.lane.b32.xlu0 %v72, 32
    %v74 = vpop.permute.xlu0 %73
    %vm75 = vcmask 326912
    %76 = vst.msk [vmem:[#allocation0] sm:$0x1] %vm75, %v74
    %s77 = scalar_lea.vmem %s0, 3
    %v78 = vld [vmem:[%s77] sm:$0x1]
    %79 = vrot.lane.b32.xlu0 %v78, 24
    %v80 = vpop.permute.xlu0 %79
    %vm81 = vcmask 261312
    %82 = vst.msk [vmem:[#allocation0] sm:$0x1] %vm81, %v80
    %s83 = scalar_lea.vmem %s0, 2
    %v84 = vld [vmem:[%s83] sm:$0x1]
    %85 = vrot.lane.b32.xlu0 %v84, 16
    %v86 = vpop.permute.xlu0 %85
    %vm87 = vcmask 195712
    %88 = vst.msk [vmem:[#allocation0] sm:$0x1] %vm87, %v86
    %s89 = scalar_lea.vmem %s0, 1
    %v90 = vld [vmem:[%s89] sm:$0x1]
    %91 = vrot.lane.b32.xlu0 %v90, 8
    %v92 = vpop.permute.xlu0 %91
    %vm93 = vcmask 130112
    %94 = vst.msk [vmem:[#allocation0] sm:$0x1] %vm93, %v92
    %s96 = ssub.s32 2, 1
    %v97 = vld [vmem:[#allocation0] sm:%s96]
    %s99 = ssub.s32 2, 1
    %100 = vst [vmem:[%s1] sm:%s99] %v97

// kernel: tile.30
$region0: #{tile.30}
  #allocation2 [shape = 's32[1]{0}', space=sflag, size = 0x4, scoped, tag = 'scoped memory for tile.30']
  %s0 = inlined_call_operand.hbm [shape: f32[16], index: 0, kind: input, shape index: {}]
  %s1 = inlined_call_operand.vmem [shape: f32[4,16], index: 1, kind: output, shape index: {}]
  $region1: #{tile.30} parent=0
    #allocation0 [shape = 'u8[512]{0}', space=vmem, size = 0x400, scoped, tag = 'operand span for operand 0']
    #allocation1 [shape = 's32[1]{0}', space=sflag, size = 0x4, scoped, tag = 'scoped memory for tile.30']
    %2 = vsyncpa [#allocation1], 0
    // Predicated region
    $region2: #{tile.30} parent=1 // pred_check
      _
    $region3: #{tile.30} parent=1 // pred_check_branch
      %4 = sbr.rel (0) target = $region5
    $region4: #{tile.30} parent=1 // pred_region
      %6 = vsyncadd [#allocation1], 0
      %s8 = sshll.u32 %s0, 4
      %s9 = int_to_ptr.hbm [resolvable:$true] %s8
      %s10 = sshll.u32 [#allocation0], 4
      %s11 = int_to_ptr.vmem [resolvable:$true] %s10
      %13 = dma.hbm_to_vmem [thread:$0]  %s9, 16, %s11, [#allocation1]
    $region5: #{tile.30} parent=1 // pred_fallthru
      _
    // Predicated region
    $region6: #{tile.30} parent=1 // pred_check
      _
    $region7: #{tile.30} parent=1 // pred_check_branch
      %15 = sbr.rel (0) target = $region9
    $region8: #{tile.30} parent=1 // pred_region
      %17 = dma.done [#allocation1], 16
    $region9: #{tile.30} parent=1 // pred_fallthru
      _
    %v18 = vld [vmem:[#allocation0] ss:$0 sm:$0xff]
    %19 = vst [vmem:[%s1] sm:$0xf] %v18
    %20 = vsyncpa [#allocation1], 1

// kernel: tile.22
$region0: #{tile.22}
  #allocation2 [shape = 's32[1]{0}', space=sflag, size = 0x4, scoped, tag = 'scoped memory for tile.22']
  %s0 = inlined_call_operand.hbm [shape: f32[8], index: 0, kind: input, shape index: {}]
  %s1 = inlined_call_operand.vmem [shape: f32[16,8], index: 1, kind: output, shape index: {}]
  $region1: #{tile.22} parent=0
    #allocation0 [shape = 'u8[512]{0}', space=vmem, size = 0x400, scoped, tag = 'operand span for operand 0']
    #allocation1 [shape = 's32[1]{0}', space=sflag, size = 0x4, scoped, tag = 'scoped memory for tile.22']
    %2 = vsyncpa [#allocation1], 0
    // Predicated region
    $region2: #{tile.22} parent=1 // pred_check
      _
    $region3: #{tile.22} parent=1 // pred_check_branch
      %4 = sbr.rel (0) target = $region5
    $region4: #{tile.22} parent=1 // pred_region
      %6 = vsyncadd [#allocation1], 0
      %s8 = sshll.u32 %s0, 4
      %s9 = int_to_ptr.hbm [resolvable:$true] %s8
      %s10 = sshll.u32 [#allocation0], 4
      %s11 = int_to_ptr.vmem [resolvable:$true] %s10
      %13 = dma.hbm_to_vmem [thread:$0]  %s9, 16, %s11, [#allocation1]
    $region5: #{tile.22} parent=1 // pred_fallthru
      _
    // Predicated region
    $region6: #{tile.22} parent=1 // pred_check
      _
    $region7: #{tile.22} parent=1 // pred_check_branch
      %15 = sbr.rel (0) target = $region9
    $region8: #{tile.22} parent=1 // pred_region
      %17 = dma.done [#allocation1], 16
    $region9: #{tile.22} parent=1 // pred_fallthru
      _
    %v18 = vld [vmem:[#allocation0] ss:$0 sm:$0xff]
    %19 = vst [vmem:[%s1] sm:$0xff] %v18
    %s20 = scalar_lea.vmem %s1, 8
    %21 = vst [vmem:[%s20] sm:$0xff] %v18
    %22 = vsyncpa [#allocation1], 1

// kernel: _lambda_.1
$region0: #{_lambda_.1}
  #allocation0 [shape = 'u32[]', space=smem, size = 0x4, offset = 0x4, fixed_abs, tag = 'smem constant byte address 0x4 - core index']
  #allocation1 [shape = 'u32[72,128]{1,0:T(1,128)}', space=vmem, size = 0x9000, scoped, tag = 'internal scratch']
  %s0 = inlined_call_operand.smem [shape: u32[44], index: -1, kind: input, shape index: {}]
  %s1 = sld [smem:[%s0]]
  %s2 = scalar_lea.smem %s0, 1
  %s3 = sld [smem:[%s2]]
  %s4 = scalar_lea.smem %s0, 2
  %s5 = sld [smem:[%s4]]
  %s6 = scalar_lea.smem %s0, 3
  %s7 = sld [smem:[%s6]]
  %s8 = scalar_lea.smem %s0, 4
  %s9 = sld [smem:[%s8]]
  %s10 = scalar_lea.smem %s0, 5
  %s11 = sld [smem:[%s10]]
  %s12 = scalar_lea.smem %s0, 6
  %s13 = sld [smem:[%s12]]
  %s14 = scalar_lea.smem %s0, 7
  %s15 = sld [smem:[%s14]]
  %s16 = scalar_lea.smem %s0, 8
  %s17 = sld [smem:[%s16]]
  %s18 = scalar_lea.smem %s0, 9
  %s19 = sld [smem:[%s18]]
  %s20 = scalar_lea.smem %s0, 10
  %s21 = sld [smem:[%s20]]
  %s22 = scalar_lea.smem %s0, 11
  %s23 = sld [smem:[%s22]]
  %s24 = scalar_lea.smem %s0, 12
  %s25 = sld [smem:[%s24]]
  %s26 = scalar_lea.smem %s0, 13
  %s27 = sld [smem:[%s26]]
  %s28 = scalar_lea.smem %s0, 14
  %s29 = sld [smem:[%s28]]
  %s30 = scalar_lea.smem %s0, 15
  %s31 = sld [smem:[%s30]]
  %s32 = scalar_lea.smem %s0, 16
  %s33 = sld [smem:[%s32]]
  %s34 = scalar_lea.smem %s0, 17
  %s35 = sld [smem:[%s34]]
  %s36 = scalar_lea.smem %s0, 18
  %s37 = sld [smem:[%s36]]
  %s38 = scalar_lea.smem %s0, 19
  %s39 = sld [smem:[%s38]]
  %s40 = scalar_lea.smem %s0, 20
  %s41 = sld [smem:[%s40]]
  %s42 = scalar_lea.smem %s0, 21
  %s43 = sld [smem:[%s42]]
  %s44 = scalar_lea.smem %s0, 22
  %s45 = sld [smem:[%s44]]
  %s46 = scalar_lea.smem %s0, 23
  %s47 = sld [smem:[%s46]]
  %s48 = scalar_lea.smem %s0, 24
  %s49 = sld [smem:[%s48]]
  %s50 = scalar_lea.smem %s0, 25
  %s51 = sld [smem:[%s50]]
  %s52 = scalar_lea.smem %s0, 26
  %s53 = sld [smem:[%s52]]
  %s54 = scalar_lea.smem %s0, 27
  %s55 = sld [smem:[%s54]]
  %s56 = scalar_lea.smem %s0, 28
  %s57 = sld [smem:[%s56]]
  %s58 = scalar_lea.smem %s0, 29
  %s59 = sld [smem:[%s58]]
  %s60 = scalar_lea.smem %s0, 30
  %s61 = sld [smem:[%s60]]
  %s62 = scalar_lea.smem %s0, 31
  %s63 = sld [smem:[%s62]]
  %s64 = scalar_lea.smem %s0, 32
  %s65 = sld [smem:[%s64]]
  %s66 = scalar_lea.smem %s0, 33
  %s67 = sld [smem:[%s66]]
  %s68 = scalar_lea.smem %s0, 34
  %s69 = sld [smem:[%s68]]
  %s70 = scalar_lea.smem %s0, 35
  %s71 = sld [smem:[%s70]]
  %s72 = scalar_lea.smem %s0, 36
  %s73 = sld [smem:[%s72]]
  %s74 = scalar_lea.smem %s0, 37
  %s75 = sld [smem:[%s74]]
  %s76 = scalar_lea.smem %s0, 38
  %s77 = sld [smem:[%s76]]
  %s78 = scalar_lea.smem %s0, 39
  %s79 = sld [smem:[%s78]]
  %s80 = scalar_lea.smem %s0, 40
  %s81 = sld [smem:[%s80]]
  %s82 = scalar_lea.smem %s0, 41
  %s83 = sld [smem:[%s82]]
  %s84 = scalar_lea.smem %s0, 42
  %s85 = sld [smem:[%s84]]
  %s86 = scalar_lea.smem %s0, 43
  %s87 = sld [smem:[%s86]]
  %s88 = sld [smem:[#allocation0]]
  $region258: #{_lambda_.1} parent=0
    _
  %s90 = ssub.s32 1, %s88
  %s91 = scalar_select 0, %s90, %s88
  $region1: #{_lambda_.1} parent=0
    #allocation2 [shape = 'u8[262144]{0}', space=vmem, size = 0x40000, scoped, tag = 'input window, operand 1, single buffered']
    #allocation3 [shape = 's32[1]{0}', space=sflag, size = 0x4, scoped, tag = 'scoped memory for _lambda_.1']
    #allocation4 [shape = 's32[1]{0}', space=sflag, size = 0x4, scoped, tag = 'scoped memory for _lambda_.1']
    #allocation5 [shape = 'u8[262144]{0}', space=vmem, size = 0x40000, scoped, tag = 'input window, operand 4, single buffered']
    #allocation6 [shape = 's32[1]{0}', space=sflag, size = 0x4, scoped, tag = 'scoped memory for _lambda_.1']
    #allocation7 [shape = 'u8[16384]{0}', space=vmem, size = 0x4000, scoped, tag = 'input window, operand 5, single buffered']
    #allocation8 [shape = 'u8[1179648]{0}', space=vmem, size = 0x120000, scoped, tag = 'input window, operand 6, single buffered']
    #allocation9 [shape = 's32[1]{0}', space=sflag, size = 0x4, scoped, tag = 'scoped memory for _lambda_.1']
    #allocation10 [shape = 'u8[65536]{0}', space=vmem, size = 0x10000, scoped, tag = 'input window, operand 7, single buffered']
    #allocation11 [shape = 'u8[4096]{0}', space=vmem, size = 0x1000, scoped, tag = 'input window, operand 8, single buffered']
    #allocation12 [shape = 's32[1]{0}', space=sflag, size = 0x4, scoped, tag = 'scoped memory for _lambda_.1']
    #allocation13 [shape = 'u8[32768]{0}', space=vmem, size = 0x8000, scoped, tag = 'input window, operand 9, single buffered']
    #allocation14 [shape = 'u8[32768]{0}', space=vmem, size = 0x8000, scoped, tag = 'input window, operand 13, single buffered']
    #allocation15 [shape = 's32[1]{0}', space=sflag, size = 0x4, scoped, tag = 'scoped memory for _lambda_.1']
    #allocation16 [shape = 'u8[32768]{0}', space=vmem, size = 0x8000, scoped, tag = 'input window, operand 17, single buffered']
    #allocation17 [shape = 'u8[8192]{0}', space=vmem, size = 0x2000, scoped, tag = 'input window, operand 18, single buffered']
    #allocation18 [shape = 's32[1]{0}', space=sflag, size = 0x4, scoped, tag = 'scoped memory for _lambda_.1']
    #allocation19 [shape = 'u8[32768]{0}', space=vmem, size = 0x8000, scoped, tag = 'input window, operand 19, single buffered']
    #allocation20 [shape = 'u8[32768]{0}', space=vmem, size = 0x8000, scoped, tag = 'input window, operand 23, single buffered']
    #allocation21 [shape = 's32[1]{0}', space=sflag, size = 0x4, scoped, tag = 'scoped memory for _lambda_.1']
    #allocation22 [shape = 'u8[16384]{0}', space=vmem, size = 0x4000, scoped, tag = 'input window, operand 27, single buffered']
    #allocation23 [shape = 'u8[16384]{0}', space=vmem, size = 0x4000, scoped, tag = 'input window, operand 31, single buffered']
    #allocation24 [shape = 's32[1]{0}', space=sflag, size = 0x4, scoped, tag = 'scoped memory for _lambda_.1']
    #allocation25 [shape = 'u8[512]{0}', space=vmem, size = 0x400, scoped, tag = 'input window, operand 32, single buffered']
    #allocation26 [shape = 'u8[16384]{0}', space=vmem, size = 0x4000, scoped, tag = 'input window, operand 35, single buffered']
    #allocation27 [shape = 's32[1]{0}', space=sflag, size = 0x4, scoped, tag = 'scoped memory for _lambda_.1']
    #allocation28 [shape = 'u8[512]{0}', space=vmem, size = 0x400, scoped, tag = 'input window, operand 36, single buffered']
    #allocation29 [shape = 'u8[8192]{0}', space=vmem, size = 0x2000, scoped, tag = 'input window, operand 39, single buffered']
    #allocation30 [shape = 's32[1]{0}', space=sflag, size = 0x4, scoped, tag = 'scoped memory for _lambda_.1']
    #allocation31 [shape = 'u8[512]{0}', space=vmem, size = 0x400, scoped, tag = 'input window, operand 40, single buffered']
    #allocation32 [shape = 'u8[1024]{0}', space=vmem, size = 0x400, scoped, tag = 'output window, operand 0, single buffered']
    %92 = vsyncpa [#allocation3], 0
    %93 = vsyncpa [#allocation6], 0
    %94 = vsyncpa [#allocation9], 0
    %95 = vsyncpa [#allocation12], 0
    %96 = vsyncpa [#allocation15], 0
    %97 = vsyncpa [#allocation18], 0
    %98 = vsyncpa [#allocation21], 0
    %99 = vsyncpa [#allocation24], 0
    %100 = vsyncpa [#allocation27], 0
    %101 = vsyncpa [#allocation30], 0
    %102 = vsyncpa [#allocation4], 0
    // Predicated region
    $region2: #{_lambda_.1} parent=1 // pred_check
      _
    $region3: #{_lambda_.1} parent=1 // pred_check_branch
      %104 = sbr.rel (0) target = $region5
    $region4: #{_lambda_.1} parent=1 // pred_region
      _
    $region5: #{_lambda_.1} parent=1 // pred_fallthru
      _
    // Predicated region
    $region6: #{_lambda_.1} parent=1 // pred_check
      _
    $region7: #{_lambda_.1} parent=1 // pred_check_branch
      %106 = sbr.rel (0) target = $region9
    $region8: #{_lambda_.1} parent=1 // pred_region
      %108 = vsyncadd [#allocation3], 0
      %s109 = sshll.u32 %s3, 4
      %s110 = int_to_ptr.hbm [resolvable:$true] %s109
      %s111 = sshll.u32 [#allocation2], 4
      %s112 = int_to_ptr.vmem [resolvable:$true] %s111
      %117 = dma.hbm_to_vmem [thread:$0]  %s110, 8192, %s112, [#allocation3], 256, 256, 16
    $region9: #{_lambda_.1} parent=1 // pred_fallthru
      _
    // Predicated region
    $region10: #{_lambda_.1} parent=1 // pred_check
      _
    $region11: #{_lambda_.1} parent=1 // pred_check_branch
      %119 = sbr.rel (0) target = $region13
    $region12: #{_lambda_.1} parent=1 // pred_region
      _
    $region13: #{_lambda_.1} parent=1 // pred_fallthru
      _
    // Predicated region
    $region14: #{_lambda_.1} parent=1 // pred_check
      _
    $region15: #{_lambda_.1} parent=1 // pred_check_branch
      %121 = sbr.rel (0) target = $region17
    $region16: #{_lambda_.1} parent=1 // pred_region
      _
    $region17: #{_lambda_.1} parent=1 // pred_fallthru
      _
    // Predicated region
    $region18: #{_lambda_.1} parent=1 // pred_check
      _
    $region19: #{_lambda_.1} parent=1 // pred_check_branch
      %123 = sbr.rel (0) target = $region21
    $region20: #{_lambda_.1} parent=1 // pred_region
      %125 = vsyncadd [#allocation6], 0
      %s126 = sshll.u32 %s9, 4
      %s127 = int_to_ptr.hbm [resolvable:$true] %s126
      %s128 = sshll.u32 [#allocation5], 4
      %s129 = int_to_ptr.vmem [resolvable:$true] %s128
      %134 = dma.hbm_to_vmem [thread:$0]  %s127, 8192, %s129, [#allocation6], 128, 128, 8
    $region21: #{_lambda_.1} parent=1 // pred_fallthru
      _
    // Predicated region
    $region22: #{_lambda_.1} parent=1 // pred_check
      _
    $region23: #{_lambda_.1} parent=1 // pred_check_branch
      %136 = sbr.rel (0) target = $region25
    $region24: #{_lambda_.1} parent=1 // pred_region
      %138 = vsyncadd [#allocation6], 0
      %s140 = sshll.u32 %s11, 4
      %s141 = int_to_ptr.hbm [resolvable:$true] %s140
      %s142 = sshll.u32 [#allocation7], 4
      %s143 = int_to_ptr.vmem [resolvable:$true] %s142
      %145 = dma.hbm_to_vmem [thread:$0]  %s141, 512, %s143, [#allocation6]
    $region25: #{_lambda_.1} parent=1 // pred_fallthru
      _
    // Predicated region
    $region26: #{_lambda_.1} parent=1 // pred_check
      _
    $region27: #{_lambda_.1} parent=1 // pred_check_branch
      %147 = sbr.rel (0) target = $region29
    $region28: #{_lambda_.1} parent=1 // pred_region
      %149 = vsyncadd [#allocation9], 0
      %s150 = sshll.u32 %s13, 4
      %s151 = int_to_ptr.hbm [resolvable:$true] %s150
      %s152 = sshll.u32 [#allocation8], 4
      %s153 = int_to_ptr.vmem [resolvable:$true] %s152
      %158 = dma.hbm_to_vmem [thread:$0]  %s151, 36864, %s153, [#allocation9], 576, 576, 36
    $region29: #{_lambda_.1} parent=1 // pred_fallthru
      _
    // Predicated region
    $region30: #{_lambda_.1} parent=1 // pred_check
      _
    $region31: #{_lambda_.1} parent=1 // pred_check_branch
      %160 = sbr.rel (0) target = $region33
    $region32: #{_lambda_.1} parent=1 // pred_region
      %162 = vsyncadd [#allocation9], 0
      %s163 = sshll.u32 %s15, 4
      %s164 = int_to_ptr.hbm [resolvable:$true] %s163
      %s165 = sshll.u32 [#allocation10], 4
      %s166 = int_to_ptr.vmem [resolvable:$true] %s165
      %171 = dma.hbm_to_vmem [thread:$0]  %s164, 2048, %s166, [#allocation9], 128, 128, 8
    $region33: #{_lambda_.1} parent=1 // pred_fallthru
      _
    // Predicated region
    $region34: #{_lambda_.1} parent=1 // pred_check
      _
    $region35: #{_lambda_.1} parent=1 // pred_check_branch
      %173 = sbr.rel (0) target = $region37
    $region36: #{_lambda_.1} parent=1 // pred_region
      %175 = vsyncadd [#allocation12], 0
      %s177 = sshll.u32 %s17, 4
      %s178 = int_to_ptr.hbm [resolvable:$true] %s177
      %s179 = sshll.u32 [#allocation11], 4
      %s180 = int_to_ptr.vmem [resolvable:$true] %s179
      %182 = dma.hbm_to_vmem [thread:$0]  %s178, 128, %s180, [#allocation12]
    $region37: #{_lambda_.1} parent=1 // pred_fallthru
      _
    // Predicated region
    $region38: #{_lambda_.1} parent=1 // pred_check
      _
    $region39: #{_lambda_.1} parent=1 // pred_check_branch
      %184 = sbr.rel (0) target = $region41
    $region40: #{_lambda_.1} parent=1 // pred_region
      %186 = vsyncadd [#allocation12], 0
      %s187 = sshll.u32 %s19, 4
      %s188 = int_to_ptr.hbm [resolvable:$true] %s187
      %s189 = sshll.u32 [#allocation13], 4
      %s190 = int_to_ptr.vmem [resolvable:$true] %s189
      %195 = dma.hbm_to_vmem [thread:$0]  %s188, 1024, %s190, [#allocation12], 64, 64, 4
    $region41: #{_lambda_.1} parent=1 // pred_fallthru
      _
    // Predicated region
    $region42: #{_lambda_.1} parent=1 // pred_check
      _
    $region43: #{_lambda_.1} parent=1 // pred_check_branch
      %197 = sbr.rel (0) target = $region45
    $region44: #{_lambda_.1} parent=1 // pred_region
      _
    $region45: #{_lambda_.1} parent=1 // pred_fallthru
      _
    // Predicated region
    $region46: #{_lambda_.1} parent=1 // pred_check
      _
    $region47: #{_lambda_.1} parent=1 // pred_check_branch
      %199 = sbr.rel (0) target = $region49
    $region48: #{_lambda_.1} parent=1 // pred_region
      _
    $region49: #{_lambda_.1} parent=1 // pred_fallthru
      _
    // Predicated region
    $region50: #{_lambda_.1} parent=1 // pred_check
      _
    $region51: #{_lambda_.1} parent=1 // pred_check_branch
      %201 = sbr.rel (0) target = $region53
    $region52: #{_lambda_.1} parent=1 // pred_region
      _
    $region53: #{_lambda_.1} parent=1 // pred_fallthru
      _
    // Predicated region
    $region54: #{_lambda_.1} parent=1 // pred_check
      _
    $region55: #{_lambda_.1} parent=1 // pred_check_branch
      %203 = sbr.rel (0) target = $region57
    $region56: #{_lambda_.1} parent=1 // pred_region
      %205 = vsyncadd [#allocation15], 0
      %s206 = sshll.u32 %s27, 4
      %s207 = int_to_ptr.hbm [resolvable:$true] %s206
      %s208 = sshll.u32 [#allocation14], 4
      %s209 = int_to_ptr.vmem [resolvable:$true] %s208
      %214 = dma.hbm_to_vmem [thread:$0]  %s207, 1024, %s209, [#allocation15], 64, 64, 4
    $region57: #{_lambda_.1} parent=1 // pred_fallthru
      _
    // Predicated region
    $region58: #{_lambda_.1} parent=1 // pred_check
      _
    $region59: #{_lambda_.1} parent=1 // pred_check_branch
      %216 = sbr.rel (0) target = $region61
    $region60: #{_lambda_.1} parent=1 // pred_region
      _
    $region61: #{_lambda_.1} parent=1 // pred_fallthru
      _
    // Predicated region
    $region62: #{_lambda_.1} parent=1 // pred_check
      _
    $region63: #{_lambda_.1} parent=1 // pred_check_branch
      %218 = sbr.rel (0) target = $region65
    $region64: #{_lambda_.1} parent=1 // pred_region
      _
    $region65: #{_lambda_.1} parent=1 // pred_fallthru
      _
    // Predicated region
    $region66: #{_lambda_.1} parent=1 // pred_check
      _
    $region67: #{_lambda_.1} parent=1 // pred_check_branch
      %220 = sbr.rel (0) target = $region69
    $region68: #{_lambda_.1} parent=1 // pred_region
      _
    $region69: #{_lambda_.1} parent=1 // pred_fallthru
      _
    // Predicated region
    $region70: #{_lambda_.1} parent=1 // pred_check
      _
    $region71: #{_lambda_.1} parent=1 // pred_check_branch
      %222 = sbr.rel (0) target = $region73
    $region72: #{_lambda_.1} parent=1 // pred_region
      %224 = vsyncadd [#allocation15], 0
      %s225 = sshll.u32 %s35, 4
      %s226 = int_to_ptr.hbm [resolvable:$true] %s225
      %s227 = sshll.u32 [#allocation16], 4
      %s228 = int_to_ptr.vmem [resolvable:$true] %s227
      %233 = dma.hbm_to_vmem [thread:$0]  %s226, 1024, %s228, [#allocation15], 128, 128, 8
    $region73: #{_lambda_.1} parent=1 // pred_fallthru
      _
    // Predicated region
    $region74: #{_lambda_.1} parent=1 // pred_check
      _
    $region75: #{_lambda_.1} parent=1 // pred_check_branch
      %235 = sbr.rel (0) target = $region77
    $region76: #{_lambda_.1} parent=1 // pred_region
      %237 = vsyncadd [#allocation18], 0
      %s238 = sshll.u32 %s37, 4
      %s239 = int_to_ptr.hbm [resolvable:$true] %s238
      %s240 = sshll.u32 [#allocation17], 4
      %s241 = int_to_ptr.vmem [resolvable:$true] %s240
      %246 = dma.hbm_to_vmem [thread:$0]  %s239, 256, %s241, [#allocation18], 128, 128, 8
    $region77: #{_lambda_.1} parent=1 // pred_fallthru
      _
    // Predicated region
    $region78: #{_lambda_.1} parent=1 // pred_check
      _
    $region79: #{_lambda_.1} parent=1 // pred_check_branch
      %248 = sbr.rel (0) target = $region81
    $region80: #{_lambda_.1} parent=1 // pred_region
      %250 = vsyncadd [#allocation18], 0
      %s251 = sshll.u32 %s39, 4
      %s252 = int_to_ptr.hbm [resolvable:$true] %s251
      %s253 = sshll.u32 [#allocation19], 4
      %s254 = int_to_ptr.vmem [resolvable:$true] %s253
      %259 = dma.hbm_to_vmem [thread:$0]  %s252, 1024, %s254, [#allocation18], 64, 64, 4
    $region81: #{_lambda_.1} parent=1 // pred_fallthru
      _
    // Predicated region
    $region82: #{_lambda_.1} parent=1 // pred_check
      _
    $region83: #{_lambda_.1} parent=1 // pred_check_branch
      %261 = sbr.rel (0) target = $region85
    $region84: #{_lambda_.1} parent=1 // pred_region
      _
    $region85: #{_lambda_.1} parent=1 // pred_fallthru
      _
    // Predicated region
    $region86: #{_lambda_.1} parent=1 // pred_check
      _
    $region87: #{_lambda_.1} parent=1 // pred_check_branch
      %263 = sbr.rel (0) target = $region89
    $region88: #{_lambda_.1} parent=1 // pred_region
      _
    $region89: #{_lambda_.1} parent=1 // pred_fallthru
      _
    // Predicated region
    $region90: #{_lambda_.1} parent=1 // pred_check
      _
    $region91: #{_lambda_.1} parent=1 // pred_check_branch
      %265 = sbr.rel (0) target = $region93
    $region92: #{_lambda_.1} parent=1 // pred_region
      _
    $region93: #{_lambda_.1} parent=1 // pred_fallthru
      _
    // Predicated region
    $region94: #{_lambda_.1} parent=1 // pred_check
      _
    $region95: #{_lambda_.1} parent=1 // pred_check_branch
      %267 = sbr.rel (0) target = $region97
    $region96: #{_lambda_.1} parent=1 // pred_region
      %269 = vsyncadd [#allocation21], 0
      %s270 = sshll.u32 %s47, 4
      %s271 = int_to_ptr.hbm [resolvable:$true] %s270
      %s272 = sshll.u32 [#allocation20], 4
      %s273 = int_to_ptr.vmem [resolvable:$true] %s272
      %278 = dma.hbm_to_vmem [thread:$0]  %s271, 1024, %s273, [#allocation21], 64, 64, 4
    $region97: #{_lambda_.1} parent=1 // pred_fallthru
      _
    // Predicated region
    $region98: #{_lambda_.1} parent=1 // pred_check
      _
    $region99: #{_lambda_.1} parent=1 // pred_check_branch
      %280 = sbr.rel (0) target = $region101
    $region100: #{_lambda_.1} parent=1 // pred_region
      _
    $region101: #{_lambda_.1} parent=1 // pred_fallthru
      _
    // Predicated region
    $region102: #{_lambda_.1} parent=1 // pred_check
      _
    $region103: #{_lambda_.1} parent=1 // pred_check_branch
      %282 = sbr.rel (0) target = $region105
    $region104: #{_lambda_.1} parent=1 // pred_region
      _
    $region105: #{_lambda_.1} parent=1 // pred_fallthru
      _
    // Predicated region
    $region106: #{_lambda_.1} parent=1 // pred_check
      _
    $region107: #{_lambda_.1} parent=1 // pred_check_branch
      %284 = sbr.rel (0) target = $region109
    $region108: #{_lambda_.1} parent=1 // pred_region
      _
    $region109: #{_lambda_.1} parent=1 // pred_fallthru
      _
    // Predicated region
    $region110: #{_lambda_.1} parent=1 // pred_check
      _
    $region111: #{_lambda_.1} parent=1 // pred_check_branch
      %286 = sbr.rel (0) target = $region113
    $region112: #{_lambda_.1} parent=1 // pred_region
      %288 = vsyncadd [#allocation21], 0
      %s289 = sshll.u32 %s55, 4
      %s290 = int_to_ptr.hbm [resolvable:$true] %s289
      %s291 = sshll.u32 [#allocation22], 4
      %s292 = int_to_ptr.vmem [resolvable:$true] %s291
      %297 = dma.hbm_to_vmem [thread:$0]  %s290, 512, %s292, [#allocation21], 64, 64, 4
    $region113: #{_lambda_.1} parent=1 // pred_fallthru
      _
    // Predicated region
    $region114: #{_lambda_.1} parent=1 // pred_check
      _
    $region115: #{_lambda_.1} parent=1 // pred_check_branch
      %299 = sbr.rel (0) target = $region117
    $region116: #{_lambda_.1} parent=1 // pred_region
      _
    $region117: #{_lambda_.1} parent=1 // pred_fallthru
      _
    // Predicated region
    $region118: #{_lambda_.1} parent=1 // pred_check
      _
    $region119: #{_lambda_.1} parent=1 // pred_check_branch
      %301 = sbr.rel (0) target = $region121
    $region120: #{_lambda_.1} parent=1 // pred_region
      _
    $region121: #{_lambda_.1} parent=1 // pred_fallthru
      _
    // Predicated region
    $region122: #{_lambda_.1} parent=1 // pred_check
      _
    $region123: #{_lambda_.1} parent=1 // pred_check_branch
      %303 = sbr.rel (0) target = $region125
    $region124: #{_lambda_.1} parent=1 // pred_region
      _
    $region125: #{_lambda_.1} parent=1 // pred_fallthru
      _
    // Predicated region
    $region126: #{_lambda_.1} parent=1 // pred_check
      _
    $region127: #{_lambda_.1} parent=1 // pred_check_branch
      %305 = sbr.rel (0) target = $region129
    $region128: #{_lambda_.1} parent=1 // pred_region
      %307 = vsyncadd [#allocation24], 0
      %s308 = sshll.u32 %s63, 4
      %s309 = int_to_ptr.hbm [resolvable:$true] %s308
      %s310 = sshll.u32 [#allocation23], 4
      %s311 = int_to_ptr.vmem [resolvable:$true] %s310
      %316 = dma.hbm_to_vmem [thread:$0]  %s309, 512, %s311, [#allocation24], 64, 64, 4
    $region129: #{_lambda_.1} parent=1 // pred_fallthru
      _
    // Predicated region
    $region130: #{_lambda_.1} parent=1 // pred_check
      _
    $region131: #{_lambda_.1} parent=1 // pred_check_branch
      %318 = sbr.rel (0) target = $region133
    $region132: #{_lambda_.1} parent=1 // pred_region
      %320 = vsyncadd [#allocation24], 0
      %s322 = sshll.u32 %s65, 4
      %s323 = int_to_ptr.hbm [resolvable:$true] %s322
      %s324 = sshll.u32 [#allocation25], 4
      %s325 = int_to_ptr.vmem [resolvable:$true] %s324
      %327 = dma.hbm_to_vmem [thread:$0]  %s323, 16, %s325, [#allocation24]
    $region133: #{_lambda_.1} parent=1 // pred_fallthru
      _
    // Predicated region
    $region134: #{_lambda_.1} parent=1 // pred_check
      _
    $region135: #{_lambda_.1} parent=1 // pred_check_branch
      %329 = sbr.rel (0) target = $region137
    $region136: #{_lambda_.1} parent=1 // pred_region
      _
    $region137: #{_lambda_.1} parent=1 // pred_fallthru
      _
    // Predicated region
    $region138: #{_lambda_.1} parent=1 // pred_check
      _
    $region139: #{_lambda_.1} parent=1 // pred_check_branch
      %331 = sbr.rel (0) target = $region141
    $region140: #{_lambda_.1} parent=1 // pred_region
      _
    $region141: #{_lambda_.1} parent=1 // pred_fallthru
      _
    // Predicated region
    $region142: #{_lambda_.1} parent=1 // pred_check
      _
    $region143: #{_lambda_.1} parent=1 // pred_check_branch
      %333 = sbr.rel (0) target = $region145
    $region144: #{_lambda_.1} parent=1 // pred_region
      %335 = vsyncadd [#allocation27], 0
      %s336 = sshll.u32 %s71, 4
      %s337 = int_to_ptr.hbm [resolvable:$true] %s336
      %s338 = sshll.u32 [#allocation26], 4
      %s339 = int_to_ptr.vmem [resolvable:$true] %s338
      %344 = dma.hbm_to_vmem [thread:$0]  %s337, 512, %s339, [#allocation27], 64, 64, 4
    $region145: #{_lambda_.1} parent=1 // pred_fallthru
      _
    // Predicated region
    $region146: #{_lambda_.1} parent=1 // pred_check
      _
    $region147: #{_lambda_.1} parent=1 // pred_check_branch
      %346 = sbr.rel (0) target = $region149
    $region148: #{_lambda_.1} parent=1 // pred_region
      %348 = vsyncadd [#allocation27], 0
      %s350 = sshll.u32 %s73, 4
      %s351 = int_to_ptr.hbm [resolvable:$true] %s350
      %s352 = sshll.u32 [#allocation28], 4
      %s353 = int_to_ptr.vmem [resolvable:$true] %s352
      %355 = dma.hbm_to_vmem [thread:$0]  %s351, 16, %s353, [#allocation27]
    $region149: #{_lambda_.1} parent=1 // pred_fallthru
      _
    // Predicated region
    $region150: #{_lambda_.1} parent=1 // pred_check
      _
    $region151: #{_lambda_.1} parent=1 // pred_check_branch
      %357 = sbr.rel (0) target = $region153
    $region152: #{_lambda_.1} parent=1 // pred_region
      _
    $region153: #{_lambda_.1} parent=1 // pred_fallthru
      _
    // Predicated region
    $region154: #{_lambda_.1} parent=1 // pred_check
      _
    $region155: #{_lambda_.1} parent=1 // pred_check_branch
      %359 = sbr.rel (0) target = $region157
    $region156: #{_lambda_.1} parent=1 // pred_region
      _
    $region157: #{_lambda_.1} parent=1 // pred_fallthru
      _
    // Predicated region
    $region158: #{_lambda_.1} parent=1 // pred_check
      _
    $region159: #{_lambda_.1} parent=1 // pred_check_branch
      %361 = sbr.rel (0) target = $region161
    $region160: #{_lambda_.1} parent=1 // pred_region
      %363 = vsyncadd [#allocation30], 0
      %s364 = sshll.u32 %s79, 4
      %s365 = int_to_ptr.hbm [resolvable:$true] %s364
      %s366 = sshll.u32 [#allocation29], 4
      %s367 = int_to_ptr.vmem [resolvable:$true] %s366
      %372 = dma.hbm_to_vmem [thread:$0]  %s365, 256, %s367, [#allocation30], 64, 64, 4
    $region161: #{_lambda_.1} parent=1 // pred_fallthru
      _
    // Predicated region
    $region162: #{_lambda_.1} parent=1 // pred_check
      _
    $region163: #{_lambda_.1} parent=1 // pred_check_branch
      %374 = sbr.rel (0) target = $region165
    $region164: #{_lambda_.1} parent=1 // pred_region
      %376 = vsyncadd [#allocation30], 0
      %s378 = sshll.u32 %s81, 4
      %s379 = int_to_ptr.hbm [resolvable:$true] %s378
      %s380 = sshll.u32 [#allocation31], 4
      %s381 = int_to_ptr.vmem [resolvable:$true] %s380
      %383 = dma.hbm_to_vmem [thread:$0]  %s379, 16, %s381, [#allocation30]
    $region165: #{_lambda_.1} parent=1 // pred_fallthru
      _
    // Predicated region
    $region166: #{_lambda_.1} parent=1 // pred_check
      _
    $region167: #{_lambda_.1} parent=1 // pred_check_branch
      %385 = sbr.rel (0) target = $region169
    $region168: #{_lambda_.1} parent=1 // pred_region
      _
    $region169: #{_lambda_.1} parent=1 // pred_fallthru
      _
    // Predicated region
    $region170: #{_lambda_.1} parent=1 // pred_check
      _
    $region171: #{_lambda_.1} parent=1 // pred_check_branch
      %387 = sbr.rel (0) target = $region173
    $region172: #{_lambda_.1} parent=1 // pred_region
      _
    $region173: #{_lambda_.1} parent=1 // pred_fallthru
      _
    // Predicated region
    $region174: #{_lambda_.1} parent=1 // pred_check
      _
    $region175: #{_lambda_.1} parent=1 // pred_check_branch
      %389 = sbr.rel (0) target = $region177
    $region176: #{_lambda_.1} parent=1 // pred_region
      %391 = dma.done [#allocation3], 8192
    $region177: #{_lambda_.1} parent=1 // pred_fallthru
      _
    // Predicated region
    $region178: #{_lambda_.1} parent=1 // pred_check
      _
    $region179: #{_lambda_.1} parent=1 // pred_check_branch
      %393 = sbr.rel (0) target = $region181
    $region180: #{_lambda_.1} parent=1 // pred_region
      %395 = dma.done [#allocation6], 8192
    $region181: #{_lambda_.1} parent=1 // pred_fallthru
      _
    // Predicated region
    $region182: #{_lambda_.1} parent=1 // pred_check
      _
    $region183: #{_lambda_.1} parent=1 // pred_check_branch
      %397 = sbr.rel (0) target = $region185
    $region184: #{_lambda_.1} parent=1 // pred_region
      %399 = dma.done [#allocation6], 512
    $region185: #{_lambda_.1} parent=1 // pred_fallthru
      _
    // Predicated region
    $region186: #{_lambda_.1} parent=1 // pred_check
      _
    $region187: #{_lambda_.1} parent=1 // pred_check_branch
      %401 = sbr.rel (0) target = $region189
    $region188: #{_lambda_.1} parent=1 // pred_region
      %403 = dma.done [#allocation9], 36864
    $region189: #{_lambda_.1} parent=1 // pred_fallthru
      _
    // Predicated region
    $region190: #{_lambda_.1} parent=1 // pred_check
      _
    $region191: #{_lambda_.1} parent=1 // pred_check_branch
      %405 = sbr.rel (0) target = $region193
    $region192: #{_lambda_.1} parent=1 // pred_region
      %407 = dma.done [#allocation9], 2048
    $region193: #{_lambda_.1} parent=1 // pred_fallthru
      _
    // Predicated region
    $region194: #{_lambda_.1} parent=1 // pred_check
      _
    $region195: #{_lambda_.1} parent=1 // pred_check_branch
      %409 = sbr.rel (0) target = $region197
    $region196: #{_lambda_.1} parent=1 // pred_region
      %411 = dma.done [#allocation12], 128
    $region197: #{_lambda_.1} parent=1 // pred_fallthru
      _
    // Predicated region
    $region198: #{_lambda_.1} parent=1 // pred_check
      _
    $region199: #{_lambda_.1} parent=1 // pred_check_branch
      %413 = sbr.rel (0) target = $region201
    $region200: #{_lambda_.1} parent=1 // pred_region
      %415 = dma.done [#allocation12], 1024
    $region201: #{_lambda_.1} parent=1 // pred_fallthru
      _
    // Predicated region
    $region202: #{_lambda_.1} parent=1 // pred_check
      _
    $region203: #{_lambda_.1} parent=1 // pred_check_branch
      %417 = sbr.rel (0) target = $region205
    $region204: #{_lambda_.1} parent=1 // pred_region
      %419 = dma.done [#allocation15], 1024
    $region205: #{_lambda_.1} parent=1 // pred_fallthru
      _
    // Predicated region
    $region206: #{_lambda_.1} parent=1 // pred_check
      _
    $region207: #{_lambda_.1} parent=1 // pred_check_branch
      %421 = sbr.rel (0) target = $region209
    $region208: #{_lambda_.1} parent=1 // pred_region
      %423 = dma.done [#allocation15], 1024
    $region209: #{_lambda_.1} parent=1 // pred_fallthru
      _
    // Predicated region
    $region210: #{_lambda_.1} parent=1 // pred_check
      _
    $region211: #{_lambda_.1} parent=1 // pred_check_branch
      %425 = sbr.rel (0) target = $region213
    $region212: #{_lambda_.1} parent=1 // pred_region
      %427 = dma.done [#allocation18], 256
    $region213: #{_lambda_.1} parent=1 // pred_fallthru
      _
    // Predicated region
    $region214: #{_lambda_.1} parent=1 // pred_check
      _
    $region215: #{_lambda_.1} parent=1 // pred_check_branch
      %429 = sbr.rel (0) target = $region217
    $region216: #{_lambda_.1} parent=1 // pred_region
      %431 = dma.done [#allocation18], 1024
    $region217: #{_lambda_.1} parent=1 // pred_fallthru
      _
    // Predicated region
    $region218: #{_lambda_.1} parent=1 // pred_check
      _
    $region219: #{_lambda_.1} parent=1 // pred_check_branch
      %433 = sbr.rel (0) target = $region221
    $region220: #{_lambda_.1} parent=1 // pred_region
      %435 = dma.done [#allocation21], 1024
    $region221: #{_lambda_.1} parent=1 // pred_fallthru
      _
    // Predicated region
    $region222: #{_lambda_.1} parent=1 // pred_check
      _
    $region223: #{_lambda_.1} parent=1 // pred_check_branch
      %437 = sbr.rel (0) target = $region225
    $region224: #{_lambda_.1} parent=1 // pred_region
      %439 = dma.done [#allocation21], 512
    $region225: #{_lambda_.1} parent=1 // pred_fallthru
      _
    // Predicated region
    $region226: #{_lambda_.1} parent=1 // pred_check
      _
    $region227: #{_lambda_.1} parent=1 // pred_check_branch
      %441 = sbr.rel (0) target = $region229
    $region228: #{_lambda_.1} parent=1 // pred_region
      %443 = dma.done [#allocation24], 512
    $region229: #{_lambda_.1} parent=1 // pred_fallthru
      _
    // Predicated region
    $region230: #{_lambda_.1} parent=1 // pred_check
      _
    $region231: #{_lambda_.1} parent=1 // pred_check_branch
      %445 = sbr.rel (0) target = $region233
    $region232: #{_lambda_.1} parent=1 // pred_region
      %447 = dma.done [#allocation24], 16
    $region233: #{_lambda_.1} parent=1 // pred_fallthru
      _
    // Predicated region
    $region234: #{_lambda_.1} parent=1 // pred_check
      _
    $region235: #{_lambda_.1} parent=1 // pred_check_branch
      %449 = sbr.rel (0) target = $region237
    $region236: #{_lambda_.1} parent=1 // pred_region
      %451 = dma.done [#allocation27], 512
    $region237: #{_lambda_.1} parent=1 // pred_fallthru
      _
    // Predicated region
    $region238: #{_lambda_.1} parent=1 // pred_check
      _
    $region239: #{_lambda_.1} parent=1 // pred_check_branch
      %453 = sbr.rel (0) target = $region241
    $region240: #{_lambda_.1} parent=1 // pred_region
      %455 = dma.done [#allocation27], 16
    $region241: #{_lambda_.1} parent=1 // pred_fallthru
      _
    // Predicated region
    $region242: #{_lambda_.1} parent=1 // pred_check
      _
    $region243: #{_lambda_.1} parent=1 // pred_check_branch
      %457 = sbr.rel (0) target = $region245
    $region244: #{_lambda_.1} parent=1 // pred_region
      %459 = dma.done [#allocation30], 256
    $region245: #{_lambda_.1} parent=1 // pred_fallthru
      _
    // Predicated region
    $region246: #{_lambda_.1} parent=1 // pred_check
      _
    $region247: #{_lambda_.1} parent=1 // pred_check_branch
      %461 = sbr.rel (0) target = $region249
    $region248: #{_lambda_.1} parent=1 // pred_region
      %463 = dma.done [#allocation30], 16
    $region249: #{_lambda_.1} parent=1 // pred_fallthru
      _
    %v465 = vld [vmem:[%s1] sm:$0xf]
    %467 = vst [vmem:[#allocation1] ss:$4 sm:$0xff] %v465
    %v468 = vld.sshfl [vmem:[#allocation1] sm:$0xff pattern:$0x73625140]
    %v469 = vld.sshfl [vmem:[#allocation1 + $0x8] sm:$0xff pattern:$0x73625140]
    %v472 = vpack.c.bf16 %v468, %v468
    %v473 = vpack.c.bf16 %v469, %v469
    %v474 = vld [vmem:[#allocation2] sm:$0xff]
    %v475 = vld [vmem:[#allocation2 + $0x8] sm:$0xff]
    %v476 = vld [vmem:[#allocation2 + $0x10] sm:$0xff]
    %v477 = vld [vmem:[#allocation2 + $0x18] sm:$0xff]
    %v478 = vld [vmem:[#allocation2 + $0x20] sm:$0xff]
    %v479 = vld [vmem:[#allocation2 + $0x28] sm:$0xff]
    %v480 = vld [vmem:[#allocation2 + $0x30] sm:$0xff]
    %v481 = vld [vmem:[#allocation2 + $0x38] sm:$0xff]
    %v482 = vld [vmem:[#allocation2 + $0x40] sm:$0xff]
    %v483 = vld [vmem:[#allocation2 + $0x48] sm:$0xff]
    %v484 = vld [vmem:[#allocation2 + $0x50] sm:$0xff]
    %v485 = vld [vmem:[#allocation2 + $0x58] sm:$0xff]
    %v486 = vld [vmem:[#allocation2 + $0x60] sm:$0xff]
    %v487 = vld [vmem:[#allocation2 + $0x68] sm:$0xff]
    %v488 = vld [vmem:[#allocation2 + $0x70] sm:$0xff]
    %v489 = vld [vmem:[#allocation2 + $0x78] sm:$0xff]
    %v490 = vld [vmem:[#allocation2 + $0x80] sm:$0xff]
    %v491 = vld [vmem:[#allocation2 + $0x88] sm:$0xff]
    %v492 = vld [vmem:[#allocation2 + $0x90] sm:$0xff]
    %v493 = vld [vmem:[#allocation2 + $0x98] sm:$0xff]
    %v494 = vld [vmem:[#allocation2 + $0xa0] sm:$0xff]
    %v495 = vld [vmem:[#allocation2 + $0xa8] sm:$0xff]
    %v496 = vld [vmem:[#allocation2 + $0xb0] sm:$0xff]
    %v497 = vld [vmem:[#allocation2 + $0xb8] sm:$0xff]
    %v498 = vld [vmem:[#allocation2 + $0xc0] sm:$0xff]
    %v499 = vld [vmem:[#allocation2 + $0xc8] sm:$0xff]
    %v500 = vld [vmem:[#allocation2 + $0xd0] sm:$0xff]
    %v501 = vld [vmem:[#allocation2 + $0xd8] sm:$0xff]
    %v502 = vld [vmem:[#allocation2 + $0xe0] sm:$0xff]
    %v503 = vld [vmem:[#allocation2 + $0xe8] sm:$0xff]
    %v504 = vld [vmem:[#allocation2 + $0xf0] sm:$0xff]
    %v505 = vld [vmem:[#allocation2 + $0xf8] sm:$0xff]
    %v506 = vld [vmem:[#allocation2 + $0x100] sm:$0xff]
    %v507 = vld [vmem:[#allocation2 + $0x108] sm:$0xff]
    %v508 = vld [vmem:[#allocation2 + $0x110] sm:$0xff]
    %v509 = vld [vmem:[#allocation2 + $0x118] sm:$0xff]
    %v510 = vld [vmem:[#allocation2 + $0x120] sm:$0xff]
    %v511 = vld [vmem:[#allocation2 + $0x128] sm:$0xff]
    %v512 = vld [vmem:[#allocation2 + $0x130] sm:$0xff]
    %v513 = vld [vmem:[#allocation2 + $0x138] sm:$0xff]
    %v514 = vld [vmem:[#allocation2 + $0x140] sm:$0xff]
    %v515 = vld [vmem:[#allocation2 + $0x148] sm:$0xff]
    %v516 = vld [vmem:[#allocation2 + $0x150] sm:$0xff]
    %v517 = vld [vmem:[#allocation2 + $0x158] sm:$0xff]
    %v518 = vld [vmem:[#allocation2 + $0x160] sm:$0xff]
    %v519 = vld [vmem:[#allocation2 + $0x168] sm:$0xff]
    %v520 = vld [vmem:[#allocation2 + $0x170] sm:$0xff]
    %v521 = vld [vmem:[#allocation2 + $0x178] sm:$0xff]
    %v522 = vld [vmem:[#allocation2 + $0x180] sm:$0xff]
    %v523 = vld [vmem:[#allocation2 + $0x188] sm:$0xff]
    %v524 = vld [vmem:[#allocation2 + $0x190] sm:$0xff]
    %v525 = vld [vmem:[#allocation2 + $0x198] sm:$0xff]
    %v526 = vld [vmem:[#allocation2 + $0x1a0] sm:$0xff]
    %v527 = vld [vmem:[#allocation2 + $0x1a8] sm:$0xff]
    %v528 = vld [vmem:[#allocation2 + $0x1b0] sm:$0xff]
    %v529 = vld [vmem:[#allocation2 + $0x1b8] sm:$0xff]
    %v530 = vld [vmem:[#allocation2 + $0x1c0] sm:$0xff]
    %v531 = vld [vmem:[#allocation2 + $0x1c8] sm:$0xff]
    %v532 = vld [vmem:[#allocation2 + $0x1d0] sm:$0xff]
    %v533 = vld [vmem:[#allocation2 + $0x1d8] sm:$0xff]
    %v534 = vld [vmem:[#allocation2 + $0x1e0] sm:$0xff]
    %v535 = vld [vmem:[#allocation2 + $0x1e8] sm:$0xff]
    %v536 = vld [vmem:[#allocation2 + $0x1f0] sm:$0xff]
    %v537 = vld [vmem:[#allocation2 + $0x1f8] sm:$0xff]
    %v602 = vunpack.c.l.b16 %v474
    %v603 = vunpack.c.h.b16 %v474
    %v604 = vunpack.c.l.b16 %v475
    %v605 = vunpack.c.h.b16 %v475
    %v606 = vunpack.c.l.b16 %v476
    %v607 = vunpack.c.h.b16 %v476
    %v608 = vunpack.c.l.b16 %v477
    %v609 = vunpack.c.h.b16 %v477
    %v610 = vunpack.c.l.b16 %v478
    %v611 = vunpack.c.h.b16 %v478
    %v612 = vunpack.c.l.b16 %v479
    %v613 = vunpack.c.h.b16 %v479
    %v614 = vunpack.c.l.b16 %v480
    %v615 = vunpack.c.h.b16 %v480
    %v616 = vunpack.c.l.b16 %v481
    %v617 = vunpack.c.h.b16 %v481
    %v618 = vunpack.c.l.b16 %v482
    %v619 = vunpack.c.h.b16 %v482
    %v620 = vunpack.c.l.b16 %v483
    %v621 = vunpack.c.h.b16 %v483
    %v622 = vunpack.c.l.b16 %v484
    %v623 = vunpack.c.h.b16 %v484
    %v624 = vunpack.c.l.b16 %v485
    %v625 = vunpack.c.h.b16 %v485
    %v626 = vunpack.c.l.b16 %v486
    %v627 = vunpack.c.h.b16 %v486
    %v628 = vunpack.c.l.b16 %v487
    %v629 = vunpack.c.h.b16 %v487
    %v630 = vunpack.c.l.b16 %v488
    %v631 = vunpack.c.h.b16 %v488
    %v632 = vunpack.c.l.b16 %v489
    %v633 = vunpack.c.h.b16 %v489
    %v634 = vunpack.c.l.b16 %v490
    %v635 = vunpack.c.h.b16 %v490
    %v636 = vunpack.c.l.b16 %v491
    %v637 = vunpack.c.h.b16 %v491
    %v638 = vunpack.c.l.b16 %v492
    %v639 = vunpack.c.h.b16 %v492
    %v640 = vunpack.c.l.b16 %v493
    %v641 = vunpack.c.h.b16 %v493
    %v642 = vunpack.c.l.b16 %v494
    %v643 = vunpack.c.h.b16 %v494
    %v644 = vunpack.c.l.b16 %v495
    %v645 = vunpack.c.h.b16 %v495
    %v646 = vunpack.c.l.b16 %v496
    %v647 = vunpack.c.h.b16 %v496
    %v648 = vunpack.c.l.b16 %v497
    %v649 = vunpack.c.h.b16 %v497
    %v650 = vunpack.c.l.b16 %v498
    %v651 = vunpack.c.h.b16 %v498
    %v652 = vunpack.c.l.b16 %v499
    %v653 = vunpack.c.h.b16 %v499
    %v654 = vunpack.c.l.b16 %v500
    %v655 = vunpack.c.h.b16 %v500
    %v656 = vunpack.c.l.b16 %v501
    %v657 = vunpack.c.h.b16 %v501
    %v658 = vunpack.c.l.b16 %v502
    %v659 = vunpack.c.h.b16 %v502
    %v660 = vunpack.c.l.b16 %v503
    %v661 = vunpack.c.h.b16 %v503
    %v662 = vunpack.c.l.b16 %v504
    %v663 = vunpack.c.h.b16 %v504
    %v664 = vunpack.c.l.b16 %v505
    %v665 = vunpack.c.h.b16 %v505
    %v666 = vunpack.c.l.b16 %v506
    %v667 = vunpack.c.h.b16 %v506
    %v668 = vunpack.c.l.b16 %v507
    %v669 = vunpack.c.h.b16 %v507
    %v670 = vunpack.c.l.b16 %v508
    %v671 = vunpack.c.h.b16 %v508
    %v672 = vunpack.c.l.b16 %v509
    %v673 = vunpack.c.h.b16 %v509
    %v674 = vunpack.c.l.b16 %v510
    %v675 = vunpack.c.h.b16 %v510
    %v676 = vunpack.c.l.b16 %v511
    %v677 = vunpack.c.h.b16 %v511
    %v678 = vunpack.c.l.b16 %v512
    %v679 = vunpack.c.h.b16 %v512
    %v680 = vunpack.c.l.b16 %v513
    %v681 = vunpack.c.h.b16 %v513
    %v682 = vunpack.c.l.b16 %v514
    %v683 = vunpack.c.h.b16 %v514
    %v684 = vunpack.c.l.b16 %v515
    %v685 = vunpack.c.h.b16 %v515
    %v686 = vunpack.c.l.b16 %v516
    %v687 = vunpack.c.h.b16 %v516
    %v688 = vunpack.c.l.b16 %v517
    %v689 = vunpack.c.h.b16 %v517
    %v690 = vunpack.c.l.b16 %v518
    %v691 = vunpack.c.h.b16 %v518
    %v692 = vunpack.c.l.b16 %v519
    %v693 = vunpack.c.h.b16 %v519
    %v694 = vunpack.c.l.b16 %v520
    %v695 = vunpack.c.h.b16 %v520
    %v696 = vunpack.c.l.b16 %v521
    %v697 = vunpack.c.h.b16 %v521
    %v698 = vunpack.c.l.b16 %v522
    %v699 = vunpack.c.h.b16 %v522
    %v700 = vunpack.c.l.b16 %v523
    %v701 = vunpack.c.h.b16 %v523
    %v702 = vunpack.c.l.b16 %v524
    %v703 = vunpack.c.h.b16 %v524
    %v704 = vunpack.c.l.b16 %v525
    %v705 = vunpack.c.h.b16 %v525
    %v706 = vunpack.c.l.b16 %v526
    %v707 = vunpack.c.h.b16 %v526
    %v708 = vunpack.c.l.b16 %v527
    %v709 = vunpack.c.h.b16 %v527
    %v710 = vunpack.c.l.b16 %v528
    %v711 = vunpack.c.h.b16 %v528
    %v712 = vunpack.c.l.b16 %v529
    %v713 = vunpack.c.h.b16 %v529
    %v714 = vunpack.c.l.b16 %v530
    %v715 = vunpack.c.h.b16 %v530
    %v716 = vunpack.c.l.b16 %v531
    %v717 = vunpack.c.h.b16 %v531
    %v718 = vunpack.c.l.b16 %v532
    %v719 = vunpack.c.h.b16 %v532
    %v720 = vunpack.c.l.b16 %v533
    %v721 = vunpack.c.h.b16 %v533
    %v722 = vunpack.c.l.b16 %v534
    %v723 = vunpack.c.h.b16 %v534
    %v724 = vunpack.c.l.b16 %v535
    %v725 = vunpack.c.h.b16 %v535
    %v726 = vunpack.c.l.b16 %v536
    %v727 = vunpack.c.h.b16 %v536
    %v728 = vunpack.c.l.b16 %v537
    %v729 = vunpack.c.h.b16 %v537
    %v730 = vpack.c.b16 %v606, %v602
    %v731 = vpack.c.b16 %v607, %v603
    %v732 = vpack.c.b16 %v608, %v604
    %v733 = vpack.c.b16 %v609, %v605
    %v734 = vpack.c.b16 %v614, %v610
    %v735 = vpack.c.b16 %v615, %v611
    %v736 = vpack.c.b16 %v616, %v612
    %v737 = vpack.c.b16 %v617, %v613
    %v738 = vpack.c.b16 %v622, %v618
    %v739 = vpack.c.b16 %v623, %v619
    %v740 = vpack.c.b16 %v624, %v620
    %v741 = vpack.c.b16 %v625, %v621
    %v742 = vpack.c.b16 %v630, %v626
    %v743 = vpack.c.b16 %v631, %v627
    %v744 = vpack.c.b16 %v632, %v628
    %v745 = vpack.c.b16 %v633, %v629
    %v746 = vpack.c.b16 %v638, %v634
    %v747 = vpack.c.b16 %v639, %v635
    %v748 = vpack.c.b16 %v640, %v636
    %v749 = vpack.c.b16 %v641, %v637
    %v750 = vpack.c.b16 %v646, %v642
    %v751 = vpack.c.b16 %v647, %v643
    %v752 = vpack.c.b16 %v648, %v644
    %v753 = vpack.c.b16 %v649, %v645
    %v754 = vpack.c.b16 %v654, %v650
    %v755 = vpack.c.b16 %v655, %v651
    %v756 = vpack.c.b16 %v656, %v652
    %v757 = vpack.c.b16 %v657, %v653
    %v758 = vpack.c.b16 %v662, %v658
    %v759 = vpack.c.b16 %v663, %v659
    %v760 = vpack.c.b16 %v664, %v660
    %v761 = vpack.c.b16 %v665, %v661
    %v762 = vpack.c.b16 %v670, %v666
    %v763 = vpack.c.b16 %v671, %v667
    %v764 = vpack.c.b16 %v672, %v668
    %v765 = vpack.c.b16 %v673, %v669
    %v766 = vpack.c.b16 %v678, %v674
    %v767 = vpack.c.b16 %v679, %v675
    %v768 = vpack.c.b16 %v680, %v676
    %v769 = vpack.c.b16 %v681, %v677
    %v770 = vpack.c.b16 %v686, %v682
    %v771 = vpack.c.b16 %v687, %v683
    %v772 = vpack.c.b16 %v688, %v684
    %v773 = vpack.c.b16 %v689, %v685
    %v774 = vpack.c.b16 %v694, %v690
    %v775 = vpack.c.b16 %v695, %v691
    %v776 = vpack.c.b16 %v696, %v692
    %v777 = vpack.c.b16 %v697, %v693
    %v778 = vpack.c.b16 %v702, %v698
    %v779 = vpack.c.b16 %v703, %v699
    %v780 = vpack.c.b16 %v704, %v700
    %v781 = vpack.c.b16 %v705, %v701
    %v782 = vpack.c.b16 %v710, %v706
    %v783 = vpack.c.b16 %v711, %v707
    %v784 = vpack.c.b16 %v712, %v708
    %v785 = vpack.c.b16 %v713, %v709
    %v786 = vpack.c.b16 %v718, %v714
    %v787 = vpack.c.b16 %v719, %v715
    %v788 = vpack.c.b16 %v720, %v716
    %v789 = vpack.c.b16 %v721, %v717
    %v790 = vpack.c.b16 %v726, %v722
    %v791 = vpack.c.b16 %v727, %v723
    %v792 = vpack.c.b16 %v728, %v724
    %v793 = vpack.c.b16 %v729, %v725
    %858 = vmatpush.bf16.msra.mxu0 %v758
    %859 = vmatpush.bf16.msra.mxu0 %v754
    %860 = vmatpush.bf16.msra.mxu0 %v750
    %861 = vmatpush.bf16.msra.mxu0 %v746
    %862 = vmatpush.bf16.msra.mxu0 %v742
    %863 = vmatpush.bf16.msra.mxu0 %v738
    %864 = vmatpush.bf16.msra.mxu0 %v734
    %865 = vmatpush.bf16.msra.mxu0 %v730
    %866 = vmatmul.bf16.gmra.mxu0 %v472
    %v867 = vpop.f32.mrf.mxu0
    %v868 = vadd.f32 0.0, %v867
    %v869 = vpop.f32.mrf.mxu0
    %870 = vdwg.mxu0
    %871 = vmatpush.bf16.msra.mxu0 %v790
    %872 = vmatpush.bf16.msra.mxu0 %v786
    %873 = vmatpush.bf16.msra.mxu0 %v782
    %874 = vmatpush.bf16.msra.mxu0 %v778
    %875 = vmatpush.bf16.msra.mxu0 %v774
    %876 = vmatpush.bf16.msra.mxu0 %v770
    %877 = vmatpush.bf16.msra.mxu0 %v766
    %878 = vmatpush.bf16.msra.mxu0 %v762
    %879 = vmatmul.bf16.gmra.mxu0 %v473
    %v880 = vpop.f32.mrf.mxu0
    %v881 = vadd.f32 %v868, %v880
    %v882 = vpop.f32.mrf.mxu0
    %883 = vdwg.mxu0
    %884 = vmatpush.bf16.msra.mxu0 %v759
    %885 = vmatpush.bf16.msra.mxu0 %v755
    %886 = vmatpush.bf16.msra.mxu0 %v751
    %887 = vmatpush.bf16.msra.mxu0 %v747
    %888 = vmatpush.bf16.msra.mxu0 %v743
    %889 = vmatpush.bf16.msra.mxu0 %v739
    %890 = vmatpush.bf16.msra.mxu0 %v735
    %891 = vmatpush.bf16.msra.mxu0 %v731
    %892 = vmatmul.bf16.gmra.mxu0 %v472
    %v893 = vpop.f32.mrf.mxu0
    %v894 = vadd.f32 0.0, %v893
    %v895 = vpop.f32.mrf.mxu0
    %896 = vdwg.mxu0
    %897 = vmatpush.bf16.msra.mxu0 %v791
    %898 = vmatpush.bf16.msra.mxu0 %v787
    %899 = vmatpush.bf16.msra.mxu0 %v783
    %900 = vmatpush.bf16.msra.mxu0 %v779
    %901 = vmatpush.bf16.msra.mxu0 %v775
    %902 = vmatpush.bf16.msra.mxu0 %v771
    %903 = vmatpush.bf16.msra.mxu0 %v767
    %904 = vmatpush.bf16.msra.mxu0 %v763
    %905 = vmatmul.bf16.gmra.mxu0 %v473
    %v906 = vpop.f32.mrf.mxu0
    %v907 = vadd.f32 %v894, %v906
    %v908 = vpop.f32.mrf.mxu0
    %909 = vdwg.mxu0
    %910 = vmatpush.bf16.msra.mxu0 %v760
    %911 = vmatpush.bf16.msra.mxu0 %v756
    %912 = vmatpush.bf16.msra.mxu0 %v752
    %913 = vmatpush.bf16.msra.mxu0 %v748
    %914 = vmatpush.bf16.msra.mxu0 %v744
    %915 = vmatpush.bf16.msra.mxu0 %v740
    %916 = vmatpush.bf16.msra.mxu0 %v736
    %917 = vmatpush.bf16.msra.mxu0 %v732
    %918 = vmatmul.bf16.gmra.mxu0 %v472
    %v919 = vpop.f32.mrf.mxu0
    %v920 = vadd.f32 0.0, %v919
    %v921 = vpop.f32.mrf.mxu0
    %922 = vdwg.mxu0
    %923 = vmatpush.bf16.msra.mxu0 %v792
    %924 = vmatpush.bf16.msra.mxu0 %v788
    %925 = vmatpush.bf16.msra.mxu0 %v784
    %926 = vmatpush.bf16.msra.mxu0 %v780
    %927 = vmatpush.bf16.msra.mxu0 %v776
    %928 = vmatpush.bf16.msra.mxu0 %v772
    %929 = vmatpush.bf16.msra.mxu0 %v768
    %930 = vmatpush.bf16.msra.mxu0 %v764
    %931 = vmatmul.bf16.gmra.mxu0 %v473
    %v932 = vpop.f32.mrf.mxu0
    %v933 = vadd.f32 %v920, %v932
    %v934 = vpop.f32.mrf.mxu0
    %935 = vdwg.mxu0
    %936 = vmatpush.bf16.msra.mxu0 %v761
    %937 = vmatpush.bf16.msra.mxu0 %v757
    %938 = vmatpush.bf16.msra.mxu0 %v753
    %939 = vmatpush.bf16.msra.mxu0 %v749
    %940 = vmatpush.bf16.msra.mxu0 %v745
    %941 = vmatpush.bf16.msra.mxu0 %v741
    %942 = vmatpush.bf16.msra.mxu0 %v737
    %943 = vmatpush.bf16.msra.mxu0 %v733
    %944 = vmatmul.bf16.gmra.mxu0 %v472
    %v945 = vpop.f32.mrf.mxu0
    %v946 = vadd.f32 0.0, %v945
    %v947 = vpop.f32.mrf.mxu0
    %948 = vdwg.mxu0
    %949 = vmatpush.bf16.msra.mxu0 %v793
    %950 = vmatpush.bf16.msra.mxu0 %v789
    %951 = vmatpush.bf16.msra.mxu0 %v785
    %952 = vmatpush.bf16.msra.mxu0 %v781
    %953 = vmatpush.bf16.msra.mxu0 %v777
    %954 = vmatpush.bf16.msra.mxu0 %v773
    %955 = vmatpush.bf16.msra.mxu0 %v769
    %956 = vmatpush.bf16.msra.mxu0 %v765
    %957 = vmatmul.bf16.gmra.mxu0 %v473
    %v958 = vpop.f32.mrf.mxu0
    %v959 = vadd.f32 %v946, %v958
    %v960 = vpop.f32.mrf.mxu0
    %961 = vdwg.mxu0
    %vm962 = vcmask 1041408
    %v963 = vsel %vm962, %v881, 0.0
    %v964 = vrot.slane %v963, 4
    %v965 = vadd.f32 %v963, %v964
    %v966 = vrot.slane %v965, 2
    %v967 = vadd.f32 %v965, %v966
    %v968 = vrot.slane %v967, 1
    %v969 = vadd.f32 %v967, %v968
    %v970 = vsel %vm962, %v907, 0.0
    %v971 = vrot.slane %v970, 4
    %v972 = vadd.f32 %v970, %v971
    %v973 = vrot.slane %v972, 2
    %v974 = vadd.f32 %v972, %v973
    %v975 = vrot.slane %v974, 1
    %v976 = vadd.f32 %v974, %v975
    %v977 = vsel %vm962, %v933, 0.0
    %v978 = vrot.slane %v977, 4
    %v979 = vadd.f32 %v977, %v978
    %v980 = vrot.slane %v979, 2
    %v981 = vadd.f32 %v979, %v980
    %v982 = vrot.slane %v981, 1
    %v983 = vadd.f32 %v981, %v982
    %v984 = vsel %vm962, %v959, 0.0
    %v985 = vrot.slane %v984, 4
    %v986 = vadd.f32 %v984, %v985
    %v987 = vrot.slane %v986, 2
    %v988 = vadd.f32 %v986, %v987
    %v989 = vrot.slane %v988, 1
    %v990 = vadd.f32 %v988, %v989
    %v991 = vmul.f32 %v881, %v881
    %v992 = vmul.f32 %v907, %v907
    %v993 = vmul.f32 %v933, %v933
    %v994 = vmul.f32 %v959, %v959
    %v995 = vsel %vm962, %v991, 0.0
    %v996 = vrot.slane %v995, 4
    %v997 = vadd.f32 %v995, %v996
    %v998 = vrot.slane %v997, 2
    %v999 = vadd.f32 %v997, %v998
    %v1000 = vrot.slane %v999, 1
    %v1001 = vadd.f32 %v999, %v1000
    %v1002 = vsel %vm962, %v992, 0.0
    %v1003 = vrot.slane %v1002, 4
    %v1004 = vadd.f32 %v1002, %v1003
    %v1005 = vrot.slane %v1004, 2
    %v1006 = vadd.f32 %v1004, %v1005
    %v1007 = vrot.slane %v1006, 1
    %v1008 = vadd.f32 %v1006, %v1007
    %v1009 = vsel %vm962, %v993, 0.0
    %v1010 = vrot.slane %v1009, 4
    %v1011 = vadd.f32 %v1009, %v1010
    %v1012 = vrot.slane %v1011, 2
    %v1013 = vadd.f32 %v1011, %v1012
    %v1014 = vrot.slane %v1013, 1
    %v1015 = vadd.f32 %v1013, %v1014
    %v1016 = vsel %vm962, %v994, 0.0
    %v1017 = vrot.slane %v1016, 4
    %v1018 = vadd.f32 %v1016, %v1017
    %v1019 = vrot.slane %v1018, 2
    %v1020 = vadd.f32 %v1018, %v1019
    %v1021 = vrot.slane %v1020, 1
    %v1022 = vadd.f32 %v1020, %v1021
    %v1023 = vld [vmem:[#allocation5] sm:$0xff]
    %v1024 = vld [vmem:[#allocation5 + $0x8] sm:$0xff]
    %v1025 = vld [vmem:[#allocation5 + $0x10] sm:$0xff]
    %v1026 = vld [vmem:[#allocation5 + $0x18] sm:$0xff]
    %v1027 = vld [vmem:[#allocation5 + $0x20] sm:$0xff]
    %v1028 = vld [vmem:[#allocation5 + $0x28] sm:$0xff]
    %v1029 = vld [vmem:[#allocation5 + $0x30] sm:$0xff]
    %v1030 = vld [vmem:[#allocation5 + $0x38] sm:$0xff]
    %v1031 = vld [vmem:[#allocation5 + $0x40] sm:$0xff]
    %v1032 = vld [vmem:[#allocation5 + $0x48] sm:$0xff]
    %v1033 = vld [vmem:[#allocation5 + $0x50] sm:$0xff]
    %v1034 = vld [vmem:[#allocation5 + $0x58] sm:$0xff]
    %v1035 = vld [vmem:[#allocation5 + $0x60] sm:$0xff]
    %v1036 = vld [vmem:[#allocation5 + $0x68] sm:$0xff]
    %v1037 = vld [vmem:[#allocation5 + $0x70] sm:$0xff]
    %v1038 = vld [vmem:[#allocation5 + $0x78] sm:$0xff]
    %v1039 = vld [vmem:[#allocation5 + $0x80] sm:$0xff]
    %v1040 = vld [vmem:[#allocation5 + $0x88] sm:$0xff]
    %v1041 = vld [vmem:[#allocation5 + $0x90] sm:$0xff]
    %v1042 = vld [vmem:[#allocation5 + $0x98] sm:$0xff]
    %v1043 = vld [vmem:[#allocation5 + $0xa0] sm:$0xff]
    %v1044 = vld [vmem:[#allocation5 + $0xa8] sm:$0xff]
    %v1045 = vld [vmem:[#allocation5 + $0xb0] sm:$0xff]
    %v1046 = vld [vmem:[#allocation5 + $0xb8] sm:$0xff]
    %v1047 = vld [vmem:[#allocation5 + $0xc0] sm:$0xff]
    %v1048 = vld [vmem:[#allocation5 + $0xc8] sm:$0xff]
    %v1049 = vld [vmem:[#allocation5 + $0xd0] sm:$0xff]
    %v1050 = vld [vmem:[#allocation5 + $0xd8] sm:$0xff]
    %v1051 = vld [vmem:[#allocation5 + $0xe0] sm:$0xff]
    %v1052 = vld [vmem:[#allocation5 + $0xe8] sm:$0xff]
    %v1053 = vld [vmem:[#allocation5 + $0xf0] sm:$0xff]
    %v1054 = vld [vmem:[#allocation5 + $0xf8] sm:$0xff]
    %v1055 = vld [vmem:[#allocation5 + $0x100] sm:$0xff]
    %v1056 = vld [vmem:[#allocation5 + $0x108] sm:$0xff]
    %v1057 = vld [vmem:[#allocation5 + $0x110] sm:$0xff]
    %v1058 = vld [vmem:[#allocation5 + $0x118] sm:$0xff]
    %v1059 = vld [vmem:[#allocation5 + $0x120] sm:$0xff]
    %v1060 = vld [vmem:[#allocation5 + $0x128] sm:$0xff]
    %v1061 = vld [vmem:[#allocation5 + $0x130] sm:$0xff]
    %v1062 = vld [vmem:[#allocation5 + $0x138] sm:$0xff]
    %v1063 = vld [vmem:[#allocation5 + $0x140] sm:$0xff]
    %v1064 = vld [vmem:[#allocation5 + $0x148] sm:$0xff]
    %v1065 = vld [vmem:[#allocation5 + $0x150] sm:$0xff]
    %v1066 = vld [vmem:[#allocation5 + $0x158] sm:$0xff]
    %v1067 = vld [vmem:[#allocation5 + $0x160] sm:$0xff]
    %v1068 = vld [vmem:[#allocation5 + $0x168] sm:$0xff]
    %v1069 = vld [vmem:[#allocation5 + $0x170] sm:$0xff]
    %v1070 = vld [vmem:[#allocation5 + $0x178] sm:$0xff]
    %v1071 = vld [vmem:[#allocation5 + $0x180] sm:$0xff]
    %v1072 = vld [vmem:[#allocation5 + $0x188] sm:$0xff]
    %v1073 = vld [vmem:[#allocation5 + $0x190] sm:$0xff]
    %v1074 = vld [vmem:[#allocation5 + $0x198] sm:$0xff]
    %v1075 = vld [vmem:[#allocation5 + $0x1a0] sm:$0xff]
    %v1076 = vld [vmem:[#allocation5 + $0x1a8] sm:$0xff]
    %v1077 = vld [vmem:[#allocation5 + $0x1b0] sm:$0xff]
    %v1078 = vld [vmem:[#allocation5 + $0x1b8] sm:$0xff]
    %v1079 = vld [vmem:[#allocation5 + $0x1c0] sm:$0xff]
    %v1080 = vld [vmem:[#allocation5 + $0x1c8] sm:$0xff]
    %v1081 = vld [vmem:[#allocation5 + $0x1d0] sm:$0xff]
    %v1082 = vld [vmem:[#allocation5 + $0x1d8] sm:$0xff]
    %v1083 = vld [vmem:[#allocation5 + $0x1e0] sm:$0xff]
    %v1084 = vld [vmem:[#allocation5 + $0x1e8] sm:$0xff]
    %v1085 = vld [vmem:[#allocation5 + $0x1f0] sm:$0xff]
    %v1086 = vld [vmem:[#allocation5 + $0x1f8] sm:$0xff]
    %1087 = vmatpush.msra.mxu0 %v1038
    %1088 = vmatpush.msra.mxu0 %v1037
    %1089 = vmatpush.msra.mxu0 %v1036
    %1090 = vmatpush.msra.mxu0 %v1035
    %1091 = vmatpush.msra.mxu0 %v1034
    %1092 = vmatpush.msra.mxu0 %v1033
    %1093 = vmatpush.msra.mxu0 %v1032
    %1094 = vmatpush.msra.mxu0 %v1031
    %1095 = vmatpush.msra.mxu0 %v1030
    %1096 = vmatpush.msra.mxu0 %v1029
    %1097 = vmatpush.msra.mxu0 %v1028
    %1098 = vmatpush.msra.mxu0 %v1027
    %1099 = vmatpush.msra.mxu0 %v1026
    %1100 = vmatpush.msra.mxu0 %v1025
    %1101 = vmatpush.msra.mxu0 %v1024
    %1102 = vmatpush.msra.mxu0 %v1023
    %1103 = vmatmul.f32.gmra.mxu0 %v969
    %v1104 = vpop.f32.mrf.mxu0
    %v1105 = vadd.f32 0.0, %v1104
    %1106 = vdwg.mxu0
    %1107 = vmatpush.msra.mxu0 %v1054
    %1108 = vmatpush.msra.mxu0 %v1053
    %1109 = vmatpush.msra.mxu0 %v1052
    %1110 = vmatpush.msra.mxu0 %v1051
    %1111 = vmatpush.msra.mxu0 %v1050
    %1112 = vmatpush.msra.mxu0 %v1049
    %1113 = vmatpush.msra.mxu0 %v1048
    %1114 = vmatpush.msra.mxu0 %v1047
    %1115 = vmatpush.msra.mxu0 %v1046
    %1116 = vmatpush.msra.mxu0 %v1045
    %1117 = vmatpush.msra.mxu0 %v1044
    %1118 = vmatpush.msra.mxu0 %v1043
    %1119 = vmatpush.msra.mxu0 %v1042
    %1120 = vmatpush.msra.mxu0 %v1041
    %1121 = vmatpush.msra.mxu0 %v1040
    %1122 = vmatpush.msra.mxu0 %v1039
    %1123 = vmatmul.f32.gmra.mxu0 %v976
    %v1124 = vpop.f32.mrf.mxu0
    %v1125 = vadd.f32 %v1105, %v1124
    %1126 = vdwg.mxu0
    %1127 = vmatpush.msra.mxu0 %v1070
    %1128 = vmatpush.msra.mxu0 %v1069
    %1129 = vmatpush.msra.mxu0 %v1068
    %1130 = vmatpush.msra.mxu0 %v1067
    %1131 = vmatpush.msra.mxu0 %v1066
    %1132 = vmatpush.msra.mxu0 %v1065
    %1133 = vmatpush.msra.mxu0 %v1064
    %1134 = vmatpush.msra.mxu0 %v1063
    %1135 = vmatpush.msra.mxu0 %v1062
    %1136 = vmatpush.msra.mxu0 %v1061
    %1137 = vmatpush.msra.mxu0 %v1060
    %1138 = vmatpush.msra.mxu0 %v1059
    %1139 = vmatpush.msra.mxu0 %v1058
    %1140 = vmatpush.msra.mxu0 %v1057
    %1141 = vmatpush.msra.mxu0 %v1056
    %1142 = vmatpush.msra.mxu0 %v1055
    %1143 = vmatmul.f32.gmra.mxu0 %v983
    %v1144 = vpop.f32.mrf.mxu0
    %v1145 = vadd.f32 %v1125, %v1144
    %1146 = vdwg.mxu0
    %1147 = vmatpush.msra.mxu0 %v1086
    %1148 = vmatpush.msra.mxu0 %v1085
    %1149 = vmatpush.msra.mxu0 %v1084
    %1150 = vmatpush.msra.mxu0 %v1083
    %1151 = vmatpush.msra.mxu0 %v1082
    %1152 = vmatpush.msra.mxu0 %v1081
    %1153 = vmatpush.msra.mxu0 %v1080
    %1154 = vmatpush.msra.mxu0 %v1079
    %1155 = vmatpush.msra.mxu0 %v1078
    %1156 = vmatpush.msra.mxu0 %v1077
    %1157 = vmatpush.msra.mxu0 %v1076
    %1158 = vmatpush.msra.mxu0 %v1075
    %1159 = vmatpush.msra.mxu0 %v1074
    %1160 = vmatpush.msra.mxu0 %v1073
    %1161 = vmatpush.msra.mxu0 %v1072
    %1162 = vmatpush.msra.mxu0 %v1071
    %1163 = vmatmul.f32.gmra.mxu0 %v990
    %v1164 = vpop.f32.mrf.mxu0
    %v1165 = vadd.f32 %v1145, %v1164
    %1166 = vdwg.mxu0
    %1167 = vmatpush.msra.mxu0 %v1038
    %1168 = vmatpush.msra.mxu0 %v1037
    %1169 = vmatpush.msra.mxu0 %v1036
    %1170 = vmatpush.msra.mxu0 %v1035
    %1171 = vmatpush.msra.mxu0 %v1034
    %1172 = vmatpush.msra.mxu0 %v1033
    %1173 = vmatpush.msra.mxu0 %v1032
    %1174 = vmatpush.msra.mxu0 %v1031
    %1175 = vmatpush.msra.mxu0 %v1030
    %1176 = vmatpush.msra.mxu0 %v1029
    %1177 = vmatpush.msra.mxu0 %v1028
    %1178 = vmatpush.msra.mxu0 %v1027
    %1179 = vmatpush.msra.mxu0 %v1026
    %1180 = vmatpush.msra.mxu0 %v1025
    %1181 = vmatpush.msra.mxu0 %v1024
    %1182 = vmatpush.msra.mxu0 %v1023
    %1183 = vmatmul.f32.gmra.mxu0 %v1001
    %v1184 = vpop.f32.mrf.mxu0
    %v1185 = vadd.f32 0.0, %v1184
    %1186 = vdwg.mxu0
    %1187 = vmatpush.msra.mxu0 %v1054
    %1188 = vmatpush.msra.mxu0 %v1053
    %1189 = vmatpush.msra.mxu0 %v1052
    %1190 = vmatpush.msra.mxu0 %v1051
    %1191 = vmatpush.msra.mxu0 %v1050
    %1192 = vmatpush.msra.mxu0 %v1049
    %1193 = vmatpush.msra.mxu0 %v1048
    %1194 = vmatpush.msra.mxu0 %v1047
    %1195 = vmatpush.msra.mxu0 %v1046
    %1196 = vmatpush.msra.mxu0 %v1045
    %1197 = vmatpush.msra.mxu0 %v1044
    %1198 = vmatpush.msra.mxu0 %v1043
    %1199 = vmatpush.msra.mxu0 %v1042
    %1200 = vmatpush.msra.mxu0 %v1041
    %1201 = vmatpush.msra.mxu0 %v1040
    %1202 = vmatpush.msra.mxu0 %v1039
    %1203 = vmatmul.f32.gmra.mxu0 %v1008
    %v1204 = vpop.f32.mrf.mxu0
    %v1205 = vadd.f32 %v1185, %v1204
    %1206 = vdwg.mxu0
    %1207 = vmatpush.msra.mxu0 %v1070
    %1208 = vmatpush.msra.mxu0 %v1069
    %1209 = vmatpush.msra.mxu0 %v1068
    %1210 = vmatpush.msra.mxu0 %v1067
    %1211 = vmatpush.msra.mxu0 %v1066
    %1212 = vmatpush.msra.mxu0 %v1065
    %1213 = vmatpush.msra.mxu0 %v1064
    %1214 = vmatpush.msra.mxu0 %v1063
    %1215 = vmatpush.msra.mxu0 %v1062
    %1216 = vmatpush.msra.mxu0 %v1061
    %1217 = vmatpush.msra.mxu0 %v1060
    %1218 = vmatpush.msra.mxu0 %v1059
    %1219 = vmatpush.msra.mxu0 %v1058
    %1220 = vmatpush.msra.mxu0 %v1057
    %1221 = vmatpush.msra.mxu0 %v1056
    %1222 = vmatpush.msra.mxu0 %v1055
    %1223 = vmatmul.f32.gmra.mxu0 %v1015
    %v1224 = vpop.f32.mrf.mxu0
    %v1225 = vadd.f32 %v1205, %v1224
    %1226 = vdwg.mxu0
    %1227 = vmatpush.msra.mxu0 %v1086
    %1228 = vmatpush.msra.mxu0 %v1085
    %1229 = vmatpush.msra.mxu0 %v1084
    %1230 = vmatpush.msra.mxu0 %v1083
    %1231 = vmatpush.msra.mxu0 %v1082
    %1232 = vmatpush.msra.mxu0 %v1081
    %1233 = vmatpush.msra.mxu0 %v1080
    %1234 = vmatpush.msra.mxu0 %v1079
    %1235 = vmatpush.msra.mxu0 %v1078
    %1236 = vmatpush.msra.mxu0 %v1077
    %1237 = vmatpush.msra.mxu0 %v1076
    %1238 = vmatpush.msra.mxu0 %v1075
    %1239 = vmatpush.msra.mxu0 %v1074
    %1240 = vmatpush.msra.mxu0 %v1073
    %1241 = vmatpush.msra.mxu0 %v1072
    %1242 = vmatpush.msra.mxu0 %v1071
    %1243 = vmatmul.f32.gmra.mxu0 %v1022
    %v1244 = vpop.f32.mrf.mxu0
    %v1245 = vadd.f32 %v1225, %v1244
    %1246 = vdwg.mxu0
    %v1247 = vmul.f32 %v1165, 0.0078125
    %v1248 = vmul.f32 %v1245, 0.0078125
    %v1249 = vmul.f32 %v1247, %v1247
    %v1250 = vsub.f32 %v1248, %v1249
    %v1251 = vmax.f32 %v1250, 0.0
    %v1252 = vld [vmem:[%s5] sm:$0x1]
    %v1253 = vadd.f32 %v1251, 1e-05
    %v1254 = vrsqrt.pop %v1253
    %v1255 = vmul.f32 %v1254, %v1253
    %v1256 = vmul.f32 %v1255, %v1254
    %v1257 = vmul.f32 0.5, %v1256
    %v1258 = vsub.f32 1.5, %v1257
    %v1259 = vmul.f32 %v1254, %v1258
    %vm1260 = vweird.f32 %v1253
    %vm1261 = vweird.f32 %v1254
    %vm1262 = vmor %vm1260, %vm1261
    %v1263 = vsel %vm1262, %v1254, %v1259
    %v1264 = vmul.f32 %v1252, %v1263
    %v1265 = vld [vmem:[%s7] sm:$0x1]
    %v1266 = vmul.f32 %v1247, %v1264
    %v1267 = vsub.f32 %v1265, %v1266
    %v1268 = vld [vmem:[#allocation7] sm:$0xff]
    %v1269 = vld [vmem:[#allocation7 + $0x8] sm:$0xff]
    %v1270 = vld [vmem:[#allocation7 + $0x10] sm:$0xff]
    %v1271 = vld [vmem:[#allocation7 + $0x18] sm:$0xff]
    %vm1272 = vcmask 64512
    %v1274 = vsel %vm1272, %v1264, 0
    %1276 = vmatpush.msra.mxu0 0.0
    %1277 = vmatpush.msra.mxu0 0.0
    %1278 = vmatpush.msra.mxu0 0.0
    %1279 = vmatpush.msra.mxu0 0.0
    %1280 = vmatpush.msra.mxu0 0.0
    %1281 = vmatpush.msra.mxu0 0.0
    %1282 = vmatpush.msra.mxu0 0.0
    %1283 = vmatpush.msra.mxu0 0.0
    %1284 = vmatpush.msra.mxu0 0.0
    %1285 = vmatpush.msra.mxu0 0.0
    %1286 = vmatpush.msra.mxu0 0.0
    %1287 = vmatpush.msra.mxu0 0.0
    %1288 = vmatpush.msra.mxu0 0.0
    %1289 = vmatpush.msra.mxu0 0.0
    %1290 = vmatpush.msra.mxu0 0.0
    %1291 = vmatpush.msra.mxu0 %v1268
    %1292 = vmatmul.f32.gmra.mxu0 %v1274
    %v1293 = vpop.f32.mrf.mxu0
    %v1294 = vadd.f32 0.0, %v1293
    %1295 = vdwg.mxu0
    %1296 = vmatpush.msra.mxu0 0.0
    %1297 = vmatpush.msra.mxu0 0.0
    %1298 = vmatpush.msra.mxu0 0.0
    %1299 = vmatpush.msra.mxu0 0.0
    %1300 = vmatpush.msra.mxu0 0.0
    %1301 = vmatpush.msra.mxu0 0.0
    %1302 = vmatpush.msra.mxu0 0.0
    %1303 = vmatpush.msra.mxu0 0.0
    %1304 = vmatpush.msra.mxu0 0.0
    %1305 = vmatpush.msra.mxu0 0.0
    %1306 = vmatpush.msra.mxu0 0.0
    %1307 = vmatpush.msra.mxu0 0.0
    %1308 = vmatpush.msra.mxu0 0.0
    %1309 = vmatpush.msra.mxu0 0.0
    %1310 = vmatpush.msra.mxu0 0.0
    %1311 = vmatpush.msra.mxu0 %v1269
    %1312 = vmatmul.f32.gmra.mxu0 %v1274
    %v1313 = vpop.f32.mrf.mxu0
    %v1314 = vadd.f32 0.0, %v1313
    %1315 = vdwg.mxu0
    %1316 = vmatpush.msra.mxu0 0.0
    %1317 = vmatpush.msra.mxu0 0.0
    %1318 = vmatpush.msra.mxu0 0.0
    %1319 = vmatpush.msra.mxu0 0.0
    %1320 = vmatpush.msra.mxu0 0.0
    %1321 = vmatpush.msra.mxu0 0.0
    %1322 = vmatpush.msra.mxu0 0.0
    %1323 = vmatpush.msra.mxu0 0.0
    %1324 = vmatpush.msra.mxu0 0.0
    %1325 = vmatpush.msra.mxu0 0.0
    %1326 = vmatpush.msra.mxu0 0.0
    %1327 = vmatpush.msra.mxu0 0.0
    %1328 = vmatpush.msra.mxu0 0.0
    %1329 = vmatpush.msra.mxu0 0.0
    %1330 = vmatpush.msra.mxu0 0.0
    %1331 = vmatpush.msra.mxu0 %v1270
    %1332 = vmatmul.f32.gmra.mxu0 %v1274
    %v1333 = vpop.f32.mrf.mxu0
    %v1334 = vadd.f32 0.0, %v1333
    %1335 = vdwg.mxu0
    %1336 = vmatpush.msra.mxu0 0.0
    %1337 = vmatpush.msra.mxu0 0.0
    %1338 = vmatpush.msra.mxu0 0.0
    %1339 = vmatpush.msra.mxu0 0.0
    %1340 = vmatpush.msra.mxu0 0.0
    %1341 = vmatpush.msra.mxu0 0.0
    %1342 = vmatpush.msra.mxu0 0.0
    %1343 = vmatpush.msra.mxu0 0.0
    %1344 = vmatpush.msra.mxu0 0.0
    %1345 = vmatpush.msra.mxu0 0.0
    %1346 = vmatpush.msra.mxu0 0.0
    %1347 = vmatpush.msra.mxu0 0.0
    %1348 = vmatpush.msra.mxu0 0.0
    %1349 = vmatpush.msra.mxu0 0.0
    %1350 = vmatpush.msra.mxu0 0.0
    %1351 = vmatpush.msra.mxu0 %v1271
    %1352 = vmatmul.f32.gmra.mxu0 %v1274
    %v1353 = vpop.f32.mrf.mxu0
    %v1354 = vadd.f32 0.0, %v1353
    %1355 = vdwg.mxu0
    %v1357 = vsel %vm1272, %v1267, 0
    %1359 = vmatpush.msra.mxu0 0.0
    %1360 = vmatpush.msra.mxu0 0.0
    %1361 = vmatpush.msra.mxu0 0.0
    %1362 = vmatpush.msra.mxu0 0.0
    %1363 = vmatpush.msra.mxu0 0.0
    %1364 = vmatpush.msra.mxu0 0.0
    %1365 = vmatpush.msra.mxu0 0.0
    %1366 = vmatpush.msra.mxu0 0.0
    %1367 = vmatpush.msra.mxu0 0.0
    %1368 = vmatpush.msra.mxu0 0.0
    %1369 = vmatpush.msra.mxu0 0.0
    %1370 = vmatpush.msra.mxu0 0.0
    %1371 = vmatpush.msra.mxu0 0.0
    %1372 = vmatpush.msra.mxu0 0.0
    %1373 = vmatpush.msra.mxu0 0.0
    %1374 = vmatpush.msra.mxu0 %v1268
    %1375 = vmatmul.f32.gmra.mxu0 %v1357
    %v1376 = vpop.f32.mrf.mxu0
    %v1377 = vadd.f32 0.0, %v1376
    %1378 = vdwg.mxu0
    %1379 = vmatpush.msra.mxu0 0.0
    %1380 = vmatpush.msra.mxu0 0.0
    %1381 = vmatpush.msra.mxu0 0.0
    %1382 = vmatpush.msra.mxu0 0.0
    %1383 = vmatpush.msra.mxu0 0.0
    %1384 = vmatpush.msra.mxu0 0.0
    %1385 = vmatpush.msra.mxu0 0.0
    %1386 = vmatpush.msra.mxu0 0.0
    %1387 = vmatpush.msra.mxu0 0.0
    %1388 = vmatpush.msra.mxu0 0.0
    %1389 = vmatpush.msra.mxu0 0.0
    %1390 = vmatpush.msra.mxu0 0.0
    %1391 = vmatpush.msra.mxu0 0.0
    %1392 = vmatpush.msra.mxu0 0.0
    %1393 = vmatpush.msra.mxu0 0.0
    %1394 = vmatpush.msra.mxu0 %v1269
    %1395 = vmatmul.f32.gmra.mxu0 %v1357
    %v1396 = vpop.f32.mrf.mxu0
    %v1397 = vadd.f32 0.0, %v1396
    %1398 = vdwg.mxu0
    %1399 = vmatpush.msra.mxu0 0.0
    %1400 = vmatpush.msra.mxu0 0.0
    %1401 = vmatpush.msra.mxu0 0.0
    %1402 = vmatpush.msra.mxu0 0.0
    %1403 = vmatpush.msra.mxu0 0.0
    %1404 = vmatpush.msra.mxu0 0.0
    %1405 = vmatpush.msra.mxu0 0.0
    %1406 = vmatpush.msra.mxu0 0.0
    %1407 = vmatpush.msra.mxu0 0.0
    %1408 = vmatpush.msra.mxu0 0.0
    %1409 = vmatpush.msra.mxu0 0.0
    %1410 = vmatpush.msra.mxu0 0.0
    %1411 = vmatpush.msra.mxu0 0.0
    %1412 = vmatpush.msra.mxu0 0.0
    %1413 = vmatpush.msra.mxu0 0.0
    %1414 = vmatpush.msra.mxu0 %v1270
    %1415 = vmatmul.f32.gmra.mxu0 %v1357
    %v1416 = vpop.f32.mrf.mxu0
    %v1417 = vadd.f32 0.0, %v1416
    %1418 = vdwg.mxu0
    %1419 = vmatpush.msra.mxu0 0.0
    %1420 = vmatpush.msra.mxu0 0.0
    %1421 = vmatpush.msra.mxu0 0.0
    %1422 = vmatpush.msra.mxu0 0.0
    %1423 = vmatpush.msra.mxu0 0.0
    %1424 = vmatpush.msra.mxu0 0.0
    %1425 = vmatpush.msra.mxu0 0.0
    %1426 = vmatpush.msra.mxu0 0.0
    %1427 = vmatpush.msra.mxu0 0.0
    %1428 = vmatpush.msra.mxu0 0.0
    %1429 = vmatpush.msra.mxu0 0.0
    %1430 = vmatpush.msra.mxu0 0.0
    %1431 = vmatpush.msra.mxu0 0.0
    %1432 = vmatpush.msra.mxu0 0.0
    %1433 = vmatpush.msra.mxu0 0.0
    %1434 = vmatpush.msra.mxu0 %v1271
    %1435 = vmatmul.f32.gmra.mxu0 %v1357
    %v1436 = vpop.f32.mrf.mxu0
    %v1437 = vadd.f32 0.0, %v1436
    %1438 = vdwg.mxu0
    %v1439 = vperm.slane %v1294, 0
    %v1440 = vperm.slane %v1314, 0
    %v1441 = vperm.slane %v1334, 0
    %v1442 = vperm.slane %v1354, 0
    %v1443 = vmul.f32 %v881, %v1439
    %v1444 = vmul.f32 %v907, %v1440
    %v1445 = vmul.f32 %v933, %v1441
    %v1446 = vmul.f32 %v959, %v1442
    %v1447 = vperm.slane %v1377, 0
    %v1448 = vperm.slane %v1397, 0
    %v1449 = vperm.slane %v1417, 0
    %v1450 = vperm.slane %v1437, 0
    %v1451 = vadd.f32 %v1443, %v1447
    %v1452 = vadd.f32 %v1444, %v1448
    %v1453 = vadd.f32 %v1445, %v1449
    %v1454 = vadd.f32 %v1446, %v1450
    %v1455 = vmax.f32 %v1451, 0.0
    %v1456 = vmax.f32 %v1452, 0.0
    %v1457 = vmax.f32 %v1453, 0.0
    %v1458 = vmax.f32 %v1454, 0.0
    %v1459 = vpack.c.bf16 %v1455, %v1455
    %v1460 = vpack.c.bf16 %v1456, %v1456
    %v1461 = vpack.c.bf16 %v1457, %v1457
    %v1462 = vpack.c.bf16 %v1458, %v1458
    %v1463 = vld [vmem:[#allocation8] sm:$0xff]
    %v1464 = vld [vmem:[#allocation8 + $0x8] sm:$0xff]
    %v1465 = vld [vmem:[#allocation8 + $0x10] sm:$0xff]
    %v1466 = vld [vmem:[#allocation8 + $0x18] sm:$0xff]
    %v1467 = vld [vmem:[#allocation8 + $0x20] sm:$0xf]
    %v1468 = vld [vmem:[#allocation8 + $0x24] sm:$0xff]
    %v1469 = vld [vmem:[#allocation8 + $0x2c] sm:$0xff]
    %v1470 = vld [vmem:[#allocation8 + $0x34] sm:$0xff]
    %v1471 = vld [vmem:[#allocation8 + $0x3c] sm:$0xff]
    %v1472 = vld [vmem:[#allocation8 + $0x44] sm:$0xf]
    %v1473 = vld [vmem:[#allocation8 + $0x48] sm:$0xff]
    %v1474 = vld [vmem:[#allocation8 + $0x50] sm:$0xff]
    %v1475 = vld [vmem:[#allocation8 + $0x58] sm:$0xff]
    %v1476 = vld [vmem:[#allocation8 + $0x60] sm:$0xff]
    %v1477 = vld [vmem:[#allocation8 + $0x68] sm:$0xf]
    %v1478 = vld [vmem:[#allocation8 + $0x6c] sm:$0xff]
    %v1479 = vld [vmem:[#allocation8 + $0x74] sm:$0xff]
    %v1480 = vld [vmem:[#allocation8 + $0x7c] sm:$0xff]
    %v1481 = vld [vmem:[#allocation8 + $0x84] sm:$0xff]
    %v1482 = vld [vmem:[#allocation8 + $0x8c] sm:$0xf]
    %v1483 = vld [vmem:[#allocation8 + $0x90] sm:$0xff]
    %v1484 = vld [vmem:[#allocation8 + $0x98] sm:$0xff]
    %v1485 = vld [vmem:[#allocation8 + $0xa0] sm:$0xff]
    %v1486 = vld [vmem:[#allocation8 + $0xa8] sm:$0xff]
    %v1487 = vld [vmem:[#allocation8 + $0xb0] sm:$0xf]
    %v1488 = vld [vmem:[#allocation8 + $0xb4] sm:$0xff]
    %v1489 = vld [vmem:[#allocation8 + $0xbc] sm:$0xff]
    %v1490 = vld [vmem:[#allocation8 + $0xc4] sm:$0xff]
    %v1491 = vld [vmem:[#allocation8 + $0xcc] sm:$0xff]
    %v1492 = vld [vmem:[#allocation8 + $0xd4] sm:$0xf]
    %v1493 = vld [vmem:[#allocation8 + $0xd8] sm:$0xff]
    %v1494 = vld [vmem:[#allocation8 + $0xe0] sm:$0xff]
    %v1495 = vld [vmem:[#allocation8 + $0xe8] sm:$0xff]
    %v1496 = vld [vmem:[#allocation8 + $0xf0] sm:$0xff]
    %v1497 = vld [vmem:[#allocation8 + $0xf8] sm:$0xf]
    %v1498 = vld [vmem:[#allocation8 + $0xfc] sm:$0xff]
    %v1499 = vld [vmem:[#allocation8 + $0x104] sm:$0xff]
    %v1500 = vld [vmem:[#allocation8 + $0x10c] sm:$0xff]
    %v1501 = vld [vmem:[#allocation8 + $0x114] sm:$0xff]
    %v1502 = vld [vmem:[#allocation8 + $0x11c] sm:$0xf]
    %v1503 = vld [vmem:[#allocation8 + $0x120] sm:$0xff]
    %v1504 = vld [vmem:[#allocation8 + $0x128] sm:$0xff]
    %v1505 = vld [vmem:[#allocation8 + $0x130] sm:$0xff]
    %v1506 = vld [vmem:[#allocation8 + $0x138] sm:$0xff]
    %v1507 = vld [vmem:[#allocation8 + $0x140] sm:$0xf]
    %v1508 = vld [vmem:[#allocation8 + $0x144] sm:$0xff]
    %v1509 = vld [vmem:[#allocation8 + $0x14c] sm:$0xff]
    %v1510 = vld [vmem:[#allocation8 + $0x154] sm:$0xff]
    %v1511 = vld [vmem:[#allocation8 + $0x15c] sm:$0xff]
    %v1512 = vld [vmem:[#allocation8 + $0x164] sm:$0xf]
    %v1513 = vld [vmem:[#allocation8 + $0x168] sm:$0xff]
    %v1514 = vld [vmem:[#allocation8 + $0x170] sm:$0xff]
    %v1515 = vld [vmem:[#allocation8 + $0x178] sm:$0xff]
    %v1516 = vld [vmem:[#allocation8 + $0x180] sm:$0xff]
    %v1517 = vld [vmem:[#allocation8 + $0x188] sm:$0xf]
    %v1518 = vld [vmem:[#allocation8 + $0x18c] sm:$0xff]
    %v1519 = vld [vmem:[#allocation8 + $0x194] sm:$0xff]
    %v1520 = vld [vmem:[#allocation8 + $0x19c] sm:$0xff]
    %v1521 = vld [vmem:[#allocation8 + $0x1a4] sm:$0xff]
    %v1522 = vld [vmem:[#allocation8 + $0x1ac] sm:$0xf]
    %v1523 = vld [vmem:[#allocation8 + $0x1b0] sm:$0xff]
    %v1524 = vld [vmem:[#allocation8 + $0x1b8] sm:$0xff]
    %v1525 = vld [vmem:[#allocation8 + $0x1c0] sm:$0xff]
    %v1526 = vld [vmem:[#allocation8 + $0x1c8] sm:$0xff]
    %v1527 = vld [vmem:[#allocation8 + $0x1d0] sm:$0xf]
    %v1528 = vld [vmem:[#allocation8 + $0x1d4] sm:$0xff]
    %v1529 = vld [vmem:[#allocation8 + $0x1dc] sm:$0xff]
    %v1530 = vld [vmem:[#allocation8 + $0x1e4] sm:$0xff]
    %v1531 = vld [vmem:[#allocation8 + $0x1ec] sm:$0xff]
    %v1532 = vld [vmem:[#allocation8 + $0x1f4] sm:$0xf]
    %v1533 = vld [vmem:[#allocation8 + $0x1f8] sm:$0xff]
    %v1534 = vld [vmem:[#allocation8 + $0x200] sm:$0xff]
    %v1535 = vld [vmem:[#allocation8 + $0x208] sm:$0xff]
    %v1536 = vld [vmem:[#allocation8 + $0x210] sm:$0xff]
    %v1537 = vld [vmem:[#allocation8 + $0x218] sm:$0xf]
    %v1538 = vld [vmem:[#allocation8 + $0x21c] sm:$0xff]
    %v1539 = vld [vmem:[#allocation8 + $0x224] sm:$0xff]
    %v1540 = vld [vmem:[#allocation8 + $0x22c] sm:$0xff]
    %v1541 = vld [vmem:[#allocation8 + $0x234] sm:$0xff]
    %v1542 = vld [vmem:[#allocation8 + $0x23c] sm:$0xf]
    %v1543 = vld [vmem:[#allocation8 + $0x240] sm:$0xff]
    %v1544 = vld [vmem:[#allocation8 + $0x248] sm:$0xff]
    %v1545 = vld [vmem:[#allocation8 + $0x250] sm:$0xff]
    %v1546 = vld [vmem:[#allocation8 + $0x258] sm:$0xff]
    %v1547 = vld [vmem:[#allocation8 + $0x260] sm:$0xf]
    %v1548 = vld [vmem:[#allocation8 + $0x264] sm:$0xff]
    %v1549 = vld [vmem:[#allocation8 + $0x26c] sm:$0xff]
    %v1550 = vld [vmem:[#allocation8 + $0x274] sm:$0xff]
    %v1551 = vld [vmem:[#allocation8 + $0x27c] sm:$0xff]
    %v1552 = vld [vmem:[#allocation8 + $0x284] sm:$0xf]
    %v1553 = vld [vmem:[#allocation8 + $0x288] sm:$0xff]
    %v1554 = vld [vmem:[#allocation8 + $0x290] sm:$0xff]
    %v1555 = vld [vmem:[#allocation8 + $0x298] sm:$0xff]
    %v1556 = vld [vmem:[#allocation8 + $0x2a0] sm:$0xff]
    %v1557 = vld [vmem:[#allocation8 + $0x2a8] sm:$0xf]
    %v1558 = vld [vmem:[#allocation8 + $0x2ac] sm:$0xff]
    %v1559 = vld [vmem:[#allocation8 + $0x2b4] sm:$0xff]
    %v1560 = vld [vmem:[#allocation8 + $0x2bc] sm:$0xff]
    %v1561 = vld [vmem:[#allocation8 + $0x2c4] sm:$0xff]
    %v1562 = vld [vmem:[#allocation8 + $0x2cc] sm:$0xf]
    %v1563 = vld [vmem:[#allocation8 + $0x2d0] sm:$0xff]
    %v1564 = vld [vmem:[#allocation8 + $0x2d8] sm:$0xff]
    %v1565 = vld [vmem:[#allocation8 + $0x2e0] sm:$0xff]
    %v1566 = vld [vmem:[#allocation8 + $0x2e8] sm:$0xff]
    %v1567 = vld [vmem:[#allocation8 + $0x2f0] sm:$0xf]
    %v1568 = vld [vmem:[#allocation8 + $0x2f4] sm:$0xff]
    %v1569 = vld [vmem:[#allocation8 + $0x2fc] sm:$0xff]
    %v1570 = vld [vmem:[#allocation8 + $0x304] sm:$0xff]
    %v1571 = vld [vmem:[#allocation8 + $0x30c] sm:$0xff]
    %v1572 = vld [vmem:[#allocation8 + $0x314] sm:$0xf]
    %v1573 = vld [vmem:[#allocation8 + $0x318] sm:$0xff]
    %v1574 = vld [vmem:[#allocation8 + $0x320] sm:$0xff]
    %v1575 = vld [vmem:[#allocation8 + $0x328] sm:$0xff]
    %v1576 = vld [vmem:[#allocation8 + $0x330] sm:$0xff]
    %v1577 = vld [vmem:[#allocation8 + $0x338] sm:$0xf]
    %v1578 = vld [vmem:[#allocation8 + $0x33c] sm:$0xff]
    %v1579 = vld [vmem:[#allocation8 + $0x344] sm:$0xff]
    %v1580 = vld [vmem:[#allocation8 + $0x34c] sm:$0xff]
    %v1581 = vld [vmem:[#allocation8 + $0x354] sm:$0xff]
    %v1582 = vld [vmem:[#allocation8 + $0x35c] sm:$0xf]
    %v1583 = vld [vmem:[#allocation8 + $0x360] sm:$0xff]
    %v1584 = vld [vmem:[#allocation8 + $0x368] sm:$0xff]
    %v1585 = vld [vmem:[#allocation8 + $0x370] sm:$0xff]
    %v1586 = vld [vmem:[#allocation8 + $0x378] sm:$0xff]
    %v1587 = vld [vmem:[#allocation8 + $0x380] sm:$0xf]
    %v1588 = vld [vmem:[#allocation8 + $0x384] sm:$0xff]
    %v1589 = vld [vmem:[#allocation8 + $0x38c] sm:$0xff]
    %v1590 = vld [vmem:[#allocation8 + $0x394] sm:$0xff]
    %v1591 = vld [vmem:[#allocation8 + $0x39c] sm:$0xff]
    %v1592 = vld [vmem:[#allocation8 + $0x3a4] sm:$0xf]
    %v1593 = vld [vmem:[#allocation8 + $0x3a8] sm:$0xff]
    %v1594 = vld [vmem:[#allocation8 + $0x3b0] sm:$0xff]
    %v1595 = vld [vmem:[#allocation8 + $0x3b8] sm:$0xff]
    %v1596 = vld [vmem:[#allocation8 + $0x3c0] sm:$0xff]
    %v1597 = vld [vmem:[#allocation8 + $0x3c8] sm:$0xf]
    %v1598 = vld [vmem:[#allocation8 + $0x3cc] sm:$0xff]
    %v1599 = vld [vmem:[#allocation8 + $0x3d4] sm:$0xff]
    %v1600 = vld [vmem:[#allocation8 + $0x3dc] sm:$0xff]
    %v1601 = vld [vmem:[#allocation8 + $0x3e4] sm:$0xff]
    %v1602 = vld [vmem:[#allocation8 + $0x3ec] sm:$0xf]
    %v1603 = vld [vmem:[#allocation8 + $0x3f0] sm:$0xff]
    %v1604 = vld [vmem:[#allocation8 + $0x3f8] sm:$0xff]
    %v1605 = vld [vmem:[#allocation8 + $0x400] sm:$0xff]
    %v1606 = vld [vmem:[#allocation8 + $0x408] sm:$0xff]
    %v1607 = vld [vmem:[#allocation8 + $0x410] sm:$0xf]
    %v1608 = vld [vmem:[#allocation8 + $0x414] sm:$0xff]
    %v1609 = vld [vmem:[#allocation8 + $0x41c] sm:$0xff]
    %v1610 = vld [vmem:[#allocation8 + $0x424] sm:$0xff]
    %v1611 = vld [vmem:[#allocation8 + $0x42c] sm:$0xff]
    %v1612 = vld [vmem:[#allocation8 + $0x434] sm:$0xf]
    %v1613 = vld [vmem:[#allocation8 + $0x438] sm:$0xff]
    %v1614 = vld [vmem:[#allocation8 + $0x440] sm:$0xff]
    %v1615 = vld [vmem:[#allocation8 + $0x448] sm:$0xff]
    %v1616 = vld [vmem:[#allocation8 + $0x450] sm:$0xff]
    %v1617 = vld [vmem:[#allocation8 + $0x458] sm:$0xf]
    %v1618 = vld [vmem:[#allocation8 + $0x45c] sm:$0xff]
    %v1619 = vld [vmem:[#allocation8 + $0x464] sm:$0xff]
    %v1620 = vld [vmem:[#allocation8 + $0x46c] sm:$0xff]
    %v1621 = vld [vmem:[#allocation8 + $0x474] sm:$0xff]
    %v1622 = vld [vmem:[#allocation8 + $0x47c] sm:$0xf]
    %v1623 = vld [vmem:[#allocation8 + $0x480] sm:$0xff]
    %v1624 = vld [vmem:[#allocation8 + $0x488] sm:$0xff]
    %v1625 = vld [vmem:[#allocation8 + $0x490] sm:$0xff]
    %v1626 = vld [vmem:[#allocation8 + $0x498] sm:$0xff]
    %v1627 = vld [vmem:[#allocation8 + $0x4a0] sm:$0xf]
    %v1628 = vld [vmem:[#allocation8 + $0x4a4] sm:$0xff]
    %v1629 = vld [vmem:[#allocation8 + $0x4ac] sm:$0xff]
    %v1630 = vld [vmem:[#allocation8 + $0x4b4] sm:$0xff]
    %v1631 = vld [vmem:[#allocation8 + $0x4bc] sm:$0xff]
    %v1632 = vld [vmem:[#allocation8 + $0x4c4] sm:$0xf]
    %v1633 = vld [vmem:[#allocation8 + $0x4c8] sm:$0xff]
    %v1634 = vld [vmem:[#allocation8 + $0x4d0] sm:$0xff]
    %v1635 = vld [vmem:[#allocation8 + $0x4d8] sm:$0xff]
    %v1636 = vld [vmem:[#allocation8 + $0x4e0] sm:$0xff]
    %v1637 = vld [vmem:[#allocation8 + $0x4e8] sm:$0xf]
    %v1638 = vld [vmem:[#allocation8 + $0x4ec] sm:$0xff]
    %v1639 = vld [vmem:[#allocation8 + $0x4f4] sm:$0xff]
    %v1640 = vld [vmem:[#allocation8 + $0x4fc] sm:$0xff]
    %v1641 = vld [vmem:[#allocation8 + $0x504] sm:$0xff]
    %v1642 = vld [vmem:[#allocation8 + $0x50c] sm:$0xf]
    %v1643 = vld [vmem:[#allocation8 + $0x510] sm:$0xff]
    %v1644 = vld [vmem:[#allocation8 + $0x518] sm:$0xff]
    %v1645 = vld [vmem:[#allocation8 + $0x520] sm:$0xff]
    %v1646 = vld [vmem:[#allocation8 + $0x528] sm:$0xff]
    %v1647 = vld [vmem:[#allocation8 + $0x530] sm:$0xf]
    %v1648 = vld [vmem:[#allocation8 + $0x534] sm:$0xff]
    %v1649 = vld [vmem:[#allocation8 + $0x53c] sm:$0xff]
    %v1650 = vld [vmem:[#allocation8 + $0x544] sm:$0xff]
    %v1651 = vld [vmem:[#allocation8 + $0x54c] sm:$0xff]
    %v1652 = vld [vmem:[#allocation8 + $0x554] sm:$0xf]
    %v1653 = vld [vmem:[#allocation8 + $0x558] sm:$0xff]
    %v1654 = vld [vmem:[#allocation8 + $0x560] sm:$0xff]
    %v1655 = vld [vmem:[#allocation8 + $0x568] sm:$0xff]
    %v1656 = vld [vmem:[#allocation8 + $0x570] sm:$0xff]
    %v1657 = vld [vmem:[#allocation8 + $0x578] sm:$0xf]
    %v1658 = vld [vmem:[#allocation8 + $0x57c] sm:$0xff]
    %v1659 = vld [vmem:[#allocation8 + $0x584] sm:$0xff]
    %v1660 = vld [vmem:[#allocation8 + $0x58c] sm:$0xff]
    %v1661 = vld [vmem:[#allocation8 + $0x594] sm:$0xff]
    %v1662 = vld [vmem:[#allocation8 + $0x59c] sm:$0xf]
    %v1663 = vld [vmem:[#allocation8 + $0x5a0] sm:$0xff]
    %v1664 = vld [vmem:[#allocation8 + $0x5a8] sm:$0xff]
    %v1665 = vld [vmem:[#allocation8 + $0x5b0] sm:$0xff]
    %v1666 = vld [vmem:[#allocation8 + $0x5b8] sm:$0xff]
    %v1667 = vld [vmem:[#allocation8 + $0x5c0] sm:$0xf]
    %v1668 = vld [vmem:[#allocation8 + $0x5c4] sm:$0xff]
    %v1669 = vld [vmem:[#allocation8 + $0x5cc] sm:$0xff]
    %v1670 = vld [vmem:[#allocation8 + $0x5d4] sm:$0xff]
    %v1671 = vld [vmem:[#allocation8 + $0x5dc] sm:$0xff]
    %v1672 = vld [vmem:[#allocation8 + $0x5e4] sm:$0xf]
    %v1673 = vld [vmem:[#allocation8 + $0x5e8] sm:$0xff]
    %v1674 = vld [vmem:[#allocation8 + $0x5f0] sm:$0xff]
    %v1675 = vld [vmem:[#allocation8 + $0x5f8] sm:$0xff]
    %v1676 = vld [vmem:[#allocation8 + $0x600] sm:$0xff]
    %v1677 = vld [vmem:[#allocation8 + $0x608] sm:$0xf]
    %v1678 = vld [vmem:[#allocation8 + $0x60c] sm:$0xff]
    %v1679 = vld [vmem:[#allocation8 + $0x614] sm:$0xff]
    %v1680 = vld [vmem:[#allocation8 + $0x61c] sm:$0xff]
    %v1681 = vld [vmem:[#allocation8 + $0x624] sm:$0xff]
    %v1682 = vld [vmem:[#allocation8 + $0x62c] sm:$0xf]
    %v1683 = vld [vmem:[#allocation8 + $0x630] sm:$0xff]
    %v1684 = vld [vmem:[#allocation8 + $0x638] sm:$0xff]
    %v1685 = vld [vmem:[#allocation8 + $0x640] sm:$0xff]
    %v1686 = vld [vmem:[#allocation8 + $0x648] sm:$0xff]
    %v1687 = vld [vmem:[#allocation8 + $0x650] sm:$0xf]
    %v1688 = vld [vmem:[#allocation8 + $0x654] sm:$0xff]
    %v1689 = vld [vmem:[#allocation8 + $0x65c] sm:$0xff]
    %v1690 = vld [vmem:[#allocation8 + $0x664] sm:$0xff]
    %v1691 = vld [vmem:[#allocation8 + $0x66c] sm:$0xff]
    %v1692 = vld [vmem:[#allocation8 + $0x674] sm:$0xf]
    %v1693 = vld [vmem:[#allocation8 + $0x678] sm:$0xff]
    %v1694 = vld [vmem:[#allocation8 + $0x680] sm:$0xff]
    %v1695 = vld [vmem:[#allocation8 + $0x688] sm:$0xff]
    %v1696 = vld [vmem:[#allocation8 + $0x690] sm:$0xff]
    %v1697 = vld [vmem:[#allocation8 + $0x698] sm:$0xf]
    %v1698 = vld [vmem:[#allocation8 + $0x69c] sm:$0xff]
    %v1699 = vld [vmem:[#allocation8 + $0x6a4] sm:$0xff]
    %v1700 = vld [vmem:[#allocation8 + $0x6ac] sm:$0xff]
    %v1701 = vld [vmem:[#allocation8 + $0x6b4] sm:$0xff]
    %v1702 = vld [vmem:[#allocation8 + $0x6bc] sm:$0xf]
    %v1703 = vld [vmem:[#allocation8 + $0x6c0] sm:$0xff]
    %v1704 = vld [vmem:[#allocation8 + $0x6c8] sm:$0xff]
    %v1705 = vld [vmem:[#allocation8 + $0x6d0] sm:$0xff]
    %v1706 = vld [vmem:[#allocation8 + $0x6d8] sm:$0xff]
    %v1707 = vld [vmem:[#allocation8 + $0x6e0] sm:$0xf]
    %v1708 = vld [vmem:[#allocation8 + $0x6e4] sm:$0xff]
    %v1709 = vld [vmem:[#allocation8 + $0x6ec] sm:$0xff]
    %v1710 = vld [vmem:[#allocation8 + $0x6f4] sm:$0xff]
    %v1711 = vld [vmem:[#allocation8 + $0x6fc] sm:$0xff]
    %v1712 = vld [vmem:[#allocation8 + $0x704] sm:$0xf]
    %v1713 = vld [vmem:[#allocation8 + $0x708] sm:$0xff]
    %v1714 = vld [vmem:[#allocation8 + $0x710] sm:$0xff]
    %v1715 = vld [vmem:[#allocation8 + $0x718] sm:$0xff]
    %v1716 = vld [vmem:[#allocation8 + $0x720] sm:$0xff]
    %v1717 = vld [vmem:[#allocation8 + $0x728] sm:$0xf]
    %v1718 = vld [vmem:[#allocation8 + $0x72c] sm:$0xff]
    %v1719 = vld [vmem:[#allocation8 + $0x734] sm:$0xff]
    %v1720 = vld [vmem:[#allocation8 + $0x73c] sm:$0xff]
    %v1721 = vld [vmem:[#allocation8 + $0x744] sm:$0xff]
    %v1722 = vld [vmem:[#allocation8 + $0x74c] sm:$0xf]
    %v1723 = vld [vmem:[#allocation8 + $0x750] sm:$0xff]
    %v1724 = vld [vmem:[#allocation8 + $0x758] sm:$0xff]
    %v1725 = vld [vmem:[#allocation8 + $0x760] sm:$0xff]
    %v1726 = vld [vmem:[#allocation8 + $0x768] sm:$0xff]
    %v1727 = vld [vmem:[#allocation8 + $0x770] sm:$0xf]
    %v1728 = vld [vmem:[#allocation8 + $0x774] sm:$0xff]
    %v1729 = vld [vmem:[#allocation8 + $0x77c] sm:$0xff]
    %v1730 = vld [vmem:[#allocation8 + $0x784] sm:$0xff]
    %v1731 = vld [vmem:[#allocation8 + $0x78c] sm:$0xff]
    %v1732 = vld [vmem:[#allocation8 + $0x794] sm:$0xf]
    %v1733 = vld [vmem:[#allocation8 + $0x798] sm:$0xff]
    %v1734 = vld [vmem:[#allocation8 + $0x7a0] sm:$0xff]
    %v1735 = vld [vmem:[#allocation8 + $0x7a8] sm:$0xff]
    %v1736 = vld [vmem:[#allocation8 + $0x7b0] sm:$0xff]
    %v1737 = vld [vmem:[#allocation8 + $0x7b8] sm:$0xf]
    %v1738 = vld [vmem:[#allocation8 + $0x7bc] sm:$0xff]
    %v1739 = vld [vmem:[#allocation8 + $0x7c4] sm:$0xff]
    %v1740 = vld [vmem:[#allocation8 + $0x7cc] sm:$0xff]
    %v1741 = vld [vmem:[#allocation8 + $0x7d4] sm:$0xff]
    %v1742 = vld [vmem:[#allocation8 + $0x7dc] sm:$0xf]
    %v1743 = vld [vmem:[#allocation8 + $0x7e0] sm:$0xff]
    %v1744 = vld [vmem:[#allocation8 + $0x7e8] sm:$0xff]
    %v1745 = vld [vmem:[#allocation8 + $0x7f0] sm:$0xff]
    %v1746 = vld [vmem:[#allocation8 + $0x7f8] sm:$0xff]
    %v1747 = vld [vmem:[#allocation8 + $0x800] sm:$0xf]
    %v1748 = vld [vmem:[#allocation8 + $0x804] sm:$0xff]
    %v1749 = vld [vmem:[#allocation8 + $0x80c] sm:$0xff]
    %v1750 = vld [vmem:[#allocation8 + $0x814] sm:$0xff]
    %v1751 = vld [vmem:[#allocation8 + $0x81c] sm:$0xff]
    %v1752 = vld [vmem:[#allocation8 + $0x824] sm:$0xf]
    %v1753 = vld [vmem:[#allocation8 + $0x828] sm:$0xff]
    %v1754 = vld [vmem:[#allocation8 + $0x830] sm:$0xff]
    %v1755 = vld [vmem:[#allocation8 + $0x838] sm:$0xff]
    %v1756 = vld [vmem:[#allocation8 + $0x840] sm:$0xff]
    %v1757 = vld [vmem:[#allocation8 + $0x848] sm:$0xf]
    %v1758 = vld [vmem:[#allocation8 + $0x84c] sm:$0xff]
    %v1759 = vld [vmem:[#allocation8 + $0x854] sm:$0xff]
    %v1760 = vld [vmem:[#allocation8 + $0x85c] sm:$0xff]
    %v1761 = vld [vmem:[#allocation8 + $0x864] sm:$0xff]
    %v1762 = vld [vmem:[#allocation8 + $0x86c] sm:$0xf]
    %v1763 = vld [vmem:[#allocation8 + $0x870] sm:$0xff]
    %v1764 = vld [vmem:[#allocation8 + $0x878] sm:$0xff]
    %v1765 = vld [vmem:[#allocation8 + $0x880] sm:$0xff]
    %v1766 = vld [vmem:[#allocation8 + $0x888] sm:$0xff]
    %v1767 = vld [vmem:[#allocation8 + $0x890] sm:$0xf]
    %v1768 = vld [vmem:[#allocation8 + $0x894] sm:$0xff]
    %v1769 = vld [vmem:[#allocation8 + $0x89c] sm:$0xff]
    %v1770 = vld [vmem:[#allocation8 + $0x8a4] sm:$0xff]
    %v1771 = vld [vmem:[#allocation8 + $0x8ac] sm:$0xff]
    %v1772 = vld [vmem:[#allocation8 + $0x8b4] sm:$0xf]
    %v1773 = vld [vmem:[#allocation8 + $0x8b8] sm:$0xff]
    %v1774 = vld [vmem:[#allocation8 + $0x8c0] sm:$0xff]
    %v1775 = vld [vmem:[#allocation8 + $0x8c8] sm:$0xff]
    %v1776 = vld [vmem:[#allocation8 + $0x8d0] sm:$0xff]
    %v1777 = vld [vmem:[#allocation8 + $0x8d8] sm:$0xf]
    %v1778 = vld [vmem:[#allocation8 + $0x8dc] sm:$0xff]
    %v1779 = vld [vmem:[#allocation8 + $0x8e4] sm:$0xff]
    %v1780 = vld [vmem:[#allocation8 + $0x8ec] sm:$0xff]
    %v1781 = vld [vmem:[#allocation8 + $0x8f4] sm:$0xff]
    %v1782 = vld [vmem:[#allocation8 + $0x8fc] sm:$0xf]
    %v2103 = vunpack.c.l.b16 %v1463
    %v2104 = vunpack.c.h.b16 %v1463
    %v2105 = vunpack.c.l.b16 %v1464
    %v2106 = vunpack.c.h.b16 %v1464
    %v2107 = vunpack.c.l.b16 %v1465
    %v2108 = vunpack.c.h.b16 %v1465
    %v2109 = vunpack.c.l.b16 %v1466
    %v2110 = vunpack.c.h.b16 %v1466
    %v2111 = vunpack.c.l.b16 %v1467
    %v2112 = vunpack.c.l.b16 %v1468
    %v2113 = vunpack.c.h.b16 %v1468
    %v2114 = vunpack.c.l.b16 %v1469
    %v2115 = vunpack.c.h.b16 %v1469
    %v2116 = vunpack.c.l.b16 %v1470
    %v2117 = vunpack.c.h.b16 %v1470
    %v2118 = vunpack.c.l.b16 %v1471
    %v2119 = vunpack.c.h.b16 %v1471
    %v2120 = vunpack.c.l.b16 %v1472
    %v2121 = vunpack.c.l.b16 %v1473
    %v2122 = vunpack.c.h.b16 %v1473
    %v2123 = vunpack.c.l.b16 %v1474
    %v2124 = vunpack.c.h.b16 %v1474
    %v2125 = vunpack.c.l.b16 %v1475
    %v2126 = vunpack.c.h.b16 %v1475
    %v2127 = vunpack.c.l.b16 %v1476
    %v2128 = vunpack.c.h.b16 %v1476
    %v2129 = vunpack.c.l.b16 %v1477
    %v2130 = vunpack.c.l.b16 %v1478
    %v2131 = vunpack.c.h.b16 %v1478
    %v2132 = vunpack.c.l.b16 %v1479
    %v2133 = vunpack.c.h.b16 %v1479
    %v2134 = vunpack.c.l.b16 %v1480
    %v2135 = vunpack.c.h.b16 %v1480
    %v2136 = vunpack.c.l.b16 %v1481
    %v2137 = vunpack.c.h.b16 %v1481
    %v2138 = vunpack.c.l.b16 %v1482
    %v2139 = vunpack.c.l.b16 %v1483
    %v2140 = vunpack.c.h.b16 %v1483
    %v2141 = vunpack.c.l.b16 %v1484
    %v2142 = vunpack.c.h.b16 %v1484
    %v2143 = vunpack.c.l.b16 %v1485
    %v2144 = vunpack.c.h.b16 %v1485
    %v2145 = vunpack.c.l.b16 %v1486
    %v2146 = vunpack.c.h.b16 %v1486
    %v2147 = vunpack.c.l.b16 %v1487
    %v2148 = vunpack.c.l.b16 %v1488
    %v2149 = vunpack.c.h.b16 %v1488
    %v2150 = vunpack.c.l.b16 %v1489
    %v2151 = vunpack.c.h.b16 %v1489
    %v2152 = vunpack.c.l.b16 %v1490
    %v2153 = vunpack.c.h.b16 %v1490
    %v2154 = vunpack.c.l.b16 %v1491
    %v2155 = vunpack.c.h.b16 %v1491
    %v2156 = vunpack.c.l.b16 %v1492
    %v2157 = vunpack.c.l.b16 %v1493
    %v2158 = vunpack.c.h.b16 %v1493
    %v2159 = vunpack.c.l.b16 %v1494
    %v2160 = vunpack.c.h.b16 %v1494
    %v2161 = vunpack.c.l.b16 %v1495
    %v2162 = vunpack.c.h.b16 %v1495
    %v2163 = vunpack.c.l.b16 %v1496
    %v2164 = vunpack.c.h.b16 %v1496
    %v2165 = vunpack.c.l.b16 %v1497
    %v2166 = vunpack.c.l.b16 %v1498
    %v2167 = vunpack.c.h.b16 %v1498
    %v2168 = vunpack.c.l.b16 %v1499
    %v2169 = vunpack.c.h.b16 %v1499
    %v2170 = vunpack.c.l.b16 %v1500
    %v2171 = vunpack.c.h.b16 %v1500
    %v2172 = vunpack.c.l.b16 %v1501
    %v2173 = vunpack.c.h.b16 %v1501
    %v2174 = vunpack.c.l.b16 %v1502
    %v2175 = vunpack.c.l.b16 %v1503
    %v2176 = vunpack.c.h.b16 %v1503
    %v2177 = vunpack.c.l.b16 %v1504
    %v2178 = vunpack.c.h.b16 %v1504
    %v2179 = vunpack.c.l.b16 %v1505
    %v2180 = vunpack.c.h.b16 %v1505
    %v2181 = vunpack.c.l.b16 %v1506
    %v2182 = vunpack.c.h.b16 %v1506
    %v2183 = vunpack.c.l.b16 %v1507
    %v2184 = vunpack.c.l.b16 %v1508
    %v2185 = vunpack.c.h.b16 %v1508
    %v2186 = vunpack.c.l.b16 %v1509
    %v2187 = vunpack.c.h.b16 %v1509
    %v2188 = vunpack.c.l.b16 %v1510
    %v2189 = vunpack.c.h.b16 %v1510
    %v2190 = vunpack.c.l.b16 %v1511
    %v2191 = vunpack.c.h.b16 %v1511
    %v2192 = vunpack.c.l.b16 %v1512
    %v2193 = vunpack.c.l.b16 %v1513
    %v2194 = vunpack.c.h.b16 %v1513
    %v2195 = vunpack.c.l.b16 %v1514
    %v2196 = vunpack.c.h.b16 %v1514
    %v2197 = vunpack.c.l.b16 %v1515
    %v2198 = vunpack.c.h.b16 %v1515
    %v2199 = vunpack.c.l.b16 %v1516
    %v2200 = vunpack.c.h.b16 %v1516
    %v2201 = vunpack.c.l.b16 %v1517
    %v2202 = vunpack.c.l.b16 %v1518
    %v2203 = vunpack.c.h.b16 %v1518
    %v2204 = vunpack.c.l.b16 %v1519
    %v2205 = vunpack.c.h.b16 %v1519
    %v2206 = vunpack.c.l.b16 %v1520
    %v2207 = vunpack.c.h.b16 %v1520
    %v2208 = vunpack.c.l.b16 %v1521
    %v2209 = vunpack.c.h.b16 %v1521
    %v2210 = vunpack.c.l.b16 %v1522
    %v2211 = vunpack.c.l.b16 %v1523
    %v2212 = vunpack.c.h.b16 %v1523
    %v2213 = vunpack.c.l.b16 %v1524
    %v2214 = vunpack.c.h.b16 %v1524
    %v2215 = vunpack.c.l.b16 %v1525
    %v2216 = vunpack.c.h.b16 %v1525
    %v2217 = vunpack.c.l.b16 %v1526
    %v2218 = vunpack.c.h.b16 %v1526
    %v2219 = vunpack.c.l.b16 %v1527
    %v2220 = vunpack.c.l.b16 %v1528
    %v2221 = vunpack.c.h.b16 %v1528
    %v2222 = vunpack.c.l.b16 %v1529
    %v2223 = vunpack.c.h.b16 %v1529
    %v2224 = vunpack.c.l.b16 %v1530
    %v2225 = vunpack.c.h.b16 %v1530
    %v2226 = vunpack.c.l.b16 %v1531
    %v2227 = vunpack.c.h.b16 %v1531
    %v2228 = vunpack.c.l.b16 %v1532
    %v2229 = vunpack.c.l.b16 %v1533
    %v2230 = vunpack.c.h.b16 %v1533
    %v2231 = vunpack.c.l.b16 %v1534
    %v2232 = vunpack.c.h.b16 %v1534
    %v2233 = vunpack.c.l.b16 %v1535
    %v2234 = vunpack.c.h.b16 %v1535
    %v2235 = vunpack.c.l.b16 %v1536
    %v2236 = vunpack.c.h.b16 %v1536
    %v2237 = vunpack.c.l.b16 %v1537
    %v2238 = vunpack.c.l.b16 %v1538
    %v2239 = vunpack.c.h.b16 %v1538
    %v2240 = vunpack.c.l.b16 %v1539
    %v2241 = vunpack.c.h.b16 %v1539
    %v2242 = vunpack.c.l.b16 %v1540
    %v2243 = vunpack.c.h.b16 %v1540
    %v2244 = vunpack.c.l.b16 %v1541
    %v2245 = vunpack.c.h.b16 %v1541
    %v2246 = vunpack.c.l.b16 %v1542
    %v2247 = vunpack.c.l.b16 %v1543
    %v2248 = vunpack.c.h.b16 %v1543
    %v2249 = vunpack.c.l.b16 %v1544
    %v2250 = vunpack.c.h.b16 %v1544
    %v2251 = vunpack.c.l.b16 %v1545
    %v2252 = vunpack.c.h.b16 %v1545
    %v2253 = vunpack.c.l.b16 %v1546
    %v2254 = vunpack.c.h.b16 %v1546
    %v2255 = vunpack.c.l.b16 %v1547
    %v2256 = vunpack.c.l.b16 %v1548
    %v2257 = vunpack.c.h.b16 %v1548
    %v2258 = vunpack.c.l.b16 %v1549
    %v2259 = vunpack.c.h.b16 %v1549
    %v2260 = vunpack.c.l.b16 %v1550
    %v2261 = vunpack.c.h.b16 %v1550
    %v2262 = vunpack.c.l.b16 %v1551
    %v2263 = vunpack.c.h.b16 %v1551
    %v2264 = vunpack.c.l.b16 %v1552
    %v2265 = vunpack.c.l.b16 %v1553
    %v2266 = vunpack.c.h.b16 %v1553
    %v2267 = vunpack.c.l.b16 %v1554
    %v2268 = vunpack.c.h.b16 %v1554
    %v2269 = vunpack.c.l.b16 %v1555
    %v2270 = vunpack.c.h.b16 %v1555
    %v2271 = vunpack.c.l.b16 %v1556
    %v2272 = vunpack.c.h.b16 %v1556
    %v2273 = vunpack.c.l.b16 %v1557
    %v2274 = vunpack.c.l.b16 %v1558
    %v2275 = vunpack.c.h.b16 %v1558
    %v2276 = vunpack.c.l.b16 %v1559
    %v2277 = vunpack.c.h.b16 %v1559
    %v2278 = vunpack.c.l.b16 %v1560
    %v2279 = vunpack.c.h.b16 %v1560
    %v2280 = vunpack.c.l.b16 %v1561
    %v2281 = vunpack.c.h.b16 %v1561
    %v2282 = vunpack.c.l.b16 %v1562
    %v2283 = vunpack.c.l.b16 %v1563
    %v2284 = vunpack.c.h.b16 %v1563
    %v2285 = vunpack.c.l.b16 %v1564
    %v2286 = vunpack.c.h.b16 %v1564
    %v2287 = vunpack.c.l.b16 %v1565
    %v2288 = vunpack.c.h.b16 %v1565
    %v2289 = vunpack.c.l.b16 %v1566
    %v2290 = vunpack.c.h.b16 %v1566
    %v2291 = vunpack.c.l.b16 %v1567
    %v2292 = vunpack.c.l.b16 %v1568
    %v2293 = vunpack.c.h.b16 %v1568
    %v2294 = vunpack.c.l.b16 %v1569
    %v2295 = vunpack.c.h.b16 %v1569
    %v2296 = vunpack.c.l.b16 %v1570
    %v2297 = vunpack.c.h.b16 %v1570
    %v2298 = vunpack.c.l.b16 %v1571
    %v2299 = vunpack.c.h.b16 %v1571
    %v2300 = vunpack.c.l.b16 %v1572
    %v2301 = vunpack.c.l.b16 %v1573
    %v2302 = vunpack.c.h.b16 %v1573
    %v2303 = vunpack.c.l.b16 %v1574
    %v2304 = vunpack.c.h.b16 %v1574
    %v2305 = vunpack.c.l.b16 %v1575
    %v2306 = vunpack.c.h.b16 %v1575
    %v2307 = vunpack.c.l.b16 %v1576
    %v2308 = vunpack.c.h.b16 %v1576
    %v2309 = vunpack.c.l.b16 %v1577
    %v2310 = vunpack.c.l.b16 %v1578
    %v2311 = vunpack.c.h.b16 %v1578
    %v2312 = vunpack.c.l.b16 %v1579
    %v2313 = vunpack.c.h.b16 %v1579
    %v2314 = vunpack.c.l.b16 %v1580
    %v2315 = vunpack.c.h.b16 %v1580
    %v2316 = vunpack.c.l.b16 %v1581
    %v2317 = vunpack.c.h.b16 %v1581
    %v2318 = vunpack.c.l.b16 %v1582
    %v2319 = vunpack.c.l.b16 %v1583
    %v2320 = vunpack.c.h.b16 %v1583
    %v2321 = vunpack.c.l.b16 %v1584
    %v2322 = vunpack.c.h.b16 %v1584
    %v2323 = vunpack.c.l.b16 %v1585
    %v2324 = vunpack.c.h.b16 %v1585
    %v2325 = vunpack.c.l.b16 %v1586
    %v2326 = vunpack.c.h.b16 %v1586
    %v2327 = vunpack.c.l.b16 %v1587
    %v2328 = vunpack.c.l.b16 %v1588
    %v2329 = vunpack.c.h.b16 %v1588
    %v2330 = vunpack.c.l.b16 %v1589
    %v2331 = vunpack.c.h.b16 %v1589
    %v2332 = vunpack.c.l.b16 %v1590
    %v2333 = vunpack.c.h.b16 %v1590
    %v2334 = vunpack.c.l.b16 %v1591
    %v2335 = vunpack.c.h.b16 %v1591
    %v2336 = vunpack.c.l.b16 %v1592
    %v2337 = vunpack.c.l.b16 %v1593
    %v2338 = vunpack.c.h.b16 %v1593
    %v2339 = vunpack.c.l.b16 %v1594
    %v2340 = vunpack.c.h.b16 %v1594
    %v2341 = vunpack.c.l.b16 %v1595
    %v2342 = vunpack.c.h.b16 %v1595
    %v2343 = vunpack.c.l.b16 %v1596
    %v2344 = vunpack.c.h.b16 %v1596
    %v2345 = vunpack.c.l.b16 %v1597
    %v2346 = vunpack.c.l.b16 %v1598
    %v2347 = vunpack.c.h.b16 %v1598
    %v2348 = vunpack.c.l.b16 %v1599
    %v2349 = vunpack.c.h.b16 %v1599
    %v2350 = vunpack.c.l.b16 %v1600
    %v2351 = vunpack.c.h.b16 %v1600
    %v2352 = vunpack.c.l.b16 %v1601
    %v2353 = vunpack.c.h.b16 %v1601
    %v2354 = vunpack.c.l.b16 %v1602
    %v2355 = vunpack.c.l.b16 %v1603
    %v2356 = vunpack.c.h.b16 %v1603
    %v2357 = vunpack.c.l.b16 %v1604
    %v2358 = vunpack.c.h.b16 %v1604
    %v2359 = vunpack.c.l.b16 %v1605
    %v2360 = vunpack.c.h.b16 %v1605
    %v2361 = vunpack.c.l.b16 %v1606
    %v2362 = vunpack.c.h.b16 %v1606
    %v2363 = vunpack.c.l.b16 %v1607
    %v2364 = vunpack.c.l.b16 %v1608
    %v2365 = vunpack.c.h.b16 %v1608
    %v2366 = vunpack.c.l.b16 %v1609
    %v2367 = vunpack.c.h.b16 %v1609
    %v2368 = vunpack.c.l.b16 %v1610
    %v2369 = vunpack.c.h.b16 %v1610
    %v2370 = vunpack.c.l.b16 %v1611
    %v2371 = vunpack.c.h.b16 %v1611
    %v2372 = vunpack.c.l.b16 %v1612
    %v2373 = vunpack.c.l.b16 %v1613
    %v2374 = vunpack.c.h.b16 %v1613
    %v2375 = vunpack.c.l.b16 %v1614
    %v2376 = vunpack.c.h.b16 %v1614
    %v2377 = vunpack.c.l.b16 %v1615
    %v2378 = vunpack.c.h.b16 %v1615
    %v2379 = vunpack.c.l.b16 %v1616
    %v2380 = vunpack.c.h.b16 %v1616
    %v2381 = vunpack.c.l.b16 %v1617
    %v2382 = vunpack.c.l.b16 %v1618
    %v2383 = vunpack.c.h.b16 %v1618
    %v2384 = vunpack.c.l.b16 %v1619
    %v2385 = vunpack.c.h.b16 %v1619
    %v2386 = vunpack.c.l.b16 %v1620
    %v2387 = vunpack.c.h.b16 %v1620
    %v2388 = vunpack.c.l.b16 %v1621
    %v2389 = vunpack.c.h.b16 %v1621
    %v2390 = vunpack.c.l.b16 %v1622
    %v2391 = vunpack.c.l.b16 %v1623
    %v2392 = vunpack.c.h.b16 %v1623
    %v2393 = vunpack.c.l.b16 %v1624
    %v2394 = vunpack.c.h.b16 %v1624
    %v2395 = vunpack.c.l.b16 %v1625
    %v2396 = vunpack.c.h.b16 %v1625
    %v2397 = vunpack.c.l.b16 %v1626
    %v2398 = vunpack.c.h.b16 %v1626
    %v2399 = vunpack.c.l.b16 %v1627
    %v2400 = vunpack.c.l.b16 %v1628
    %v2401 = vunpack.c.h.b16 %v1628
    %v2402 = vunpack.c.l.b16 %v1629
    %v2403 = vunpack.c.h.b16 %v1629
    %v2404 = vunpack.c.l.b16 %v1630
    %v2405 = vunpack.c.h.b16 %v1630
    %v2406 = vunpack.c.l.b16 %v1631
    %v2407 = vunpack.c.h.b16 %v1631
    %v2408 = vunpack.c.l.b16 %v1632
    %v2409 = vunpack.c.l.b16 %v1633
    %v2410 = vunpack.c.h.b16 %v1633
    %v2411 = vunpack.c.l.b16 %v1634
    %v2412 = vunpack.c.h.b16 %v1634
    %v2413 = vunpack.c.l.b16 %v1635
    %v2414 = vunpack.c.h.b16 %v1635
    %v2415 = vunpack.c.l.b16 %v1636
    %v2416 = vunpack.c.h.b16 %v1636
    %v2417 = vunpack.c.l.b16 %v1637
    %v2418 = vunpack.c.l.b16 %v1638
    %v2419 = vunpack.c.h.b16 %v1638
    %v2420 = vunpack.c.l.b16 %v1639
    %v2421 = vunpack.c.h.b16 %v1639
    %v2422 = vunpack.c.l.b16 %v1640
    %v2423 = vunpack.c.h.b16 %v1640
    %v2424 = vunpack.c.l.b16 %v1641
    %v2425 = vunpack.c.h.b16 %v1641
    %v2426 = vunpack.c.l.b16 %v1642
    %v2427 = vunpack.c.l.b16 %v1643
    %v2428 = vunpack.c.h.b16 %v1643
    %v2429 = vunpack.c.l.b16 %v1644
    %v2430 = vunpack.c.h.b16 %v1644
    %v2431 = vunpack.c.l.b16 %v1645
    %v2432 = vunpack.c.h.b16 %v1645
    %v2433 = vunpack.c.l.b16 %v1646
    %v2434 = vunpack.c.h.b16 %v1646
    %v2435 = vunpack.c.l.b16 %v1647
    %v2436 = vunpack.c.l.b16 %v1648
    %v2437 = vunpack.c.h.b16 %v1648
    %v2438 = vunpack.c.l.b16 %v1649
    %v2439 = vunpack.c.h.b16 %v1649
    %v2440 = vunpack.c.l.b16 %v1650
    %v2441 = vunpack.c.h.b16 %v1650
    %v2442 = vunpack.c.l.b16 %v1651
    %v2443 = vunpack.c.h.b16 %v1651
    %v2444 = vunpack.c.l.b16 %v1652
    %v2445 = vunpack.c.l.b16 %v1653
    %v2446 = vunpack.c.h.b16 %v1653
    %v2447 = vunpack.c.l.b16 %v1654
    %v2448 = vunpack.c.h.b16 %v1654
    %v2449 = vunpack.c.l.b16 %v1655
    %v2450 = vunpack.c.h.b16 %v1655
    %v2451 = vunpack.c.l.b16 %v1656
    %v2452 = vunpack.c.h.b16 %v1656
    %v2453 = vunpack.c.l.b16 %v1657
    %v2454 = vunpack.c.l.b16 %v1658
    %v2455 = vunpack.c.h.b16 %v1658
    %v2456 = vunpack.c.l.b16 %v1659
    %v2457 = vunpack.c.h.b16 %v1659
    %v2458 = vunpack.c.l.b16 %v1660
    %v2459 = vunpack.c.h.b16 %v1660
    %v2460 = vunpack.c.l.b16 %v1661
    %v2461 = vunpack.c.h.b16 %v1661
    %v2462 = vunpack.c.l.b16 %v1662
    %v2463 = vunpack.c.l.b16 %v1663
    %v2464 = vunpack.c.h.b16 %v1663
    %v2465 = vunpack.c.l.b16 %v1664
    %v2466 = vunpack.c.h.b16 %v1664
    %v2467 = vunpack.c.l.b16 %v1665
    %v2468 = vunpack.c.h.b16 %v1665
    %v2469 = vunpack.c.l.b16 %v1666
    %v2470 = vunpack.c.h.b16 %v1666
    %v2471 = vunpack.c.l.b16 %v1667
    %v2472 = vunpack.c.l.b16 %v1668
    %v2473 = vunpack.c.h.b16 %v1668
    %v2474 = vunpack.c.l.b16 %v1669
    %v2475 = vunpack.c.h.b16 %v1669
    %v2476 = vunpack.c.l.b16 %v1670
    %v2477 = vunpack.c.h.b16 %v1670
    %v2478 = vunpack.c.l.b16 %v1671
    %v2479 = vunpack.c.h.b16 %v1671
    %v2480 = vunpack.c.l.b16 %v1672
    %v2481 = vunpack.c.l.b16 %v1673
    %v2482 = vunpack.c.h.b16 %v1673
    %v2483 = vunpack.c.l.b16 %v1674
    %v2484 = vunpack.c.h.b16 %v1674
    %v2485 = vunpack.c.l.b16 %v1675
    %v2486 = vunpack.c.h.b16 %v1675
    %v2487 = vunpack.c.l.b16 %v1676
    %v2488 = vunpack.c.h.b16 %v1676
    %v2489 = vunpack.c.l.b16 %v1677
    %v2490 = vunpack.c.l.b16 %v1678
    %v2491 = vunpack.c.h.b16 %v1678
    %v2492 = vunpack.c.l.b16 %v1679
    %v2493 = vunpack.c.h.b16 %v1679
    %v2494 = vunpack.c.l.b16 %v1680
    %v2495 = vunpack.c.h.b16 %v1680
    %v2496 = vunpack.c.l.b16 %v1681
    %v2497 = vunpack.c.h.b16 %v1681
    %v2498 = vunpack.c.l.b16 %v1682
    %v2499 = vunpack.c.l.b16 %v1683
    %v2500 = vunpack.c.h.b16 %v1683
    %v2501 = vunpack.c.l.b16 %v1684
    %v2502 = vunpack.c.h.b16 %v1684
    %v2503 = vunpack.c.l.b16 %v1685
    %v2504 = vunpack.c.h.b16 %v1685
    %v2505 = vunpack.c.l.b16 %v1686
    %v2506 = vunpack.c.h.b16 %v1686
    %v2507 = vunpack.c.l.b16 %v1687
    %v2508 = vunpack.c.l.b16 %v1688
    %v2509 = vunpack.c.h.b16 %v1688
    %v2510 = vunpack.c.l.b16 %v1689
    %v2511 = vunpack.c.h.b16 %v1689
    %v2512 = vunpack.c.l.b16 %v1690
    %v2513 = vunpack.c.h.b16 %v1690
    %v2514 = vunpack.c.l.b16 %v1691
    %v2515 = vunpack.c.h.b16 %v1691
    %v2516 = vunpack.c.l.b16 %v1692
    %v2517 = vunpack.c.l.b16 %v1693
    %v2518 = vunpack.c.h.b16 %v1693
    %v2519 = vunpack.c.l.b16 %v1694
    %v2520 = vunpack.c.h.b16 %v1694
    %v2521 = vunpack.c.l.b16 %v1695
    %v2522 = vunpack.c.h.b16 %v1695
    %v2523 = vunpack.c.l.b16 %v1696
    %v2524 = vunpack.c.h.b16 %v1696
    %v2525 = vunpack.c.l.b16 %v1697
    %v2526 = vunpack.c.l.b16 %v1698
    %v2527 = vunpack.c.h.b16 %v1698
    %v2528 = vunpack.c.l.b16 %v1699
    %v2529 = vunpack.c.h.b16 %v1699
    %v2530 = vunpack.c.l.b16 %v1700
    %v2531 = vunpack.c.h.b16 %v1700
    %v2532 = vunpack.c.l.b16 %v1701
    %v2533 = vunpack.c.h.b16 %v1701
    %v2534 = vunpack.c.l.b16 %v1702
    %v2535 = vunpack.c.l.b16 %v1703
    %v2536 = vunpack.c.h.b16 %v1703
    %v2537 = vunpack.c.l.b16 %v1704
    %v2538 = vunpack.c.h.b16 %v1704
    %v2539 = vunpack.c.l.b16 %v1705
    %v2540 = vunpack.c.h.b16 %v1705
    %v2541 = vunpack.c.l.b16 %v1706
    %v2542 = vunpack.c.h.b16 %v1706
    %v2543 = vunpack.c.l.b16 %v1707
    %v2544 = vunpack.c.l.b16 %v1708
    %v2545 = vunpack.c.h.b16 %v1708
    %v2546 = vunpack.c.l.b16 %v1709
    %v2547 = vunpack.c.h.b16 %v1709
    %v2548 = vunpack.c.l.b16 %v1710
    %v2549 = vunpack.c.h.b16 %v1710
    %v2550 = vunpack.c.l.b16 %v1711
    %v2551 = vunpack.c.h.b16 %v1711
    %v2552 = vunpack.c.l.b16 %v1712
    %v2553 = vunpack.c.l.b16 %v1713
    %v2554 = vunpack.c.h.b16 %v1713
    %v2555 = vunpack.c.l.b16 %v1714
    %v2556 = vunpack.c.h.b16 %v1714
    %v2557 = vunpack.c.l.b16 %v1715
    %v2558 = vunpack.c.h.b16 %v1715
    %v2559 = vunpack.c.l.b16 %v1716
    %v2560 = vunpack.c.h.b16 %v1716
    %v2561 = vunpack.c.l.b16 %v1717
    %v2562 = vunpack.c.l.b16 %v1718
    %v2563 = vunpack.c.h.b16 %v1718
    %v2564 = vunpack.c.l.b16 %v1719
    %v2565 = vunpack.c.h.b16 %v1719
    %v2566 = vunpack.c.l.b16 %v1720
    %v2567 = vunpack.c.h.b16 %v1720
    %v2568 = vunpack.c.l.b16 %v1721
    %v2569 = vunpack.c.h.b16 %v1721
    %v2570 = vunpack.c.l.b16 %v1722
    %v2571 = vunpack.c.l.b16 %v1723
    %v2572 = vunpack.c.h.b16 %v1723
    %v2573 = vunpack.c.l.b16 %v1724
    %v2574 = vunpack.c.h.b16 %v1724
    %v2575 = vunpack.c.l.b16 %v1725
    %v2576 = vunpack.c.h.b16 %v1725
    %v2577 = vunpack.c.l.b16 %v1726
    %v2578 = vunpack.c.h.b16 %v1726
    %v2579 = vunpack.c.l.b16 %v1727
    %v2580 = vunpack.c.l.b16 %v1728
    %v2581 = vunpack.c.h.b16 %v1728
    %v2582 = vunpack.c.l.b16 %v1729
    %v2583 = vunpack.c.h.b16 %v1729
    %v2584 = vunpack.c.l.b16 %v1730
    %v2585 = vunpack.c.h.b16 %v1730
    %v2586 = vunpack.c.l.b16 %v1731
    %v2587 = vunpack.c.h.b16 %v1731
    %v2588 = vunpack.c.l.b16 %v1732
    %v2589 = vunpack.c.l.b16 %v1733
    %v2590 = vunpack.c.h.b16 %v1733
    %v2591 = vunpack.c.l.b16 %v1734
    %v2592 = vunpack.c.h.b16 %v1734
    %v2593 = vunpack.c.l.b16 %v1735
    %v2594 = vunpack.c.h.b16 %v1735
    %v2595 = vunpack.c.l.b16 %v1736
    %v2596 = vunpack.c.h.b16 %v1736
    %v2597 = vunpack.c.l.b16 %v1737
    %v2598 = vunpack.c.l.b16 %v1738
    %v2599 = vunpack.c.h.b16 %v1738
    %v2600 = vunpack.c.l.b16 %v1739
    %v2601 = vunpack.c.h.b16 %v1739
    %v2602 = vunpack.c.l.b16 %v1740
    %v2603 = vunpack.c.h.b16 %v1740
    %v2604 = vunpack.c.l.b16 %v1741
    %v2605 = vunpack.c.h.b16 %v1741
    %v2606 = vunpack.c.l.b16 %v1742
    %v2607 = vunpack.c.l.b16 %v1743
    %v2608 = vunpack.c.h.b16 %v1743
    %v2609 = vunpack.c.l.b16 %v1744
    %v2610 = vunpack.c.h.b16 %v1744
    %v2611 = vunpack.c.l.b16 %v1745
    %v2612 = vunpack.c.h.b16 %v1745
    %v2613 = vunpack.c.l.b16 %v1746
    %v2614 = vunpack.c.h.b16 %v1746
    %v2615 = vunpack.c.l.b16 %v1747
    %v2616 = vunpack.c.l.b16 %v1748
    %v2617 = vunpack.c.h.b16 %v1748
    %v2618 = vunpack.c.l.b16 %v1749
    %v2619 = vunpack.c.h.b16 %v1749
    %v2620 = vunpack.c.l.b16 %v1750
    %v2621 = vunpack.c.h.b16 %v1750
    %v2622 = vunpack.c.l.b16 %v1751
    %v2623 = vunpack.c.h.b16 %v1751
    %v2624 = vunpack.c.l.b16 %v1752
    %v2625 = vunpack.c.l.b16 %v1753
    %v2626 = vunpack.c.h.b16 %v1753
    %v2627 = vunpack.c.l.b16 %v1754
    %v2628 = vunpack.c.h.b16 %v1754
    %v2629 = vunpack.c.l.b16 %v1755
    %v2630 = vunpack.c.h.b16 %v1755
    %v2631 = vunpack.c.l.b16 %v1756
    %v2632 = vunpack.c.h.b16 %v1756
    %v2633 = vunpack.c.l.b16 %v1757
    %v2634 = vunpack.c.l.b16 %v1758
    %v2635 = vunpack.c.h.b16 %v1758
    %v2636 = vunpack.c.l.b16 %v1759
    %v2637 = vunpack.c.h.b16 %v1759
    %v2638 = vunpack.c.l.b16 %v1760
    %v2639 = vunpack.c.h.b16 %v1760
    %v2640 = vunpack.c.l.b16 %v1761
    %v2641 = vunpack.c.h.b16 %v1761
    %v2642 = vunpack.c.l.b16 %v1762
    %v2643 = vunpack.c.l.b16 %v1763
    %v2644 = vunpack.c.h.b16 %v1763
    %v2645 = vunpack.c.l.b16 %v1764
    %v2646 = vunpack.c.h.b16 %v1764
    %v2647 = vunpack.c.l.b16 %v1765
    %v2648 = vunpack.c.h.b16 %v1765
    %v2649 = vunpack.c.l.b16 %v1766
    %v2650 = vunpack.c.h.b16 %v1766
    %v2651 = vunpack.c.l.b16 %v1767
    %v2652 = vunpack.c.l.b16 %v1768
    %v2653 = vunpack.c.h.b16 %v1768
    %v2654 = vunpack.c.l.b16 %v1769
    %v2655 = vunpack.c.h.b16 %v1769
    %v2656 = vunpack.c.l.b16 %v1770
    %v2657 = vunpack.c.h.b16 %v1770
    %v2658 = vunpack.c.l.b16 %v1771
    %v2659 = vunpack.c.h.b16 %v1771
    %v2660 = vunpack.c.l.b16 %v1772
    %v2661 = vunpack.c.l.b16 %v1773
    %v2662 = vunpack.c.h.b16 %v1773
    %v2663 = vunpack.c.l.b16 %v1774
    %v2664 = vunpack.c.h.b16 %v1774
    %v2665 = vunpack.c.l.b16 %v1775
    %v2666 = vunpack.c.h.b16 %v1775
    %v2667 = vunpack.c.l.b16 %v1776
    %v2668 = vunpack.c.h.b16 %v1776
    %v2669 = vunpack.c.l.b16 %v1777
    %v2670 = vunpack.c.l.b16 %v1778
    %v2671 = vunpack.c.h.b16 %v1778
    %v2672 = vunpack.c.l.b16 %v1779
    %v2673 = vunpack.c.h.b16 %v1779
    %v2674 = vunpack.c.l.b16 %v1780
    %v2675 = vunpack.c.h.b16 %v1780
    %v2676 = vunpack.c.l.b16 %v1781
    %v2677 = vunpack.c.h.b16 %v1781
    %v2678 = vunpack.c.l.b16 %v1782
    %v2679 = vpack.c.b16 %v2112, %v2103
    %v2680 = vpack.c.b16 %v2113, %v2104
    %v2681 = vpack.c.b16 %v2114, %v2105
    %v2682 = vpack.c.b16 %v2115, %v2106
    %v2683 = vpack.c.b16 %v2116, %v2107
    %v2684 = vpack.c.b16 %v2117, %v2108
    %v2685 = vpack.c.b16 %v2118, %v2109
    %v2686 = vpack.c.b16 %v2119, %v2110
    %v2687 = vpack.c.b16 %v2120, %v2111
    %v2688 = vpack.c.b16 %v2130, %v2121
    %v2689 = vpack.c.b16 %v2131, %v2122
    %v2690 = vpack.c.b16 %v2132, %v2123
    %v2691 = vpack.c.b16 %v2133, %v2124
    %v2692 = vpack.c.b16 %v2134, %v2125
    %v2693 = vpack.c.b16 %v2135, %v2126
    %v2694 = vpack.c.b16 %v2136, %v2127
    %v2695 = vpack.c.b16 %v2137, %v2128
    %v2696 = vpack.c.b16 %v2138, %v2129
    %v2697 = vpack.c.b16 %v2148, %v2139
    %v2698 = vpack.c.b16 %v2149, %v2140
    %v2699 = vpack.c.b16 %v2150, %v2141
    %v2700 = vpack.c.b16 %v2151, %v2142
    %v2701 = vpack.c.b16 %v2152, %v2143
    %v2702 = vpack.c.b16 %v2153, %v2144
    %v2703 = vpack.c.b16 %v2154, %v2145
    %v2704 = vpack.c.b16 %v2155, %v2146
    %v2705 = vpack.c.b16 %v2156, %v2147
    %v2706 = vpack.c.b16 %v2166, %v2157
    %v2707 = vpack.c.b16 %v2167, %v2158
    %v2708 = vpack.c.b16 %v2168, %v2159
    %v2709 = vpack.c.b16 %v2169, %v2160
    %v2710 = vpack.c.b16 %v2170, %v2161
    %v2711 = vpack.c.b16 %v2171, %v2162
    %v2712 = vpack.c.b16 %v2172, %v2163
    %v2713 = vpack.c.b16 %v2173, %v2164
    %v2714 = vpack.c.b16 %v2174, %v2165
    %v2715 = vpack.c.b16 %v2184, %v2175
    %v2716 = vpack.c.b16 %v2185, %v2176
    %v2717 = vpack.c.b16 %v2186, %v2177
    %v2718 = vpack.c.b16 %v2187, %v2178
    %v2719 = vpack.c.b16 %v2188, %v2179
    %v2720 = vpack.c.b16 %v2189, %v2180
    %v2721 = vpack.c.b16 %v2190, %v2181
    %v2722 = vpack.c.b16 %v2191, %v2182
    %v2723 = vpack.c.b16 %v2192, %v2183
    %v2724 = vpack.c.b16 %v2202, %v2193
    %v2725 = vpack.c.b16 %v2203, %v2194
    %v2726 = vpack.c.b16 %v2204, %v2195
    %v2727 = vpack.c.b16 %v2205, %v2196
    %v2728 = vpack.c.b16 %v2206, %v2197
    %v2729 = vpack.c.b16 %v2207, %v2198
    %v2730 = vpack.c.b16 %v2208, %v2199
    %v2731 = vpack.c.b16 %v2209, %v2200
    %v2732 = vpack.c.b16 %v2210, %v2201
    %v2733 = vpack.c.b16 %v2220, %v2211
    %v2734 = vpack.c.b16 %v2221, %v2212
    %v2735 = vpack.c.b16 %v2222, %v2213
    %v2736 = vpack.c.b16 %v2223, %v2214
    %v2737 = vpack.c.b16 %v2224, %v2215
    %v2738 = vpack.c.b16 %v2225, %v2216
    %v2739 = vpack.c.b16 %v2226, %v2217
    %v2740 = vpack.c.b16 %v2227, %v2218
    %v2741 = vpack.c.b16 %v2228, %v2219
    %v2742 = vpack.c.b16 %v2238, %v2229
    %v2743 = vpack.c.b16 %v2239, %v2230
    %v2744 = vpack.c.b16 %v2240, %v2231
    %v2745 = vpack.c.b16 %v2241, %v2232
    %v2746 = vpack.c.b16 %v2242, %v2233
    %v2747 = vpack.c.b16 %v2243, %v2234
    %v2748 = vpack.c.b16 %v2244, %v2235
    %v2749 = vpack.c.b16 %v2245, %v2236
    %v2750 = vpack.c.b16 %v2246, %v2237
    %v2751 = vpack.c.b16 %v2256, %v2247
    %v2752 = vpack.c.b16 %v2257, %v2248
    %v2753 = vpack.c.b16 %v2258, %v2249
    %v2754 = vpack.c.b16 %v2259, %v2250
    %v2755 = vpack.c.b16 %v2260, %v2251
    %v2756 = vpack.c.b16 %v2261, %v2252
    %v2757 = vpack.c.b16 %v2262, %v2253
    %v2758 = vpack.c.b16 %v2263, %v2254
    %v2759 = vpack.c.b16 %v2264, %v2255
    %v2760 = vpack.c.b16 %v2274, %v2265
    %v2761 = vpack.c.b16 %v2275, %v2266
    %v2762 = vpack.c.b16 %v2276, %v2267
    %v2763 = vpack.c.b16 %v2277, %v2268
    %v2764 = vpack.c.b16 %v2278, %v2269
    %v2765 = vpack.c.b16 %v2279, %v2270
    %v2766 = vpack.c.b16 %v2280, %v2271
    %v2767 = vpack.c.b16 %v2281, %v2272
    %v2768 = vpack.c.b16 %v2282, %v2273
    %v2769 = vpack.c.b16 %v2292, %v2283
    %v2770 = vpack.c.b16 %v2293, %v2284
    %v2771 = vpack.c.b16 %v2294, %v2285
    %v2772 = vpack.c.b16 %v2295, %v2286
    %v2773 = vpack.c.b16 %v2296, %v2287
    %v2774 = vpack.c.b16 %v2297, %v2288
    %v2775 = vpack.c.b16 %v2298, %v2289
    %v2776 = vpack.c.b16 %v2299, %v2290
    %v2777 = vpack.c.b16 %v2300, %v2291
    %v2778 = vpack.c.b16 %v2310, %v2301
    %v2779 = vpack.c.b16 %v2311, %v2302
    %v2780 = vpack.c.b16 %v2312, %v2303
    %v2781 = vpack.c.b16 %v2313, %v2304
    %v2782 = vpack.c.b16 %v2314, %v2305
    %v2783 = vpack.c.b16 %v2315, %v2306
    %v2784 = vpack.c.b16 %v2316, %v2307
    %v2785 = vpack.c.b16 %v2317, %v2308
    %v2786 = vpack.c.b16 %v2318, %v2309
    %v2787 = vpack.c.b16 %v2328, %v2319
    %v2788 = vpack.c.b16 %v2329, %v2320
    %v2789 = vpack.c.b16 %v2330, %v2321
    %v2790 = vpack.c.b16 %v2331, %v2322
    %v2791 = vpack.c.b16 %v2332, %v2323
    %v2792 = vpack.c.b16 %v2333, %v2324
    %v2793 = vpack.c.b16 %v2334, %v2325
    %v2794 = vpack.c.b16 %v2335, %v2326
    %v2795 = vpack.c.b16 %v2336, %v2327
    %v2796 = vpack.c.b16 %v2346, %v2337
    %v2797 = vpack.c.b16 %v2347, %v2338
    %v2798 = vpack.c.b16 %v2348, %v2339
    %v2799 = vpack.c.b16 %v2349, %v2340
    %v2800 = vpack.c.b16 %v2350, %v2341
    %v2801 = vpack.c.b16 %v2351, %v2342
    %v2802 = vpack.c.b16 %v2352, %v2343
    %v2803 = vpack.c.b16 %v2353, %v2344
    %v2804 = vpack.c.b16 %v2354, %v2345
    %v2805 = vpack.c.b16 %v2364, %v2355
    %v2806 = vpack.c.b16 %v2365, %v2356
    %v2807 = vpack.c.b16 %v2366, %v2357
    %v2808 = vpack.c.b16 %v2367, %v2358
    %v2809 = vpack.c.b16 %v2368, %v2359
    %v2810 = vpack.c.b16 %v2369, %v2360
    %v2811 = vpack.c.b16 %v2370, %v2361
    %v2812 = vpack.c.b16 %v2371, %v2362
    %v2813 = vpack.c.b16 %v2372, %v2363
    %v2814 = vpack.c.b16 %v2382, %v2373
    %v2815 = vpack.c.b16 %v2383, %v2374
    %v2816 = vpack.c.b16 %v2384, %v2375
    %v2817 = vpack.c.b16 %v2385, %v2376
    %v2818 = vpack.c.b16 %v2386, %v2377
    %v2819 = vpack.c.b16 %v2387, %v2378
    %v2820 = vpack.c.b16 %v2388, %v2379
    %v2821 = vpack.c.b16 %v2389, %v2380
    %v2822 = vpack.c.b16 %v2390, %v2381
    %v2823 = vpack.c.b16 %v2400, %v2391
    %v2824 = vpack.c.b16 %v2401, %v2392
    %v2825 = vpack.c.b16 %v2402, %v2393
    %v2826 = vpack.c.b16 %v2403, %v2394
    %v2827 = vpack.c.b16 %v2404, %v2395
    %v2828 = vpack.c.b16 %v2405, %v2396
    %v2829 = vpack.c.b16 %v2406, %v2397
    %v2830 = vpack.c.b16 %v2407, %v2398
    %v2831 = vpack.c.b16 %v2408, %v2399
    %v2832 = vpack.c.b16 %v2418, %v2409
    %v2833 = vpack.c.b16 %v2419, %v2410
    %v2834 = vpack.c.b16 %v2420, %v2411
    %v2835 = vpack.c.b16 %v2421, %v2412
    %v2836 = vpack.c.b16 %v2422, %v2413
    %v2837 = vpack.c.b16 %v2423, %v2414
    %v2838 = vpack.c.b16 %v2424, %v2415
    %v2839 = vpack.c.b16 %v2425, %v2416
    %v2840 = vpack.c.b16 %v2426, %v2417
    %v2841 = vpack.c.b16 %v2436, %v2427
    %v2842 = vpack.c.b16 %v2437, %v2428
    %v2843 = vpack.c.b16 %v2438, %v2429
    %v2844 = vpack.c.b16 %v2439, %v2430
    %v2845 = vpack.c.b16 %v2440, %v2431
    %v2846 = vpack.c.b16 %v2441, %v2432
    %v2847 = vpack.c.b16 %v2442, %v2433
    %v2848 = vpack.c.b16 %v2443, %v2434
    %v2849 = vpack.c.b16 %v2444, %v2435
    %v2850 = vpack.c.b16 %v2454, %v2445
    %v2851 = vpack.c.b16 %v2455, %v2446
    %v2852 = vpack.c.b16 %v2456, %v2447
    %v2853 = vpack.c.b16 %v2457, %v2448
    %v2854 = vpack.c.b16 %v2458, %v2449
    %v2855 = vpack.c.b16 %v2459, %v2450
    %v2856 = vpack.c.b16 %v2460, %v2451
    %v2857 = vpack.c.b16 %v2461, %v2452
    %v2858 = vpack.c.b16 %v2462, %v2453
    %v2859 = vpack.c.b16 %v2472, %v2463
    %v2860 = vpack.c.b16 %v2473, %v2464
    %v2861 = vpack.c.b16 %v2474, %v2465
    %v2862 = vpack.c.b16 %v2475, %v2466
    %v2863 = vpack.c.b16 %v2476, %v2467
    %v2864 = vpack.c.b16 %v2477, %v2468
    %v2865 = vpack.c.b16 %v2478, %v2469
    %v2866 = vpack.c.b16 %v2479, %v2470
    %v2867 = vpack.c.b16 %v2480, %v2471
    %v2868 = vpack.c.b16 %v2490, %v2481
    %v2869 = vpack.c.b16 %v2491, %v2482
    %v2870 = vpack.c.b16 %v2492, %v2483
    %v2871 = vpack.c.b16 %v2493, %v2484
    %v2872 = vpack.c.b16 %v2494, %v2485
    %v2873 = vpack.c.b16 %v2495, %v2486
    %v2874 = vpack.c.b16 %v2496, %v2487
    %v2875 = vpack.c.b16 %v2497, %v2488
    %v2876 = vpack.c.b16 %v2498, %v2489
    %v2877 = vpack.c.b16 %v2508, %v2499
    %v2878 = vpack.c.b16 %v2509, %v2500
    %v2879 = vpack.c.b16 %v2510, %v2501
    %v2880 = vpack.c.b16 %v2511, %v2502
    %v2881 = vpack.c.b16 %v2512, %v2503
    %v2882 = vpack.c.b16 %v2513, %v2504
    %v2883 = vpack.c.b16 %v2514, %v2505
    %v2884 = vpack.c.b16 %v2515, %v2506
    %v2885 = vpack.c.b16 %v2516, %v2507
    %v2886 = vpack.c.b16 %v2526, %v2517
    %v2887 = vpack.c.b16 %v2527, %v2518
    %v2888 = vpack.c.b16 %v2528, %v2519
    %v2889 = vpack.c.b16 %v2529, %v2520
    %v2890 = vpack.c.b16 %v2530, %v2521
    %v2891 = vpack.c.b16 %v2531, %v2522
    %v2892 = vpack.c.b16 %v2532, %v2523
    %v2893 = vpack.c.b16 %v2533, %v2524
    %v2894 = vpack.c.b16 %v2534, %v2525
    %v2895 = vpack.c.b16 %v2544, %v2535
    %v2896 = vpack.c.b16 %v2545, %v2536
    %v2897 = vpack.c.b16 %v2546, %v2537
    %v2898 = vpack.c.b16 %v2547, %v2538
    %v2899 = vpack.c.b16 %v2548, %v2539
    %v2900 = vpack.c.b16 %v2549, %v2540
    %v2901 = vpack.c.b16 %v2550, %v2541
    %v2902 = vpack.c.b16 %v2551, %v2542
    %v2903 = vpack.c.b16 %v2552, %v2543
    %v2904 = vpack.c.b16 %v2562, %v2553
    %v2905 = vpack.c.b16 %v2563, %v2554
    %v2906 = vpack.c.b16 %v2564, %v2555
    %v2907 = vpack.c.b16 %v2565, %v2556
    %v2908 = vpack.c.b16 %v2566, %v2557
    %v2909 = vpack.c.b16 %v2567, %v2558
    %v2910 = vpack.c.b16 %v2568, %v2559
    %v2911 = vpack.c.b16 %v2569, %v2560
    %v2912 = vpack.c.b16 %v2570, %v2561
    %v2913 = vpack.c.b16 %v2580, %v2571
    %v2914 = vpack.c.b16 %v2581, %v2572
    %v2915 = vpack.c.b16 %v2582, %v2573
    %v2916 = vpack.c.b16 %v2583, %v2574
    %v2917 = vpack.c.b16 %v2584, %v2575
    %v2918 = vpack.c.b16 %v2585, %v2576
    %v2919 = vpack.c.b16 %v2586, %v2577
    %v2920 = vpack.c.b16 %v2587, %v2578
    %v2921 = vpack.c.b16 %v2588, %v2579
    %v2922 = vpack.c.b16 %v2598, %v2589
    %v2923 = vpack.c.b16 %v2599, %v2590
    %v2924 = vpack.c.b16 %v2600, %v2591
    %v2925 = vpack.c.b16 %v2601, %v2592
    %v2926 = vpack.c.b16 %v2602, %v2593
    %v2927 = vpack.c.b16 %v2603, %v2594
    %v2928 = vpack.c.b16 %v2604, %v2595
    %v2929 = vpack.c.b16 %v2605, %v2596
    %v2930 = vpack.c.b16 %v2606, %v2597
    %v2931 = vpack.c.b16 %v2616, %v2607
    %v2932 = vpack.c.b16 %v2617, %v2608
    %v2933 = vpack.c.b16 %v2618, %v2609
    %v2934 = vpack.c.b16 %v2619, %v2610
    %v2935 = vpack.c.b16 %v2620, %v2611
    %v2936 = vpack.c.b16 %v2621, %v2612
    %v2937 = vpack.c.b16 %v2622, %v2613
    %v2938 = vpack.c.b16 %v2623, %v2614
    %v2939 = vpack.c.b16 %v2624, %v2615
    %v2940 = vpack.c.b16 %v2634, %v2625
    %v2941 = vpack.c.b16 %v2635, %v2626
    %v2942 = vpack.c.b16 %v2636, %v2627
    %v2943 = vpack.c.b16 %v2637, %v2628
    %v2944 = vpack.c.b16 %v2638, %v2629
    %v2945 = vpack.c.b16 %v2639, %v2630
    %v2946 = vpack.c.b16 %v2640, %v2631
    %v2947 = vpack.c.b16 %v2641, %v2632
    %v2948 = vpack.c.b16 %v2642, %v2633
    %v2949 = vpack.c.b16 %v2652, %v2643
    %v2950 = vpack.c.b16 %v2653, %v2644
    %v2951 = vpack.c.b16 %v2654, %v2645
    %v2952 = vpack.c.b16 %v2655, %v2646
    %v2953 = vpack.c.b16 %v2656, %v2647
    %v2954 = vpack.c.b16 %v2657, %v2648
    %v2955 = vpack.c.b16 %v2658, %v2649
    %v2956 = vpack.c.b16 %v2659, %v2650
    %v2957 = vpack.c.b16 %v2660, %v2651
    %v2958 = vpack.c.b16 %v2670, %v2661
    %v2959 = vpack.c.b16 %v2671, %v2662
    %v2960 = vpack.c.b16 %v2672, %v2663
    %v2961 = vpack.c.b16 %v2673, %v2664
    %v2962 = vpack.c.b16 %v2674, %v2665
    %v2963 = vpack.c.b16 %v2675, %v2666
    %v2964 = vpack.c.b16 %v2676, %v2667
    %v2965 = vpack.c.b16 %v2677, %v2668
    %v2966 = vpack.c.b16 %v2678, %v2669
    %3255 = vmatpush.bf16.msra.mxu0 %v2742
    %3256 = vmatpush.bf16.msra.mxu0 %v2733
    %3257 = vmatpush.bf16.msra.mxu0 %v2724
    %3258 = vmatpush.bf16.msra.mxu0 %v2715
    %3259 = vmatpush.bf16.msra.mxu0 %v2706
    %3260 = vmatpush.bf16.msra.mxu0 %v2697
    %3261 = vmatpush.bf16.msra.mxu0 %v2688
    %3262 = vmatpush.bf16.msra.mxu0 %v2679
    %3263 = vmatmul.bf16.gmra.mxu0 %v1459
    %v3264 = vpop.f32.mrf.mxu0
    %v3265 = vadd.f32 0.0, %v3264
    %v3266 = vpop.f32.mrf.mxu0
    %3267 = vdwg.mxu0
    %3268 = vmatpush.bf16.msra.mxu0 %v2814
    %3269 = vmatpush.bf16.msra.mxu0 %v2805
    %3270 = vmatpush.bf16.msra.mxu0 %v2796
    %3271 = vmatpush.bf16.msra.mxu0 %v2787
    %3272 = vmatpush.bf16.msra.mxu0 %v2778
    %3273 = vmatpush.bf16.msra.mxu0 %v2769
    %3274 = vmatpush.bf16.msra.mxu0 %v2760
    %3275 = vmatpush.bf16.msra.mxu0 %v2751
    %3276 = vmatmul.bf16.gmra.mxu0 %v1460
    %v3277 = vpop.f32.mrf.mxu0
    %v3278 = vadd.f32 %v3265, %v3277
    %v3279 = vpop.f32.mrf.mxu0
    %3280 = vdwg.mxu0
    %3281 = vmatpush.bf16.msra.mxu0 %v2886
    %3282 = vmatpush.bf16.msra.mxu0 %v2877
    %3283 = vmatpush.bf16.msra.mxu0 %v2868
    %3284 = vmatpush.bf16.msra.mxu0 %v2859
    %3285 = vmatpush.bf16.msra.mxu0 %v2850
    %3286 = vmatpush.bf16.msra.mxu0 %v2841
    %3287 = vmatpush.bf16.msra.mxu0 %v2832
    %3288 = vmatpush.bf16.msra.mxu0 %v2823
    %3289 = vmatmul.bf16.gmra.mxu0 %v1461
    %v3290 = vpop.f32.mrf.mxu0
    %v3291 = vadd.f32 %v3278, %v3290
    %v3292 = vpop.f32.mrf.mxu0
    %3293 = vdwg.mxu0
    %3294 = vmatpush.bf16.msra.mxu0 %v2958
    %3295 = vmatpush.bf16.msra.mxu0 %v2949
    %3296 = vmatpush.bf16.msra.mxu0 %v2940
    %3297 = vmatpush.bf16.msra.mxu0 %v2931
    %3298 = vmatpush.bf16.msra.mxu0 %v2922
    %3299 = vmatpush.bf16.msra.mxu0 %v2913
    %3300 = vmatpush.bf16.msra.mxu0 %v2904
    %3301 = vmatpush.bf16.msra.mxu0 %v2895
    %3302 = vmatmul.bf16.gmra.mxu0 %v1462
    %v3303 = vpop.f32.mrf.mxu0
    %v3304 = vadd.f32 %v3291, %v3303
    %v3305 = vpop.f32.mrf.mxu0
    %3306 = vdwg.mxu0
    %3307 = vmatpush.bf16.msra.mxu0 %v2743
    %3308 = vmatpush.bf16.msra.mxu0 %v2734
    %3309 = vmatpush.bf16.msra.mxu0 %v2725
    %3310 = vmatpush.bf16.msra.mxu0 %v2716
    %3311 = vmatpush.bf16.msra.mxu0 %v2707
    %3312 = vmatpush.bf16.msra.mxu0 %v2698
    %3313 = vmatpush.bf16.msra.mxu0 %v2689
    %3314 = vmatpush.bf16.msra.mxu0 %v2680
    %3315 = vmatmul.bf16.gmra.mxu0 %v1459
    %v3316 = vpop.f32.mrf.mxu0
    %v3317 = vadd.f32 0.0, %v3316
    %v3318 = vpop.f32.mrf.mxu0
    %3319 = vdwg.mxu0
    %3320 = vmatpush.bf16.msra.mxu0 %v2815
    %3321 = vmatpush.bf16.msra.mxu0 %v2806
    %3322 = vmatpush.bf16.msra.mxu0 %v2797
    %3323 = vmatpush.bf16.msra.mxu0 %v2788
    %3324 = vmatpush.bf16.msra.mxu0 %v2779
    %3325 = vmatpush.bf16.msra.mxu0 %v2770
    %3326 = vmatpush.bf16.msra.mxu0 %v2761
    %3327 = vmatpush.bf16.msra.mxu0 %v2752
    %3328 = vmatmul.bf16.gmra.mxu0 %v1460
    %v3329 = vpop.f32.mrf.mxu0
    %v3330 = vadd.f32 %v3317, %v3329
    %v3331 = vpop.f32.mrf.mxu0
    %3332 = vdwg.mxu0
    %3333 = vmatpush.bf16.msra.mxu0 %v2887
    %3334 = vmatpush.bf16.msra.mxu0 %v2878
    %3335 = vmatpush.bf16.msra.mxu0 %v2869
    %3336 = vmatpush.bf16.msra.mxu0 %v2860
    %3337 = vmatpush.bf16.msra.mxu0 %v2851
    %3338 = vmatpush.bf16.msra.mxu0 %v2842
    %3339 = vmatpush.bf16.msra.mxu0 %v2833
    %3340 = vmatpush.bf16.msra.mxu0 %v2824
    %3341 = vmatmul.bf16.gmra.mxu0 %v1461
    %v3342 = vpop.f32.mrf.mxu0
    %v3343 = vadd.f32 %v3330, %v3342
    %v3344 = vpop.f32.mrf.mxu0
    %3345 = vdwg.mxu0
    %3346 = vmatpush.bf16.msra.mxu0 %v2959
    %3347 = vmatpush.bf16.msra.mxu0 %v2950
    %3348 = vmatpush.bf16.msra.mxu0 %v2941
    %3349 = vmatpush.bf16.msra.mxu0 %v2932
    %3350 = vmatpush.bf16.msra.mxu0 %v2923
    %3351 = vmatpush.bf16.msra.mxu0 %v2914
    %3352 = vmatpush.bf16.msra.mxu0 %v2905
    %3353 = vmatpush.bf16.msra.mxu0 %v2896
    %3354 = vmatmul.bf16.gmra.mxu0 %v1462
    %v3355 = vpop.f32.mrf.mxu0
    %v3356 = vadd.f32 %v3343, %v3355
    %v3357 = vpop.f32.mrf.mxu0
    %3358 = vdwg.mxu0
    %3359 = vmatpush.bf16.msra.mxu0 %v2744
    %3360 = vmatpush.bf16.msra.mxu0 %v2735
    %3361 = vmatpush.bf16.msra.mxu0 %v2726
    %3362 = vmatpush.bf16.msra.mxu0 %v2717
    %3363 = vmatpush.bf16.msra.mxu0 %v2708
    %3364 = vmatpush.bf16.msra.mxu0 %v2699
    %3365 = vmatpush.bf16.msra.mxu0 %v2690
    %3366 = vmatpush.bf16.msra.mxu0 %v2681
    %3367 = vmatmul.bf16.gmra.mxu0 %v1459
    %v3368 = vpop.f32.mrf.mxu0
    %v3369 = vadd.f32 0.0, %v3368
    %v3370 = vpop.f32.mrf.mxu0
    %3371 = vdwg.mxu0
    %3372 = vmatpush.bf16.msra.mxu0 %v2816
    %3373 = vmatpush.bf16.msra.mxu0 %v2807
    %3374 = vmatpush.bf16.msra.mxu0 %v2798
    %3375 = vmatpush.bf16.msra.mxu0 %v2789
    %3376 = vmatpush.bf16.msra.mxu0 %v2780
    %3377 = vmatpush.bf16.msra.mxu0 %v2771
    %3378 = vmatpush.bf16.msra.mxu0 %v2762
    %3379 = vmatpush.bf16.msra.mxu0 %v2753
    %3380 = vmatmul.bf16.gmra.mxu0 %v1460
    %v3381 = vpop.f32.mrf.mxu0
    %v3382 = vadd.f32 %v3369, %v3381
    %v3383 = vpop.f32.mrf.mxu0
    %3384 = vdwg.mxu0
    %3385 = vmatpush.bf16.msra.mxu0 %v2888
    %3386 = vmatpush.bf16.msra.mxu0 %v2879
    %3387 = vmatpush.bf16.msra.mxu0 %v2870
    %3388 = vmatpush.bf16.msra.mxu0 %v2861
    %3389 = vmatpush.bf16.msra.mxu0 %v2852
    %3390 = vmatpush.bf16.msra.mxu0 %v2843
    %3391 = vmatpush.bf16.msra.mxu0 %v2834
    %3392 = vmatpush.bf16.msra.mxu0 %v2825
    %3393 = vmatmul.bf16.gmra.mxu0 %v1461
    %v3394 = vpop.f32.mrf.mxu0
    %v3395 = vadd.f32 %v3382, %v3394
    %v3396 = vpop.f32.mrf.mxu0
    %3397 = vdwg.mxu0
    %3398 = vmatpush.bf16.msra.mxu0 %v2960
    %3399 = vmatpush.bf16.msra.mxu0 %v2951
    %3400 = vmatpush.bf16.msra.mxu0 %v2942
    %3401 = vmatpush.bf16.msra.mxu0 %v2933
    %3402 = vmatpush.bf16.msra.mxu0 %v2924
    %3403 = vmatpush.bf16.msra.mxu0 %v2915
    %3404 = vmatpush.bf16.msra.mxu0 %v2906
    %3405 = vmatpush.bf16.msra.mxu0 %v2897
    %3406 = vmatmul.bf16.gmra.mxu0 %v1462
    %v3407 = vpop.f32.mrf.mxu0
    %v3408 = vadd.f32 %v3395, %v3407
    %v3409 = vpop.f32.mrf.mxu0
    %3410 = vdwg.mxu0
    %3411 = vmatpush.bf16.msra.mxu0 %v2745
    %3412 = vmatpush.bf16.msra.mxu0 %v2736
    %3413 = vmatpush.bf16.msra.mxu0 %v2727
    %3414 = vmatpush.bf16.msra.mxu0 %v2718
    %3415 = vmatpush.bf16.msra.mxu0 %v2709
    %3416 = vmatpush.bf16.msra.mxu0 %v2700
    %3417 = vmatpush.bf16.msra.mxu0 %v2691
    %3418 = vmatpush.bf16.msra.mxu0 %v2682
    %3419 = vmatmul.bf16.gmra.mxu0 %v1459
    %v3420 = vpop.f32.mrf.mxu0
    %v3421 = vadd.f32 0.0, %v3420
    %v3422 = vpop.f32.mrf.mxu0
    %3423 = vdwg.mxu0
    %3424 = vmatpush.bf16.msra.mxu0 %v2817
    %3425 = vmatpush.bf16.msra.mxu0 %v2808
    %3426 = vmatpush.bf16.msra.mxu0 %v2799
    %3427 = vmatpush.bf16.msra.mxu0 %v2790
    %3428 = vmatpush.bf16.msra.mxu0 %v2781
    %3429 = vmatpush.bf16.msra.mxu0 %v2772
    %3430 = vmatpush.bf16.msra.mxu0 %v2763
    %3431 = vmatpush.bf16.msra.mxu0 %v2754
    %3432 = vmatmul.bf16.gmra.mxu0 %v1460
    %v3433 = vpop.f32.mrf.mxu0
    %v3434 = vadd.f32 %v3421, %v3433
    %v3435 = vpop.f32.mrf.mxu0
    %3436 = vdwg.mxu0
    %3437 = vmatpush.bf16.msra.mxu0 %v2889
    %3438 = vmatpush.bf16.msra.mxu0 %v2880
    %3439 = vmatpush.bf16.msra.mxu0 %v2871
    %3440 = vmatpush.bf16.msra.mxu0 %v2862
    %3441 = vmatpush.bf16.msra.mxu0 %v2853
    %3442 = vmatpush.bf16.msra.mxu0 %v2844
    %3443 = vmatpush.bf16.msra.mxu0 %v2835
    %3444 = vmatpush.bf16.msra.mxu0 %v2826
    %3445 = vmatmul.bf16.gmra.mxu0 %v1461
    %v3446 = vpop.f32.mrf.mxu0
    %v3447 = vadd.f32 %v3434, %v3446
    %v3448 = vpop.f32.mrf.mxu0
    %3449 = vdwg.mxu0
    %3450 = vmatpush.bf16.msra.mxu0 %v2961
    %3451 = vmatpush.bf16.msra.mxu0 %v2952
    %3452 = vmatpush.bf16.msra.mxu0 %v2943
    %3453 = vmatpush.bf16.msra.mxu0 %v2934
    %3454 = vmatpush.bf16.msra.mxu0 %v2925
    %3455 = vmatpush.bf16.msra.mxu0 %v2916
    %3456 = vmatpush.bf16.msra.mxu0 %v2907
    %3457 = vmatpush.bf16.msra.mxu0 %v2898
    %3458 = vmatmul.bf16.gmra.mxu0 %v1462
    %v3459 = vpop.f32.mrf.mxu0
    %v3460 = vadd.f32 %v3447, %v3459
    %v3461 = vpop.f32.mrf.mxu0
    %3462 = vdwg.mxu0
    %3463 = vmatpush.bf16.msra.mxu0 %v2746
    %3464 = vmatpush.bf16.msra.mxu0 %v2737
    %3465 = vmatpush.bf16.msra.mxu0 %v2728
    %3466 = vmatpush.bf16.msra.mxu0 %v2719
    %3467 = vmatpush.bf16.msra.mxu0 %v2710
    %3468 = vmatpush.bf16.msra.mxu0 %v2701
    %3469 = vmatpush.bf16.msra.mxu0 %v2692
    %3470 = vmatpush.bf16.msra.mxu0 %v2683
    %3471 = vmatmul.bf16.gmra.mxu0 %v1459
    %v3472 = vpop.f32.mrf.mxu0
    %v3473 = vadd.f32 0.0, %v3472
    %v3474 = vpop.f32.mrf.mxu0
    %3475 = vdwg.mxu0
    %3476 = vmatpush.bf16.msra.mxu0 %v2818
    %3477 = vmatpush.bf16.msra.mxu0 %v2809
    %3478 = vmatpush.bf16.msra.mxu0 %v2800
    %3479 = vmatpush.bf16.msra.mxu0 %v2791
    %3480 = vmatpush.bf16.msra.mxu0 %v2782
    %3481 = vmatpush.bf16.msra.mxu0 %v2773
    %3482 = vmatpush.bf16.msra.mxu0 %v2764
    %3483 = vmatpush.bf16.msra.mxu0 %v2755
    %3484 = vmatmul.bf16.gmra.mxu0 %v1460
    %v3485 = vpop.f32.mrf.mxu0
    %v3486 = vadd.f32 %v3473, %v3485
    %v3487 = vpop.f32.mrf.mxu0
    %3488 = vdwg.mxu0
    %3489 = vmatpush.bf16.msra.mxu0 %v2890
    %3490 = vmatpush.bf16.msra.mxu0 %v2881
    %3491 = vmatpush.bf16.msra.mxu0 %v2872
    %3492 = vmatpush.bf16.msra.mxu0 %v2863
    %3493 = vmatpush.bf16.msra.mxu0 %v2854
    %3494 = vmatpush.bf16.msra.mxu0 %v2845
    %3495 = vmatpush.bf16.msra.mxu0 %v2836
    %3496 = vmatpush.bf16.msra.mxu0 %v2827
    %3497 = vmatmul.bf16.gmra.mxu0 %v1461
    %v3498 = vpop.f32.mrf.mxu0
    %v3499 = vadd.f32 %v3486, %v3498
    %v3500 = vpop.f32.mrf.mxu0
    %3501 = vdwg.mxu0
    %3502 = vmatpush.bf16.msra.mxu0 %v2962
    %3503 = vmatpush.bf16.msra.mxu0 %v2953
    %3504 = vmatpush.bf16.msra.mxu0 %v2944
    %3505 = vmatpush.bf16.msra.mxu0 %v2935
    %3506 = vmatpush.bf16.msra.mxu0 %v2926
    %3507 = vmatpush.bf16.msra.mxu0 %v2917
    %3508 = vmatpush.bf16.msra.mxu0 %v2908
    %3509 = vmatpush.bf16.msra.mxu0 %v2899
    %3510 = vmatmul.bf16.gmra.mxu0 %v1462
    %v3511 = vpop.f32.mrf.mxu0
    %v3512 = vadd.f32 %v3499, %v3511
    %v3513 = vpop.f32.mrf.mxu0
    %3514 = vdwg.mxu0
    %3515 = vmatpush.bf16.msra.mxu0 %v2747
    %3516 = vmatpush.bf16.msra.mxu0 %v2738
    %3517 = vmatpush.bf16.msra.mxu0 %v2729
    %3518 = vmatpush.bf16.msra.mxu0 %v2720
    %3519 = vmatpush.bf16.msra.mxu0 %v2711
    %3520 = vmatpush.bf16.msra.mxu0 %v2702
    %3521 = vmatpush.bf16.msra.mxu0 %v2693
    %3522 = vmatpush.bf16.msra.mxu0 %v2684
    %3523 = vmatmul.bf16.gmra.mxu0 %v1459
    %v3524 = vpop.f32.mrf.mxu0
    %v3525 = vadd.f32 0.0, %v3524
    %v3526 = vpop.f32.mrf.mxu0
    %3527 = vdwg.mxu0
    %3528 = vmatpush.bf16.msra.mxu0 %v2819
    %3529 = vmatpush.bf16.msra.mxu0 %v2810
    %3530 = vmatpush.bf16.msra.mxu0 %v2801
    %3531 = vmatpush.bf16.msra.mxu0 %v2792
    %3532 = vmatpush.bf16.msra.mxu0 %v2783
    %3533 = vmatpush.bf16.msra.mxu0 %v2774
    %3534 = vmatpush.bf16.msra.mxu0 %v2765
    %3535 = vmatpush.bf16.msra.mxu0 %v2756
    %3536 = vmatmul.bf16.gmra.mxu0 %v1460
    %v3537 = vpop.f32.mrf.mxu0
    %v3538 = vadd.f32 %v3525, %v3537
    %v3539 = vpop.f32.mrf.mxu0
    %3540 = vdwg.mxu0
    %3541 = vmatpush.bf16.msra.mxu0 %v2891
    %3542 = vmatpush.bf16.msra.mxu0 %v2882
    %3543 = vmatpush.bf16.msra.mxu0 %v2873
    %3544 = vmatpush.bf16.msra.mxu0 %v2864
    %3545 = vmatpush.bf16.msra.mxu0 %v2855
    %3546 = vmatpush.bf16.msra.mxu0 %v2846
    %3547 = vmatpush.bf16.msra.mxu0 %v2837
    %3548 = vmatpush.bf16.msra.mxu0 %v2828
    %3549 = vmatmul.bf16.gmra.mxu0 %v1461
    %v3550 = vpop.f32.mrf.mxu0
    %v3551 = vadd.f32 %v3538, %v3550
    %v3552 = vpop.f32.mrf.mxu0
    %3553 = vdwg.mxu0
    %3554 = vmatpush.bf16.msra.mxu0 %v2963
    %3555 = vmatpush.bf16.msra.mxu0 %v2954
    %3556 = vmatpush.bf16.msra.mxu0 %v2945
    %3557 = vmatpush.bf16.msra.mxu0 %v2936
    %3558 = vmatpush.bf16.msra.mxu0 %v2927
    %3559 = vmatpush.bf16.msra.mxu0 %v2918
    %3560 = vmatpush.bf16.msra.mxu0 %v2909
    %3561 = vmatpush.bf16.msra.mxu0 %v2900
    %3562 = vmatmul.bf16.gmra.mxu0 %v1462
    %v3563 = vpop.f32.mrf.mxu0
    %v3564 = vadd.f32 %v3551, %v3563
    %v3565 = vpop.f32.mrf.mxu0
    %3566 = vdwg.mxu0
    %3567 = vmatpush.bf16.msra.mxu0 %v2748
    %3568 = vmatpush.bf16.msra.mxu0 %v2739
    %3569 = vmatpush.bf16.msra.mxu0 %v2730
    %3570 = vmatpush.bf16.msra.mxu0 %v2721
    %3571 = vmatpush.bf16.msra.mxu0 %v2712
    %3572 = vmatpush.bf16.msra.mxu0 %v2703
    %3573 = vmatpush.bf16.msra.mxu0 %v2694
    %3574 = vmatpush.bf16.msra.mxu0 %v2685
    %3575 = vmatmul.bf16.gmra.mxu0 %v1459
    %v3576 = vpop.f32.mrf.mxu0
    %v3577 = vadd.f32 0.0, %v3576
    %v3578 = vpop.f32.mrf.mxu0
    %3579 = vdwg.mxu0
    %3580 = vmatpush.bf16.msra.mxu0 %v2820
    %3581 = vmatpush.bf16.msra.mxu0 %v2811
    %3582 = vmatpush.bf16.msra.mxu0 %v2802
    %3583 = vmatpush.bf16.msra.mxu0 %v2793
    %3584 = vmatpush.bf16.msra.mxu0 %v2784
    %3585 = vmatpush.bf16.msra.mxu0 %v2775
    %3586 = vmatpush.bf16.msra.mxu0 %v2766
    %3587 = vmatpush.bf16.msra.mxu0 %v2757
    %3588 = vmatmul.bf16.gmra.mxu0 %v1460
    %v3589 = vpop.f32.mrf.mxu0
    %v3590 = vadd.f32 %v3577, %v3589
    %v3591 = vpop.f32.mrf.mxu0
    %3592 = vdwg.mxu0
    %3593 = vmatpush.bf16.msra.mxu0 %v2892
    %3594 = vmatpush.bf16.msra.mxu0 %v2883
    %3595 = vmatpush.bf16.msra.mxu0 %v2874
    %3596 = vmatpush.bf16.msra.mxu0 %v2865
    %3597 = vmatpush.bf16.msra.mxu0 %v2856
    %3598 = vmatpush.bf16.msra.mxu0 %v2847
    %3599 = vmatpush.bf16.msra.mxu0 %v2838
    %3600 = vmatpush.bf16.msra.mxu0 %v2829
    %3601 = vmatmul.bf16.gmra.mxu0 %v1461
    %v3602 = vpop.f32.mrf.mxu0
    %v3603 = vadd.f32 %v3590, %v3602
    %v3604 = vpop.f32.mrf.mxu0
    %3605 = vdwg.mxu0
    %3606 = vmatpush.bf16.msra.mxu0 %v2964
    %3607 = vmatpush.bf16.msra.mxu0 %v2955
    %3608 = vmatpush.bf16.msra.mxu0 %v2946
    %3609 = vmatpush.bf16.msra.mxu0 %v2937
    %3610 = vmatpush.bf16.msra.mxu0 %v2928
    %3611 = vmatpush.bf16.msra.mxu0 %v2919
    %3612 = vmatpush.bf16.msra.mxu0 %v2910
    %3613 = vmatpush.bf16.msra.mxu0 %v2901
    %3614 = vmatmul.bf16.gmra.mxu0 %v1462
    %v3615 = vpop.f32.mrf.mxu0
    %v3616 = vadd.f32 %v3603, %v3615
    %v3617 = vpop.f32.mrf.mxu0
    %3618 = vdwg.mxu0
    %3619 = vmatpush.bf16.msra.mxu0 %v2749
    %3620 = vmatpush.bf16.msra.mxu0 %v2740
    %3621 = vmatpush.bf16.msra.mxu0 %v2731
    %3622 = vmatpush.bf16.msra.mxu0 %v2722
    %3623 = vmatpush.bf16.msra.mxu0 %v2713
    %3624 = vmatpush.bf16.msra.mxu0 %v2704
    %3625 = vmatpush.bf16.msra.mxu0 %v2695
    %3626 = vmatpush.bf16.msra.mxu0 %v2686
    %3627 = vmatmul.bf16.gmra.mxu0 %v1459
    %v3628 = vpop.f32.mrf.mxu0
    %v3629 = vadd.f32 0.0, %v3628
    %v3630 = vpop.f32.mrf.mxu0
    %3631 = vdwg.mxu0
    %3632 = vmatpush.bf16.msra.mxu0 %v2821
    %3633 = vmatpush.bf16.msra.mxu0 %v2812
    %3634 = vmatpush.bf16.msra.mxu0 %v2803
    %3635 = vmatpush.bf16.msra.mxu0 %v2794
    %3636 = vmatpush.bf16.msra.mxu0 %v2785
    %3637 = vmatpush.bf16.msra.mxu0 %v2776
    %3638 = vmatpush.bf16.msra.mxu0 %v2767
    %3639 = vmatpush.bf16.msra.mxu0 %v2758
    %3640 = vmatmul.bf16.gmra.mxu0 %v1460
    %v3641 = vpop.f32.mrf.mxu0
    %v3642 = vadd.f32 %v3629, %v3641
    %v3643 = vpop.f32.mrf.mxu0
    %3644 = vdwg.mxu0
    %3645 = vmatpush.bf16.msra.mxu0 %v2893
    %3646 = vmatpush.bf16.msra.mxu0 %v2884
    %3647 = vmatpush.bf16.msra.mxu0 %v2875
    %3648 = vmatpush.bf16.msra.mxu0 %v2866
    %3649 = vmatpush.bf16.msra.mxu0 %v2857
    %3650 = vmatpush.bf16.msra.mxu0 %v2848
    %3651 = vmatpush.bf16.msra.mxu0 %v2839
    %3652 = vmatpush.bf16.msra.mxu0 %v2830
    %3653 = vmatmul.bf16.gmra.mxu0 %v1461
    %v3654 = vpop.f32.mrf.mxu0
    %v3655 = vadd.f32 %v3642, %v3654
    %v3656 = vpop.f32.mrf.mxu0
    %3657 = vdwg.mxu0
    %3658 = vmatpush.bf16.msra.mxu0 %v2965
    %3659 = vmatpush.bf16.msra.mxu0 %v2956
    %3660 = vmatpush.bf16.msra.mxu0 %v2947
    %3661 = vmatpush.bf16.msra.mxu0 %v2938
    %3662 = vmatpush.bf16.msra.mxu0 %v2929
    %3663 = vmatpush.bf16.msra.mxu0 %v2920
    %3664 = vmatpush.bf16.msra.mxu0 %v2911
    %3665 = vmatpush.bf16.msra.mxu0 %v2902
    %3666 = vmatmul.bf16.gmra.mxu0 %v1462
    %v3667 = vpop.f32.mrf.mxu0
    %v3668 = vadd.f32 %v3655, %v3667
    %v3669 = vpop.f32.mrf.mxu0
    %3670 = vdwg.mxu0
    %3671 = vmatpush.bf16.msra.mxu0 %v2750
    %3672 = vmatpush.bf16.msra.mxu0 %v2741
    %3673 = vmatpush.bf16.msra.mxu0 %v2732
    %3674 = vmatpush.bf16.msra.mxu0 %v2723
    %3675 = vmatpush.bf16.msra.mxu0 %v2714
    %3676 = vmatpush.bf16.msra.mxu0 %v2705
    %3677 = vmatpush.bf16.msra.mxu0 %v2696
    %3678 = vmatpush.bf16.msra.mxu0 %v2687
    %3679 = vmatmul.bf16.gmra.mxu0 %v1459
    %v3680 = vpop.f32.mrf.mxu0
    %v3681 = vadd.f32 0.0, %v3680
    %v3682 = vpop.f32.mrf.mxu0
    %3683 = vdwg.mxu0
    %3684 = vmatpush.bf16.msra.mxu0 %v2822
    %3685 = vmatpush.bf16.msra.mxu0 %v2813
    %3686 = vmatpush.bf16.msra.mxu0 %v2804
    %3687 = vmatpush.bf16.msra.mxu0 %v2795
    %3688 = vmatpush.bf16.msra.mxu0 %v2786
    %3689 = vmatpush.bf16.msra.mxu0 %v2777
    %3690 = vmatpush.bf16.msra.mxu0 %v2768
    %3691 = vmatpush.bf16.msra.mxu0 %v2759
    %3692 = vmatmul.bf16.gmra.mxu0 %v1460
    %v3693 = vpop.f32.mrf.mxu0
    %v3694 = vadd.f32 %v3681, %v3693
    %v3695 = vpop.f32.mrf.mxu0
    %3696 = vdwg.mxu0
    %3697 = vmatpush.bf16.msra.mxu0 %v2894
    %3698 = vmatpush.bf16.msra.mxu0 %v2885
    %3699 = vmatpush.bf16.msra.mxu0 %v2876
    %3700 = vmatpush.bf16.msra.mxu0 %v2867
    %3701 = vmatpush.bf16.msra.mxu0 %v2858
    %3702 = vmatpush.bf16.msra.mxu0 %v2849
    %3703 = vmatpush.bf16.msra.mxu0 %v2840
    %3704 = vmatpush.bf16.msra.mxu0 %v2831
    %3705 = vmatmul.bf16.gmra.mxu0 %v1461
    %v3706 = vpop.f32.mrf.mxu0
    %v3707 = vadd.f32 %v3694, %v3706
    %v3708 = vpop.f32.mrf.mxu0
    %3709 = vdwg.mxu0
    %3710 = vmatpush.bf16.msra.mxu0 %v2966
    %3711 = vmatpush.bf16.msra.mxu0 %v2957
    %3712 = vmatpush.bf16.msra.mxu0 %v2948
    %3713 = vmatpush.bf16.msra.mxu0 %v2939
    %3714 = vmatpush.bf16.msra.mxu0 %v2930
    %3715 = vmatpush.bf16.msra.mxu0 %v2921
    %3716 = vmatpush.bf16.msra.mxu0 %v2912
    %3717 = vmatpush.bf16.msra.mxu0 %v2903
    %3718 = vmatmul.bf16.gmra.mxu0 %v1462
    %v3719 = vpop.f32.mrf.mxu0
    %v3720 = vadd.f32 %v3707, %v3719
    %v3721 = vpop.f32.mrf.mxu0
    %3722 = vdwg.mxu0
    %v3723 = vmax.f32 %v3304, %v3356
    %v3724 = vmax.f32 %v3723, %v3408
    %v3725 = vmax.f32 %v3724, %v3460
    %v3726 = vmax.f32 %v3725, %v3512
    %v3727 = vmax.f32 %v3726, %v3564
    %v3728 = vmax.f32 %v3727, %v3616
    %v3729 = vmax.f32 %v3728, %v3668
    %v3730 = vmax.f32 %v3729, %v3720
    %v3731 = vpack.c.bf16 %v3730, %v3730
    %v3732 = vld [vmem:[#allocation13] sm:$0xf]
    %v3733 = vld [vmem:[#allocation13 + $0x4] sm:$0xf]
    %v3734 = vld [vmem:[#allocation13 + $0x8] sm:$0xf]
    %v3735 = vld [vmem:[#allocation13 + $0xc] sm:$0xf]
    %v3736 = vld [vmem:[#allocation13 + $0x10] sm:$0xf]
    %v3737 = vld [vmem:[#allocation13 + $0x14] sm:$0xf]
    %v3738 = vld [vmem:[#allocation13 + $0x18] sm:$0xf]
    %v3739 = vld [vmem:[#allocation13 + $0x1c] sm:$0xf]
    %v3740 = vld [vmem:[#allocation13 + $0x20] sm:$0xf]
    %v3741 = vld [vmem:[#allocation13 + $0x24] sm:$0xf]
    %v3742 = vld [vmem:[#allocation13 + $0x28] sm:$0xf]
    %v3743 = vld [vmem:[#allocation13 + $0x2c] sm:$0xf]
    %v3744 = vld [vmem:[#allocation13 + $0x30] sm:$0xf]
    %v3745 = vld [vmem:[#allocation13 + $0x34] sm:$0xf]
    %v3746 = vld [vmem:[#allocation13 + $0x38] sm:$0xf]
    %v3747 = vld [vmem:[#allocation13 + $0x3c] sm:$0xf]
    %v3748 = vld [vmem:[%s21] sm:$0x1]
    %v3750 = vperm.slane %v3748, 0
    %v3768 = vunpack.c.l.b16 %v3732
    %v3769 = vunpack.c.l.b16 %v3733
    %v3770 = vunpack.c.l.b16 %v3734
    %v3771 = vunpack.c.l.b16 %v3735
    %v3772 = vunpack.c.l.b16 %v3736
    %v3773 = vunpack.c.l.b16 %v3737
    %v3774 = vunpack.c.l.b16 %v3738
    %v3775 = vunpack.c.l.b16 %v3739
    %v3776 = vunpack.c.l.b16 %v3740
    %v3777 = vunpack.c.l.b16 %v3741
    %v3778 = vunpack.c.l.b16 %v3742
    %v3779 = vunpack.c.l.b16 %v3743
    %v3780 = vunpack.c.l.b16 %v3744
    %v3781 = vunpack.c.l.b16 %v3745
    %v3782 = vunpack.c.l.b16 %v3746
    %v3783 = vunpack.c.l.b16 %v3747
    %v3784 = vpack.c.b16 %v3769, %v3768
    %v3785 = vpack.c.b16 %v3771, %v3770
    %v3786 = vpack.c.b16 %v3773, %v3772
    %v3787 = vpack.c.b16 %v3775, %v3774
    %v3788 = vpack.c.b16 %v3777, %v3776
    %v3789 = vpack.c.b16 %v3779, %v3778
    %v3790 = vpack.c.b16 %v3781, %v3780
    %v3791 = vpack.c.b16 %v3783, %v3782
    %3800 = vmatpush.bf16.msra.mxu0 %v3791
    %3801 = vmatpush.bf16.msra.mxu0 %v3790
    %3802 = vmatpush.bf16.msra.mxu0 %v3789
    %3803 = vmatpush.bf16.msra.mxu0 %v3788
    %3804 = vmatpush.bf16.msra.mxu0 %v3787
    %3805 = vmatpush.bf16.msra.mxu0 %v3786
    %3806 = vmatpush.bf16.msra.mxu0 %v3785
    %3807 = vmatpush.bf16.msra.mxu0 %v3784
    %3808 = vmatmul.bf16.gmra.mxu0 %v3731
    %v3809 = vpop.f32.mrf.mxu0
    %v3810 = vadd.f32 %v3750, %v3809
    %v3811 = vpop.f32.mrf.mxu0
    %3812 = vdwg.mxu0
    %v3813 = vsel %vm962, %v3810, 0.0
    %v3814 = vrot.slane %v3813, 4
    %v3815 = vadd.f32 %v3813, %v3814
    %v3816 = vrot.slane %v3815, 2
    %v3817 = vadd.f32 %v3815, %v3816
    %v3818 = vrot.slane %v3817, 1
    %v3819 = vadd.f32 %v3817, %v3818
    %v3820 = vmul.f32 %v3810, %v3810
    %v3821 = vsel %vm962, %v3820, 0.0
    %v3822 = vrot.slane %v3821, 4
    %v3823 = vadd.f32 %v3821, %v3822
    %v3824 = vrot.slane %v3823, 2
    %v3825 = vadd.f32 %v3823, %v3824
    %v3826 = vrot.slane %v3825, 1
    %v3827 = vadd.f32 %v3825, %v3826
    %v3828 = vld [vmem:[#allocation10] sm:$0xff]
    %v3829 = vld [vmem:[#allocation10 + $0x8] sm:$0xff]
    %v3830 = vld [vmem:[#allocation10 + $0x10] sm:$0xff]
    %v3831 = vld [vmem:[#allocation10 + $0x18] sm:$0xff]
    %v3832 = vld [vmem:[#allocation10 + $0x20] sm:$0xff]
    %v3833 = vld [vmem:[#allocation10 + $0x28] sm:$0xff]
    %v3834 = vld [vmem:[#allocation10 + $0x30] sm:$0xff]
    %v3835 = vld [vmem:[#allocation10 + $0x38] sm:$0xff]
    %v3836 = vld [vmem:[#allocation10 + $0x40] sm:$0xff]
    %v3837 = vld [vmem:[#allocation10 + $0x48] sm:$0xff]
    %v3838 = vld [vmem:[#allocation10 + $0x50] sm:$0xff]
    %v3839 = vld [vmem:[#allocation10 + $0x58] sm:$0xff]
    %v3840 = vld [vmem:[#allocation10 + $0x60] sm:$0xff]
    %v3841 = vld [vmem:[#allocation10 + $0x68] sm:$0xff]
    %v3842 = vld [vmem:[#allocation10 + $0x70] sm:$0xff]
    %v3843 = vld [vmem:[#allocation10 + $0x78] sm:$0xff]
    %3844 = vmatpush.msra.mxu0 %v3843
    %3845 = vmatpush.msra.mxu0 %v3842
    %3846 = vmatpush.msra.mxu0 %v3841
    %3847 = vmatpush.msra.mxu0 %v3840
    %3848 = vmatpush.msra.mxu0 %v3839
    %3849 = vmatpush.msra.mxu0 %v3838
    %3850 = vmatpush.msra.mxu0 %v3837
    %3851 = vmatpush.msra.mxu0 %v3836
    %3852 = vmatpush.msra.mxu0 %v3835
    %3853 = vmatpush.msra.mxu0 %v3834
    %3854 = vmatpush.msra.mxu0 %v3833
    %3855 = vmatpush.msra.mxu0 %v3832
    %3856 = vmatpush.msra.mxu0 %v3831
    %3857 = vmatpush.msra.mxu0 %v3830
    %3858 = vmatpush.msra.mxu0 %v3829
    %3859 = vmatpush.msra.mxu0 %v3828
    %3860 = vmatmul.f32.gmra.mxu0 %v3819
    %v3861 = vpop.f32.mrf.mxu0
    %v3862 = vadd.f32 0.0, %v3861
    %3863 = vdwg.mxu0
    %3864 = vmatpush.msra.mxu0 %v3843
    %3865 = vmatpush.msra.mxu0 %v3842
    %3866 = vmatpush.msra.mxu0 %v3841
    %3867 = vmatpush.msra.mxu0 %v3840
    %3868 = vmatpush.msra.mxu0 %v3839
    %3869 = vmatpush.msra.mxu0 %v3838
    %3870 = vmatpush.msra.mxu0 %v3837
    %3871 = vmatpush.msra.mxu0 %v3836
    %3872 = vmatpush.msra.mxu0 %v3835
    %3873 = vmatpush.msra.mxu0 %v3834
    %3874 = vmatpush.msra.mxu0 %v3833
    %3875 = vmatpush.msra.mxu0 %v3832
    %3876 = vmatpush.msra.mxu0 %v3831
    %3877 = vmatpush.msra.mxu0 %v3830
    %3878 = vmatpush.msra.mxu0 %v3829
    %3879 = vmatpush.msra.mxu0 %v3828
    %3880 = vmatmul.f32.gmra.mxu0 %v3827
    %v3881 = vpop.f32.mrf.mxu0
    %v3882 = vadd.f32 0.0, %v3881
    %3883 = vdwg.mxu0
    %v3884 = vmul.f32 %v3862, 0.03125
    %v3885 = vmul.f32 %v3882, 0.03125
    %v3886 = vmul.f32 %v3884, %v3884
    %v3887 = vsub.f32 %v3885, %v3886
    %v3888 = vmax.f32 %v3887, 0.0
    %v3889 = vld [vmem:[%s23] sm:$0x1]
    %v3890 = vadd.f32 %v3888, 1e-05
    %v3891 = vrsqrt.pop %v3890
    %v3892 = vmul.f32 %v3891, %v3890
    %v3893 = vmul.f32 %v3892, %v3891
    %v3894 = vmul.f32 0.5, %v3893
    %v3895 = vsub.f32 1.5, %v3894
    %v3896 = vmul.f32 %v3891, %v3895
    %vm3897 = vweird.f32 %v3890
    %vm3898 = vweird.f32 %v3891
    %vm3899 = vmor %vm3897, %vm3898
    %v3900 = vsel %vm3899, %v3891, %v3896
    %v3901 = vmul.f32 %v3889, %v3900
    %v3902 = vld [vmem:[%s25] sm:$0x1]
    %v3903 = vmul.f32 %v3884, %v3901
    %v3904 = vsub.f32 %v3902, %v3903
    %v3905 = vld [vmem:[#allocation11] sm:$0xff]
    %v3907 = vsel %vm1272, %v3901, 0
    %3909 = vmatpush.msra.mxu0 0.0
    %3910 = vmatpush.msra.mxu0 0.0
    %3911 = vmatpush.msra.mxu0 0.0
    %3912 = vmatpush.msra.mxu0 0.0
    %3913 = vmatpush.msra.mxu0 0.0
    %3914 = vmatpush.msra.mxu0 0.0
    %3915 = vmatpush.msra.mxu0 0.0
    %3916 = vmatpush.msra.mxu0 0.0
    %3917 = vmatpush.msra.mxu0 0.0
    %3918 = vmatpush.msra.mxu0 0.0
    %3919 = vmatpush.msra.mxu0 0.0
    %3920 = vmatpush.msra.mxu0 0.0
    %3921 = vmatpush.msra.mxu0 0.0
    %3922 = vmatpush.msra.mxu0 0.0
    %3923 = vmatpush.msra.mxu0 0.0
    %3924 = vmatpush.msra.mxu0 %v3905
    %3925 = vmatmul.f32.gmra.mxu0 %v3907
    %v3926 = vpop.f32.mrf.mxu0
    %v3927 = vadd.f32 0.0, %v3926
    %3928 = vdwg.mxu0
    %v3930 = vsel %vm1272, %v3904, 0
    %3932 = vmatpush.msra.mxu0 0.0
    %3933 = vmatpush.msra.mxu0 0.0
    %3934 = vmatpush.msra.mxu0 0.0
    %3935 = vmatpush.msra.mxu0 0.0
    %3936 = vmatpush.msra.mxu0 0.0
    %3937 = vmatpush.msra.mxu0 0.0
    %3938 = vmatpush.msra.mxu0 0.0
    %3939 = vmatpush.msra.mxu0 0.0
    %3940 = vmatpush.msra.mxu0 0.0
    %3941 = vmatpush.msra.mxu0 0.0
    %3942 = vmatpush.msra.mxu0 0.0
    %3943 = vmatpush.msra.mxu0 0.0
    %3944 = vmatpush.msra.mxu0 0.0
    %3945 = vmatpush.msra.mxu0 0.0
    %3946 = vmatpush.msra.mxu0 0.0
    %3947 = vmatpush.msra.mxu0 %v3905
    %3948 = vmatmul.f32.gmra.mxu0 %v3930
    %v3949 = vpop.f32.mrf.mxu0
    %v3950 = vadd.f32 0.0, %v3949
    %3951 = vdwg.mxu0
    %v3952 = vperm.slane %v3927, 0
    %v3953 = vmul.f32 %v3810, %v3952
    %v3954 = vperm.slane %v3950, 0
    %v3955 = vadd.f32 %v3953, %v3954
    %v3956 = vmax.f32 %v3955, 0.0
    %v3957 = vpack.c.bf16 %v3956, %v3956
    %v3958 = vld [vmem:[#allocation14] sm:$0xf]
    %v3959 = vld [vmem:[#allocation14 + $0x4] sm:$0xf]
    %v3960 = vld [vmem:[#allocation14 + $0x8] sm:$0xf]
    %v3961 = vld [vmem:[#allocation14 + $0xc] sm:$0xf]
    %v3962 = vld [vmem:[#allocation14 + $0x10] sm:$0xf]
    %v3963 = vld [vmem:[#allocation14 + $0x14] sm:$0xf]
    %v3964 = vld [vmem:[#allocation14 + $0x18] sm:$0xf]
    %v3965 = vld [vmem:[#allocation14 + $0x1c] sm:$0xf]
    %v3966 = vld [vmem:[#allocation14 + $0x20] sm:$0xf]
    %v3967 = vld [vmem:[#allocation14 + $0x24] sm:$0xf]
    %v3968 = vld [vmem:[#allocation14 + $0x28] sm:$0xf]
    %v3969 = vld [vmem:[#allocation14 + $0x2c] sm:$0xf]
    %v3970 = vld [vmem:[#allocation14 + $0x30] sm:$0xf]
    %v3971 = vld [vmem:[#allocation14 + $0x34] sm:$0xf]
    %v3972 = vld [vmem:[#allocation14 + $0x38] sm:$0xf]
    %v3973 = vld [vmem:[#allocation14 + $0x3c] sm:$0xf]
    %v3974 = vld [vmem:[%s29] sm:$0x1]
    %v3976 = vperm.slane %v3974, 0
    %v3994 = vunpack.c.l.b16 %v3958
    %v3995 = vunpack.c.l.b16 %v3959
    %v3996 = vunpack.c.l.b16 %v3960
    %v3997 = vunpack.c.l.b16 %v3961
    %v3998 = vunpack.c.l.b16 %v3962
    %v3999 = vunpack.c.l.b16 %v3963
    %v4000 = vunpack.c.l.b16 %v3964
    %v4001 = vunpack.c.l.b16 %v3965
    %v4002 = vunpack.c.l.b16 %v3966
    %v4003 = vunpack.c.l.b16 %v3967
    %v4004 = vunpack.c.l.b16 %v3968
    %v4005 = vunpack.c.l.b16 %v3969
    %v4006 = vunpack.c.l.b16 %v3970
    %v4007 = vunpack.c.l.b16 %v3971
    %v4008 = vunpack.c.l.b16 %v3972
    %v4009 = vunpack.c.l.b16 %v3973
    %v4010 = vpack.c.b16 %v3995, %v3994
    %v4011 = vpack.c.b16 %v3997, %v3996
    %v4012 = vpack.c.b16 %v3999, %v3998
    %v4013 = vpack.c.b16 %v4001, %v4000
    %v4014 = vpack.c.b16 %v4003, %v4002
    %v4015 = vpack.c.b16 %v4005, %v4004
    %v4016 = vpack.c.b16 %v4007, %v4006
    %v4017 = vpack.c.b16 %v4009, %v4008
    %4026 = vmatpush.bf16.msra.mxu0 %v4017
    %4027 = vmatpush.bf16.msra.mxu0 %v4016
    %4028 = vmatpush.bf16.msra.mxu0 %v4015
    %4029 = vmatpush.bf16.msra.mxu0 %v4014
    %4030 = vmatpush.bf16.msra.mxu0 %v4013
    %4031 = vmatpush.bf16.msra.mxu0 %v4012
    %4032 = vmatpush.bf16.msra.mxu0 %v4011
    %4033 = vmatpush.bf16.msra.mxu0 %v4010
    %4034 = vmatmul.bf16.gmra.mxu0 %v3957
    %v4035 = vpop.f32.mrf.mxu0
    %v4036 = vadd.f32 %v3976, %v4035
    %v4037 = vpop.f32.mrf.mxu0
    %4038 = vdwg.mxu0
    %v4039 = vsel %vm962, %v4036, 0.0
    %v4040 = vrot.slane %v4039, 4
    %v4041 = vadd.f32 %v4039, %v4040
    %v4042 = vrot.slane %v4041, 2
    %v4043 = vadd.f32 %v4041, %v4042
    %v4044 = vrot.slane %v4043, 1
    %v4045 = vadd.f32 %v4043, %v4044
    %v4046 = vmul.f32 %v4036, %v4036
    %v4047 = vsel %vm962, %v4046, 0.0
    %v4048 = vrot.slane %v4047, 4
    %v4049 = vadd.f32 %v4047, %v4048
    %v4050 = vrot.slane %v4049, 2
    %v4051 = vadd.f32 %v4049, %v4050
    %v4052 = vrot.slane %v4051, 1
    %v4053 = vadd.f32 %v4051, %v4052
    %4054 = vmatpush.msra.mxu0 %v3843
    %4055 = vmatpush.msra.mxu0 %v3842
    %4056 = vmatpush.msra.mxu0 %v3841
    %4057 = vmatpush.msra.mxu0 %v3840
    %4058 = vmatpush.msra.mxu0 %v3839
    %4059 = vmatpush.msra.mxu0 %v3838
    %4060 = vmatpush.msra.mxu0 %v3837
    %4061 = vmatpush.msra.mxu0 %v3836
    %4062 = vmatpush.msra.mxu0 %v3835
    %4063 = vmatpush.msra.mxu0 %v3834
    %4064 = vmatpush.msra.mxu0 %v3833
    %4065 = vmatpush.msra.mxu0 %v3832
    %4066 = vmatpush.msra.mxu0 %v3831
    %4067 = vmatpush.msra.mxu0 %v3830
    %4068 = vmatpush.msra.mxu0 %v3829
    %4069 = vmatpush.msra.mxu0 %v3828
    %4070 = vmatmul.f32.gmra.mxu0 %v4045
    %v4071 = vpop.f32.mrf.mxu0
    %v4072 = vadd.f32 0.0, %v4071
    %4073 = vdwg.mxu0
    %4074 = vmatpush.msra.mxu0 %v3843
    %4075 = vmatpush.msra.mxu0 %v3842
    %4076 = vmatpush.msra.mxu0 %v3841
    %4077 = vmatpush.msra.mxu0 %v3840
    %4078 = vmatpush.msra.mxu0 %v3839
    %4079 = vmatpush.msra.mxu0 %v3838
    %4080 = vmatpush.msra.mxu0 %v3837
    %4081 = vmatpush.msra.mxu0 %v3836
    %4082 = vmatpush.msra.mxu0 %v3835
    %4083 = vmatpush.msra.mxu0 %v3834
    %4084 = vmatpush.msra.mxu0 %v3833
    %4085 = vmatpush.msra.mxu0 %v3832
    %4086 = vmatpush.msra.mxu0 %v3831
    %4087 = vmatpush.msra.mxu0 %v3830
    %4088 = vmatpush.msra.mxu0 %v3829
    %4089 = vmatpush.msra.mxu0 %v3828
    %4090 = vmatmul.f32.gmra.mxu0 %v4053
    %v4091 = vpop.f32.mrf.mxu0
    %v4092 = vadd.f32 0.0, %v4091
    %4093 = vdwg.mxu0
    %v4094 = vmul.f32 %v4072, 0.03125
    %v4095 = vmul.f32 %v4092, 0.03125
    %v4096 = vmul.f32 %v4094, %v4094
    %v4097 = vsub.f32 %v4095, %v4096
    %v4098 = vmax.f32 %v4097, 0.0
    %v4099 = vld [vmem:[%s31] sm:$0x1]
    %v4100 = vadd.f32 %v4098, 1e-05
    %v4101 = vrsqrt.pop %v4100
    %v4102 = vmul.f32 %v4101, %v4100
    %v4103 = vmul.f32 %v4102, %v4101
    %v4104 = vmul.f32 0.5, %v4103
    %v4105 = vsub.f32 1.5, %v4104
    %v4106 = vmul.f32 %v4101, %v4105
    %vm4107 = vweird.f32 %v4100
    %vm4108 = vweird.f32 %v4101
    %vm4109 = vmor %vm4107, %vm4108
    %v4110 = vsel %vm4109, %v4101, %v4106
    %v4111 = vmul.f32 %v4099, %v4110
    %v4112 = vld [vmem:[%s33] sm:$0x1]
    %v4113 = vmul.f32 %v4094, %v4111
    %v4114 = vsub.f32 %v4112, %v4113
    %v4116 = vsel %vm1272, %v4111, 0
    %4118 = vmatpush.msra.mxu0 0.0
    %4119 = vmatpush.msra.mxu0 0.0
    %4120 = vmatpush.msra.mxu0 0.0
    %4121 = vmatpush.msra.mxu0 0.0
    %4122 = vmatpush.msra.mxu0 0.0
    %4123 = vmatpush.msra.mxu0 0.0
    %4124 = vmatpush.msra.mxu0 0.0
    %4125 = vmatpush.msra.mxu0 0.0
    %4126 = vmatpush.msra.mxu0 0.0
    %4127 = vmatpush.msra.mxu0 0.0
    %4128 = vmatpush.msra.mxu0 0.0
    %4129 = vmatpush.msra.mxu0 0.0
    %4130 = vmatpush.msra.mxu0 0.0
    %4131 = vmatpush.msra.mxu0 0.0
    %4132 = vmatpush.msra.mxu0 0.0
    %4133 = vmatpush.msra.mxu0 %v3905
    %4134 = vmatmul.f32.gmra.mxu0 %v4116
    %v4135 = vpop.f32.mrf.mxu0
    %v4136 = vadd.f32 0.0, %v4135
    %4137 = vdwg.mxu0
    %v4139 = vsel %vm1272, %v4114, 0
    %4141 = vmatpush.msra.mxu0 0.0
    %4142 = vmatpush.msra.mxu0 0.0
    %4143 = vmatpush.msra.mxu0 0.0
    %4144 = vmatpush.msra.mxu0 0.0
    %4145 = vmatpush.msra.mxu0 0.0
    %4146 = vmatpush.msra.mxu0 0.0
    %4147 = vmatpush.msra.mxu0 0.0
    %4148 = vmatpush.msra.mxu0 0.0
    %4149 = vmatpush.msra.mxu0 0.0
    %4150 = vmatpush.msra.mxu0 0.0
    %4151 = vmatpush.msra.mxu0 0.0
    %4152 = vmatpush.msra.mxu0 0.0
    %4153 = vmatpush.msra.mxu0 0.0
    %4154 = vmatpush.msra.mxu0 0.0
    %4155 = vmatpush.msra.mxu0 0.0
    %4156 = vmatpush.msra.mxu0 %v3905
    %4157 = vmatmul.f32.gmra.mxu0 %v4139
    %v4158 = vpop.f32.mrf.mxu0
    %v4159 = vadd.f32 0.0, %v4158
    %4160 = vdwg.mxu0
    %v4161 = vperm.slane %v4136, 0
    %v4162 = vmul.f32 %v4036, %v4161
    %v4163 = vperm.slane %v4159, 0
    %v4164 = vadd.f32 %v4162, %v4163
    %v4165 = vadd.f32 %v3730, %v4164
    %v4166 = vpack.c.bf16 %v4165, %v4165
    %v4167 = vld [vmem:[#allocation20] sm:$0xf]
    %v4168 = vld [vmem:[#allocation20 + $0x4] sm:$0xf]
    %v4169 = vld [vmem:[#allocation20 + $0x8] sm:$0xf]
    %v4170 = vld [vmem:[#allocation20 + $0xc] sm:$0xf]
    %v4171 = vld [vmem:[#allocation20 + $0x10] sm:$0xf]
    %v4172 = vld [vmem:[#allocation20 + $0x14] sm:$0xf]
    %v4173 = vld [vmem:[#allocation20 + $0x18] sm:$0xf]
    %v4174 = vld [vmem:[#allocation20 + $0x1c] sm:$0xf]
    %v4175 = vld [vmem:[#allocation20 + $0x20] sm:$0xf]
    %v4176 = vld [vmem:[#allocation20 + $0x24] sm:$0xf]
    %v4177 = vld [vmem:[#allocation20 + $0x28] sm:$0xf]
    %v4178 = vld [vmem:[#allocation20 + $0x2c] sm:$0xf]
    %v4179 = vld [vmem:[#allocation20 + $0x30] sm:$0xf]
    %v4180 = vld [vmem:[#allocation20 + $0x34] sm:$0xf]
    %v4181 = vld [vmem:[#allocation20 + $0x38] sm:$0xf]
    %v4182 = vld [vmem:[#allocation20 + $0x3c] sm:$0xf]
    %v4183 = vld [vmem:[%s49] sm:$0x1]
    %v4185 = vperm.slane %v4183, 0
    %v4203 = vunpack.c.l.b16 %v4167
    %v4204 = vunpack.c.l.b16 %v4168
    %v4205 = vunpack.c.l.b16 %v4169
    %v4206 = vunpack.c.l.b16 %v4170
    %v4207 = vunpack.c.l.b16 %v4171
    %v4208 = vunpack.c.l.b16 %v4172
    %v4209 = vunpack.c.l.b16 %v4173
    %v4210 = vunpack.c.l.b16 %v4174
    %v4211 = vunpack.c.l.b16 %v4175
    %v4212 = vunpack.c.l.b16 %v4176
    %v4213 = vunpack.c.l.b16 %v4177
    %v4214 = vunpack.c.l.b16 %v4178
    %v4215 = vunpack.c.l.b16 %v4179
    %v4216 = vunpack.c.l.b16 %v4180
    %v4217 = vunpack.c.l.b16 %v4181
    %v4218 = vunpack.c.l.b16 %v4182
    %v4219 = vpack.c.b16 %v4204, %v4203
    %v4220 = vpack.c.b16 %v4206, %v4205
    %v4221 = vpack.c.b16 %v4208, %v4207
    %v4222 = vpack.c.b16 %v4210, %v4209
    %v4223 = vpack.c.b16 %v4212, %v4211
    %v4224 = vpack.c.b16 %v4214, %v4213
    %v4225 = vpack.c.b16 %v4216, %v4215
    %v4226 = vpack.c.b16 %v4218, %v4217
    %4235 = vmatpush.bf16.msra.mxu0 %v4226
    %4236 = vmatpush.bf16.msra.mxu0 %v4225
    %4237 = vmatpush.bf16.msra.mxu0 %v4224
    %4238 = vmatpush.bf16.msra.mxu0 %v4223
    %4239 = vmatpush.bf16.msra.mxu0 %v4222
    %4240 = vmatpush.bf16.msra.mxu0 %v4221
    %4241 = vmatpush.bf16.msra.mxu0 %v4220
    %4242 = vmatpush.bf16.msra.mxu0 %v4219
    %4243 = vmatmul.bf16.gmra.mxu0 %v4166
    %v4244 = vpop.f32.mrf.mxu0
    %v4245 = vadd.f32 %v4185, %v4244
    %v4246 = vpop.f32.mrf.mxu0
    %4247 = vdwg.mxu0
    %vm4248 = vcmask 517120
    %v4249 = vsel %vm4248, %v4245, 0.0
    %v4250 = vrot.slane %v4249, 4
    %v4251 = vadd.f32 %v4249, %v4250
    %v4252 = vrot.slane %v4251, 2
    %v4253 = vadd.f32 %v4251, %v4252
    %v4254 = vrot.slane %v4253, 1
    %v4255 = vadd.f32 %v4253, %v4254
    %v4256 = vmul.f32 %v4245, %v4245
    %v4257 = vsel %vm4248, %v4256, 0.0
    %v4258 = vrot.slane %v4257, 4
    %v4259 = vadd.f32 %v4257, %v4258
    %v4260 = vrot.slane %v4259, 2
    %v4261 = vadd.f32 %v4259, %v4260
    %v4262 = vrot.slane %v4261, 1
    %v4263 = vadd.f32 %v4261, %v4262
    %v4264 = vld [vmem:[#allocation16] sm:$0xff]
    %v4265 = vld [vmem:[#allocation16 + $0x8] sm:$0xff]
    %v4266 = vld [vmem:[#allocation16 + $0x10] sm:$0xff]
    %v4267 = vld [vmem:[#allocation16 + $0x18] sm:$0xff]
    %v4268 = vld [vmem:[#allocation16 + $0x20] sm:$0xff]
    %v4269 = vld [vmem:[#allocation16 + $0x28] sm:$0xff]
    %v4270 = vld [vmem:[#allocation16 + $0x30] sm:$0xff]
    %v4271 = vld [vmem:[#allocation16 + $0x38] sm:$0xff]
    %vm4272 = vcmask 523264
    %v4274 = vsel %vm4272, %v4255, 0
    %4276 = vmatpush.msra.mxu0 0.0
    %4277 = vmatpush.msra.mxu0 0.0
    %4278 = vmatpush.msra.mxu0 0.0
    %4279 = vmatpush.msra.mxu0 0.0
    %4280 = vmatpush.msra.mxu0 0.0
    %4281 = vmatpush.msra.mxu0 0.0
    %4282 = vmatpush.msra.mxu0 0.0
    %4283 = vmatpush.msra.mxu0 0.0
    %4284 = vmatpush.msra.mxu0 %v4271
    %4285 = vmatpush.msra.mxu0 %v4270
    %4286 = vmatpush.msra.mxu0 %v4269
    %4287 = vmatpush.msra.mxu0 %v4268
    %4288 = vmatpush.msra.mxu0 %v4267
    %4289 = vmatpush.msra.mxu0 %v4266
    %4290 = vmatpush.msra.mxu0 %v4265
    %4291 = vmatpush.msra.mxu0 %v4264
    %4292 = vmatmul.f32.gmra.mxu0 %v4274
    %v4293 = vpop.f32.mrf.mxu0
    %v4294 = vadd.f32 0.0, %v4293
    %4295 = vdwg.mxu0
    %v4297 = vsel %vm4272, %v4263, 0
    %4299 = vmatpush.msra.mxu0 0.0
    %4300 = vmatpush.msra.mxu0 0.0
    %4301 = vmatpush.msra.mxu0 0.0
    %4302 = vmatpush.msra.mxu0 0.0
    %4303 = vmatpush.msra.mxu0 0.0
    %4304 = vmatpush.msra.mxu0 0.0
    %4305 = vmatpush.msra.mxu0 0.0
    %4306 = vmatpush.msra.mxu0 0.0
    %4307 = vmatpush.msra.mxu0 %v4271
    %4308 = vmatpush.msra.mxu0 %v4270
    %4309 = vmatpush.msra.mxu0 %v4269
    %4310 = vmatpush.msra.mxu0 %v4268
    %4311 = vmatpush.msra.mxu0 %v4267
    %4312 = vmatpush.msra.mxu0 %v4266
    %4313 = vmatpush.msra.mxu0 %v4265
    %4314 = vmatpush.msra.mxu0 %v4264
    %4315 = vmatmul.f32.gmra.mxu0 %v4297
    %v4316 = vpop.f32.mrf.mxu0
    %v4317 = vadd.f32 0.0, %v4316
    %4318 = vdwg.mxu0
    %v4319 = vmul.f32 %v4294, 0.125
    %v4320 = vmul.f32 %v4317, 0.125
    %v4321 = vmul.f32 %v4319, %v4319
    %v4322 = vsub.f32 %v4320, %v4321
    %v4323 = vmax.f32 %v4322, 0.0
    %v4324 = vld [vmem:[%s51] sm:$0x1]
    %v4325 = vadd.f32 %v4323, 1e-05
    %v4326 = vrsqrt.pop %v4325
    %v4327 = vmul.f32 %v4326, %v4325
    %v4328 = vmul.f32 %v4327, %v4326
    %v4329 = vmul.f32 0.5, %v4328
    %v4330 = vsub.f32 1.5, %v4329
    %v4331 = vmul.f32 %v4326, %v4330
    %vm4332 = vweird.f32 %v4325
    %vm4333 = vweird.f32 %v4326
    %vm4334 = vmor %vm4332, %vm4333
    %v4335 = vsel %vm4334, %v4326, %v4331
    %v4336 = vmul.f32 %v4324, %v4335
    %v4337 = vld [vmem:[%s53] sm:$0x1]
    %v4338 = vmul.f32 %v4319, %v4336
    %v4339 = vsub.f32 %v4337, %v4338
    %v4340 = vld [vmem:[#allocation17] sm:$0xff]
    %v4341 = vld [vmem:[#allocation17 + $0x8] sm:$0xff]
    %vm4342 = vcmask 130048
    %v4344 = vsel %vm4342, %v4336, 0
    %4346 = vmatpush.msra.mxu0 0.0
    %4347 = vmatpush.msra.mxu0 0.0
    %4348 = vmatpush.msra.mxu0 0.0
    %4349 = vmatpush.msra.mxu0 0.0
    %4350 = vmatpush.msra.mxu0 0.0
    %4351 = vmatpush.msra.mxu0 0.0
    %4352 = vmatpush.msra.mxu0 0.0
    %4353 = vmatpush.msra.mxu0 0.0
    %4354 = vmatpush.msra.mxu0 0.0
    %4355 = vmatpush.msra.mxu0 0.0
    %4356 = vmatpush.msra.mxu0 0.0
    %4357 = vmatpush.msra.mxu0 0.0
    %4358 = vmatpush.msra.mxu0 0.0
    %4359 = vmatpush.msra.mxu0 0.0
    %4360 = vmatpush.msra.mxu0 %v4341
    %4361 = vmatpush.msra.mxu0 %v4340
    %4362 = vmatmul.f32.gmra.mxu0 %v4344
    %v4363 = vpop.f32.mrf.mxu0
    %v4364 = vadd.f32 0.0, %v4363
    %4365 = vdwg.mxu0
    %v4367 = vsel %vm4342, %v4339, 0
    %4369 = vmatpush.msra.mxu0 0.0
    %4370 = vmatpush.msra.mxu0 0.0
    %4371 = vmatpush.msra.mxu0 0.0
    %4372 = vmatpush.msra.mxu0 0.0
    %4373 = vmatpush.msra.mxu0 0.0
    %4374 = vmatpush.msra.mxu0 0.0
    %4375 = vmatpush.msra.mxu0 0.0
    %4376 = vmatpush.msra.mxu0 0.0
    %4377 = vmatpush.msra.mxu0 0.0
    %4378 = vmatpush.msra.mxu0 0.0
    %4379 = vmatpush.msra.mxu0 0.0
    %4380 = vmatpush.msra.mxu0 0.0
    %4381 = vmatpush.msra.mxu0 0.0
    %4382 = vmatpush.msra.mxu0 0.0
    %4383 = vmatpush.msra.mxu0 %v4341
    %4384 = vmatpush.msra.mxu0 %v4340
    %4385 = vmatmul.f32.gmra.mxu0 %v4367
    %v4386 = vpop.f32.mrf.mxu0
    %v4387 = vadd.f32 0.0, %v4386
    %4388 = vdwg.mxu0
    %v4389 = vperm.slane %v4364, 0
    %v4390 = vmul.f32 %v4245, %v4389
    %v4391 = vperm.slane %v4387, 0
    %v4392 = vadd.f32 %v4390, %v4391
    %v4393 = vld [vmem:[#allocation19] sm:$0xf]
    %v4394 = vld [vmem:[#allocation19 + $0x4] sm:$0xf]
    %v4395 = vld [vmem:[#allocation19 + $0x8] sm:$0xf]
    %v4396 = vld [vmem:[#allocation19 + $0xc] sm:$0xf]
    %v4397 = vld [vmem:[#allocation19 + $0x10] sm:$0xf]
    %v4398 = vld [vmem:[#allocation19 + $0x14] sm:$0xf]
    %v4399 = vld [vmem:[#allocation19 + $0x18] sm:$0xf]
    %v4400 = vld [vmem:[#allocation19 + $0x1c] sm:$0xf]
    %v4401 = vld [vmem:[#allocation19 + $0x20] sm:$0xf]
    %v4402 = vld [vmem:[#allocation19 + $0x24] sm:$0xf]
    %v4403 = vld [vmem:[#allocation19 + $0x28] sm:$0xf]
    %v4404 = vld [vmem:[#allocation19 + $0x2c] sm:$0xf]
    %v4405 = vld [vmem:[#allocation19 + $0x30] sm:$0xf]
    %v4406 = vld [vmem:[#allocation19 + $0x34] sm:$0xf]
    %v4407 = vld [vmem:[#allocation19 + $0x38] sm:$0xf]
    %v4408 = vld [vmem:[#allocation19 + $0x3c] sm:$0xf]
    %v4409 = vld [vmem:[%s41] sm:$0x1]
    %v4411 = vperm.slane %v4409, 0
    %v4429 = vunpack.c.l.b16 %v4393
    %v4430 = vunpack.c.l.b16 %v4394
    %v4431 = vunpack.c.l.b16 %v4395
    %v4432 = vunpack.c.l.b16 %v4396
    %v4433 = vunpack.c.l.b16 %v4397
    %v4434 = vunpack.c.l.b16 %v4398
    %v4435 = vunpack.c.l.b16 %v4399
    %v4436 = vunpack.c.l.b16 %v4400
    %v4437 = vunpack.c.l.b16 %v4401
    %v4438 = vunpack.c.l.b16 %v4402
    %v4439 = vunpack.c.l.b16 %v4403
    %v4440 = vunpack.c.l.b16 %v4404
    %v4441 = vunpack.c.l.b16 %v4405
    %v4442 = vunpack.c.l.b16 %v4406
    %v4443 = vunpack.c.l.b16 %v4407
    %v4444 = vunpack.c.l.b16 %v4408
    %v4445 = vpack.c.b16 %v4430, %v4429
    %v4446 = vpack.c.b16 %v4432, %v4431
    %v4447 = vpack.c.b16 %v4434, %v4433
    %v4448 = vpack.c.b16 %v4436, %v4435
    %v4449 = vpack.c.b16 %v4438, %v4437
    %v4450 = vpack.c.b16 %v4440, %v4439
    %v4451 = vpack.c.b16 %v4442, %v4441
    %v4452 = vpack.c.b16 %v4444, %v4443
    %4461 = vmatpush.bf16.msra.mxu0 %v4452
    %4462 = vmatpush.bf16.msra.mxu0 %v4451
    %4463 = vmatpush.bf16.msra.mxu0 %v4450
    %4464 = vmatpush.bf16.msra.mxu0 %v4449
    %4465 = vmatpush.bf16.msra.mxu0 %v4448
    %4466 = vmatpush.bf16.msra.mxu0 %v4447
    %4467 = vmatpush.bf16.msra.mxu0 %v4446
    %4468 = vmatpush.bf16.msra.mxu0 %v4445
    %4469 = vmatmul.bf16.gmra.mxu0 %v4166
    %v4470 = vpop.f32.mrf.mxu0
    %v4471 = vadd.f32 %v4411, %v4470
    %v4472 = vpop.f32.mrf.mxu0
    %4473 = vdwg.mxu0
    %v4474 = vsel %vm4248, %v4471, 0.0
    %v4475 = vrot.slane %v4474, 4
    %v4476 = vadd.f32 %v4474, %v4475
    %v4477 = vrot.slane %v4476, 2
    %v4478 = vadd.f32 %v4476, %v4477
    %v4479 = vrot.slane %v4478, 1
    %v4480 = vadd.f32 %v4478, %v4479
    %v4481 = vmul.f32 %v4471, %v4471
    %v4482 = vsel %vm4248, %v4481, 0.0
    %v4483 = vrot.slane %v4482, 4
    %v4484 = vadd.f32 %v4482, %v4483
    %v4485 = vrot.slane %v4484, 2
    %v4486 = vadd.f32 %v4484, %v4485
    %v4487 = vrot.slane %v4486, 1
    %v4488 = vadd.f32 %v4486, %v4487
    %v4490 = vsel %vm4272, %v4480, 0
    %4492 = vmatpush.msra.mxu0 0.0
    %4493 = vmatpush.msra.mxu0 0.0
    %4494 = vmatpush.msra.mxu0 0.0
    %4495 = vmatpush.msra.mxu0 0.0
    %4496 = vmatpush.msra.mxu0 0.0
    %4497 = vmatpush.msra.mxu0 0.0
    %4498 = vmatpush.msra.mxu0 0.0
    %4499 = vmatpush.msra.mxu0 0.0
    %4500 = vmatpush.msra.mxu0 %v4271
    %4501 = vmatpush.msra.mxu0 %v4270
    %4502 = vmatpush.msra.mxu0 %v4269
    %4503 = vmatpush.msra.mxu0 %v4268
    %4504 = vmatpush.msra.mxu0 %v4267
    %4505 = vmatpush.msra.mxu0 %v4266
    %4506 = vmatpush.msra.mxu0 %v4265
    %4507 = vmatpush.msra.mxu0 %v4264
    %4508 = vmatmul.f32.gmra.mxu0 %v4490
    %v4509 = vpop.f32.mrf.mxu0
    %v4510 = vadd.f32 0.0, %v4509
    %4511 = vdwg.mxu0
    %v4513 = vsel %vm4272, %v4488, 0
    %4515 = vmatpush.msra.mxu0 0.0
    %4516 = vmatpush.msra.mxu0 0.0
    %4517 = vmatpush.msra.mxu0 0.0
    %4518 = vmatpush.msra.mxu0 0.0
    %4519 = vmatpush.msra.mxu0 0.0
    %4520 = vmatpush.msra.mxu0 0.0
    %4521 = vmatpush.msra.mxu0 0.0
    %4522 = vmatpush.msra.mxu0 0.0
    %4523 = vmatpush.msra.mxu0 %v4271
    %4524 = vmatpush.msra.mxu0 %v4270
    %4525 = vmatpush.msra.mxu0 %v4269
    %4526 = vmatpush.msra.mxu0 %v4268
    %4527 = vmatpush.msra.mxu0 %v4267
    %4528 = vmatpush.msra.mxu0 %v4266
    %4529 = vmatpush.msra.mxu0 %v4265
    %4530 = vmatpush.msra.mxu0 %v4264
    %4531 = vmatmul.f32.gmra.mxu0 %v4513
    %v4532 = vpop.f32.mrf.mxu0
    %v4533 = vadd.f32 0.0, %v4532
    %4534 = vdwg.mxu0
    %v4535 = vmul.f32 %v4510, 0.125
    %v4536 = vmul.f32 %v4533, 0.125
    %v4537 = vmul.f32 %v4535, %v4535
    %v4538 = vsub.f32 %v4536, %v4537
    %v4539 = vmax.f32 %v4538, 0.0
    %v4540 = vld [vmem:[%s43] sm:$0x1]
    %v4541 = vadd.f32 %v4539, 1e-05
    %v4542 = vrsqrt.pop %v4541
    %v4543 = vmul.f32 %v4542, %v4541
    %v4544 = vmul.f32 %v4543, %v4542
    %v4545 = vmul.f32 0.5, %v4544
    %v4546 = vsub.f32 1.5, %v4545
    %v4547 = vmul.f32 %v4542, %v4546
    %vm4548 = vweird.f32 %v4541
    %vm4549 = vweird.f32 %v4542
    %vm4550 = vmor %vm4548, %vm4549
    %v4551 = vsel %vm4550, %v4542, %v4547
    %v4552 = vmul.f32 %v4540, %v4551
    %v4553 = vld [vmem:[%s45] sm:$0x1]
    %v4554 = vmul.f32 %v4535, %v4552
    %v4555 = vsub.f32 %v4553, %v4554
    %v4557 = vsel %vm4342, %v4552, 0
    %4559 = vmatpush.msra.mxu0 0.0
    %4560 = vmatpush.msra.mxu0 0.0
    %4561 = vmatpush.msra.mxu0 0.0
    %4562 = vmatpush.msra.mxu0 0.0
    %4563 = vmatpush.msra.mxu0 0.0
    %4564 = vmatpush.msra.mxu0 0.0
    %4565 = vmatpush.msra.mxu0 0.0
    %4566 = vmatpush.msra.mxu0 0.0
    %4567 = vmatpush.msra.mxu0 0.0
    %4568 = vmatpush.msra.mxu0 0.0
    %4569 = vmatpush.msra.mxu0 0.0
    %4570 = vmatpush.msra.mxu0 0.0
    %4571 = vmatpush.msra.mxu0 0.0
    %4572 = vmatpush.msra.mxu0 0.0
    %4573 = vmatpush.msra.mxu0 %v4341
    %4574 = vmatpush.msra.mxu0 %v4340
    %4575 = vmatmul.f32.gmra.mxu0 %v4557
    %v4576 = vpop.f32.mrf.mxu0
    %v4577 = vadd.f32 0.0, %v4576
    %4578 = vdwg.mxu0
    %v4580 = vsel %vm4342, %v4555, 0
    %4582 = vmatpush.msra.mxu0 0.0
    %4583 = vmatpush.msra.mxu0 0.0
    %4584 = vmatpush.msra.mxu0 0.0
    %4585 = vmatpush.msra.mxu0 0.0
    %4586 = vmatpush.msra.mxu0 0.0
    %4587 = vmatpush.msra.mxu0 0.0
    %4588 = vmatpush.msra.mxu0 0.0
    %4589 = vmatpush.msra.mxu0 0.0
    %4590 = vmatpush.msra.mxu0 0.0
    %4591 = vmatpush.msra.mxu0 0.0
    %4592 = vmatpush.msra.mxu0 0.0
    %4593 = vmatpush.msra.mxu0 0.0
    %4594 = vmatpush.msra.mxu0 0.0
    %4595 = vmatpush.msra.mxu0 0.0
    %4596 = vmatpush.msra.mxu0 %v4341
    %4597 = vmatpush.msra.mxu0 %v4340
    %4598 = vmatmul.f32.gmra.mxu0 %v4580
    %v4599 = vpop.f32.mrf.mxu0
    %v4600 = vadd.f32 0.0, %v4599
    %4601 = vdwg.mxu0
    %v4602 = vperm.slane %v4577, 0
    %v4603 = vmul.f32 %v4471, %v4602
    %v4604 = vperm.slane %v4600, 0
    %v4605 = vadd.f32 %v4603, %v4604
    %v4606 = vmax.f32 %v4605, 0.0
    %v4607 = vpack.c.bf16 %v4606, %v4606
    %v4608 = vld [vmem:[#allocation22] sm:$0xf]
    %v4609 = vld [vmem:[#allocation22 + $0x4] sm:$0xf]
    %v4610 = vld [vmem:[#allocation22 + $0x8] sm:$0xf]
    %v4611 = vld [vmem:[#allocation22 + $0xc] sm:$0xf]
    %v4612 = vld [vmem:[#allocation22 + $0x10] sm:$0xf]
    %v4613 = vld [vmem:[#allocation22 + $0x14] sm:$0xf]
    %v4614 = vld [vmem:[#allocation22 + $0x18] sm:$0xf]
    %v4615 = vld [vmem:[#allocation22 + $0x1c] sm:$0xf]
    %v4616 = vld [vmem:[%s57] sm:$0x1]
    %v4618 = vperm.slane %v4616, 0
    %v4628 = vunpack.c.l.b16 %v4608
    %v4629 = vunpack.c.l.b16 %v4609
    %v4630 = vunpack.c.l.b16 %v4610
    %v4631 = vunpack.c.l.b16 %v4611
    %v4632 = vunpack.c.l.b16 %v4612
    %v4633 = vunpack.c.l.b16 %v4613
    %v4634 = vunpack.c.l.b16 %v4614
    %v4635 = vunpack.c.l.b16 %v4615
    %v4636 = vpack.c.b16 %v4629, %v4628
    %v4637 = vpack.c.b16 %v4631, %v4630
    %v4638 = vpack.c.b16 %v4633, %v4632
    %v4639 = vpack.c.b16 %v4635, %v4634
    %v4645 = vsel %vm4272, %v4607, 0
    %4647 = vmatpush.bf16.msra.mxu0 0
    %4648 = vmatpush.bf16.msra.mxu0 0
    %4649 = vmatpush.bf16.msra.mxu0 0
    %4650 = vmatpush.bf16.msra.mxu0 0
    %4651 = vmatpush.bf16.msra.mxu0 %v4639
    %4652 = vmatpush.bf16.msra.mxu0 %v4638
    %4653 = vmatpush.bf16.msra.mxu0 %v4637
    %4654 = vmatpush.bf16.msra.mxu0 %v4636
    %4655 = vmatmul.bf16.gmra.mxu0 %v4645
    %v4656 = vpop.f32.mrf.mxu0
    %v4657 = vadd.f32 %v4618, %v4656
    %v4658 = vpop.f32.mrf.mxu0
    %4659 = vdwg.mxu0
    %v4660 = vsel %vm4248, %v4657, 0.0
    %v4661 = vrot.slane %v4660, 4
    %v4662 = vadd.f32 %v4660, %v4661
    %v4663 = vrot.slane %v4662, 2
    %v4664 = vadd.f32 %v4662, %v4663
    %v4665 = vrot.slane %v4664, 1
    %v4666 = vadd.f32 %v4664, %v4665
    %v4667 = vmul.f32 %v4657, %v4657
    %v4668 = vsel %vm4248, %v4667, 0.0
    %v4669 = vrot.slane %v4668, 4
    %v4670 = vadd.f32 %v4668, %v4669
    %v4671 = vrot.slane %v4670, 2
    %v4672 = vadd.f32 %v4670, %v4671
    %v4673 = vrot.slane %v4672, 1
    %v4674 = vadd.f32 %v4672, %v4673
    %v4676 = vsel %vm4272, %v4666, 0
    %4678 = vmatpush.msra.mxu0 0.0
    %4679 = vmatpush.msra.mxu0 0.0
    %4680 = vmatpush.msra.mxu0 0.0
    %4681 = vmatpush.msra.mxu0 0.0
    %4682 = vmatpush.msra.mxu0 0.0
    %4683 = vmatpush.msra.mxu0 0.0
    %4684 = vmatpush.msra.mxu0 0.0
    %4685 = vmatpush.msra.mxu0 0.0
    %4686 = vmatpush.msra.mxu0 %v4271
    %4687 = vmatpush.msra.mxu0 %v4270
    %4688 = vmatpush.msra.mxu0 %v4269
    %4689 = vmatpush.msra.mxu0 %v4268
    %4690 = vmatpush.msra.mxu0 %v4267
    %4691 = vmatpush.msra.mxu0 %v4266
    %4692 = vmatpush.msra.mxu0 %v4265
    %4693 = vmatpush.msra.mxu0 %v4264
    %4694 = vmatmul.f32.gmra.mxu0 %v4676
    %v4695 = vpop.f32.mrf.mxu0
    %v4696 = vadd.f32 0.0, %v4695
    %4697 = vdwg.mxu0
    %v4699 = vsel %vm4272, %v4674, 0
    %4701 = vmatpush.msra.mxu0 0.0
    %4702 = vmatpush.msra.mxu0 0.0
    %4703 = vmatpush.msra.mxu0 0.0
    %4704 = vmatpush.msra.mxu0 0.0
    %4705 = vmatpush.msra.mxu0 0.0
    %4706 = vmatpush.msra.mxu0 0.0
    %4707 = vmatpush.msra.mxu0 0.0
    %4708 = vmatpush.msra.mxu0 0.0
    %4709 = vmatpush.msra.mxu0 %v4271
    %4710 = vmatpush.msra.mxu0 %v4270
    %4711 = vmatpush.msra.mxu0 %v4269
    %4712 = vmatpush.msra.mxu0 %v4268
    %4713 = vmatpush.msra.mxu0 %v4267
    %4714 = vmatpush.msra.mxu0 %v4266
    %4715 = vmatpush.msra.mxu0 %v4265
    %4716 = vmatpush.msra.mxu0 %v4264
    %4717 = vmatmul.f32.gmra.mxu0 %v4699
    %v4718 = vpop.f32.mrf.mxu0
    %v4719 = vadd.f32 0.0, %v4718
    %4720 = vdwg.mxu0
    %v4721 = vmul.f32 %v4696, 0.125
    %v4722 = vmul.f32 %v4719, 0.125
    %v4723 = vmul.f32 %v4721, %v4721
    %v4724 = vsub.f32 %v4722, %v4723
    %v4725 = vmax.f32 %v4724, 0.0
    %v4726 = vld [vmem:[%s59] sm:$0x1]
    %v4727 = vadd.f32 %v4725, 1e-05
    %v4728 = vrsqrt.pop %v4727
    %v4729 = vmul.f32 %v4728, %v4727
    %v4730 = vmul.f32 %v4729, %v4728
    %v4731 = vmul.f32 0.5, %v4730
    %v4732 = vsub.f32 1.5, %v4731
    %v4733 = vmul.f32 %v4728, %v4732
    %vm4734 = vweird.f32 %v4727
    %vm4735 = vweird.f32 %v4728
    %vm4736 = vmor %vm4734, %vm4735
    %v4737 = vsel %vm4736, %v4728, %v4733
    %v4738 = vmul.f32 %v4726, %v4737
    %v4739 = vld [vmem:[%s61] sm:$0x1]
    %v4740 = vmul.f32 %v4721, %v4738
    %v4741 = vsub.f32 %v4739, %v4740
    %v4743 = vsel %vm4342, %v4738, 0
    %4745 = vmatpush.msra.mxu0 0.0
    %4746 = vmatpush.msra.mxu0 0.0
    %4747 = vmatpush.msra.mxu0 0.0
    %4748 = vmatpush.msra.mxu0 0.0
    %4749 = vmatpush.msra.mxu0 0.0
    %4750 = vmatpush.msra.mxu0 0.0
    %4751 = vmatpush.msra.mxu0 0.0
    %4752 = vmatpush.msra.mxu0 0.0
    %4753 = vmatpush.msra.mxu0 0.0
    %4754 = vmatpush.msra.mxu0 0.0
    %4755 = vmatpush.msra.mxu0 0.0
    %4756 = vmatpush.msra.mxu0 0.0
    %4757 = vmatpush.msra.mxu0 0.0
    %4758 = vmatpush.msra.mxu0 0.0
    %4759 = vmatpush.msra.mxu0 %v4341
    %4760 = vmatpush.msra.mxu0 %v4340
    %4761 = vmatmul.f32.gmra.mxu0 %v4743
    %v4762 = vpop.f32.mrf.mxu0
    %v4763 = vadd.f32 0.0, %v4762
    %4764 = vdwg.mxu0
    %v4766 = vsel %vm4342, %v4741, 0
    %4768 = vmatpush.msra.mxu0 0.0
    %4769 = vmatpush.msra.mxu0 0.0
    %4770 = vmatpush.msra.mxu0 0.0
    %4771 = vmatpush.msra.mxu0 0.0
    %4772 = vmatpush.msra.mxu0 0.0
    %4773 = vmatpush.msra.mxu0 0.0
    %4774 = vmatpush.msra.mxu0 0.0
    %4775 = vmatpush.msra.mxu0 0.0
    %4776 = vmatpush.msra.mxu0 0.0
    %4777 = vmatpush.msra.mxu0 0.0
    %4778 = vmatpush.msra.mxu0 0.0
    %4779 = vmatpush.msra.mxu0 0.0
    %4780 = vmatpush.msra.mxu0 0.0
    %4781 = vmatpush.msra.mxu0 0.0
    %4782 = vmatpush.msra.mxu0 %v4341
    %4783 = vmatpush.msra.mxu0 %v4340
    %4784 = vmatmul.f32.gmra.mxu0 %v4766
    %v4785 = vpop.f32.mrf.mxu0
    %v4786 = vadd.f32 0.0, %v4785
    %4787 = vdwg.mxu0
    %v4788 = vperm.slane %v4763, 0
    %v4789 = vmul.f32 %v4657, %v4788
    %v4790 = vperm.slane %v4786, 0
    %v4791 = vadd.f32 %v4789, %v4790
    %v4792 = vadd.f32 %v4392, %v4791
    %v4793 = vpack.c.bf16 %v4792, %v4792
    %v4794 = vld [vmem:[#allocation26] sm:$0xf]
    %v4795 = vld [vmem:[#allocation26 + $0x4] sm:$0xf]
    %v4796 = vld [vmem:[#allocation26 + $0x8] sm:$0xf]
    %v4797 = vld [vmem:[#allocation26 + $0xc] sm:$0xf]
    %v4798 = vld [vmem:[#allocation26 + $0x10] sm:$0xf]
    %v4799 = vld [vmem:[#allocation26 + $0x14] sm:$0xf]
    %v4800 = vld [vmem:[#allocation26 + $0x18] sm:$0xf]
    %v4801 = vld [vmem:[#allocation26 + $0x1c] sm:$0xf]
    %v4802 = vld [vmem:[#allocation28] sm:$0x1]
    %v4804 = vperm.slane %v4802, 0
    %v4814 = vunpack.c.l.b16 %v4794
    %v4815 = vunpack.c.l.b16 %v4795
    %v4816 = vunpack.c.l.b16 %v4796
    %v4817 = vunpack.c.l.b16 %v4797
    %v4818 = vunpack.c.l.b16 %v4798
    %v4819 = vunpack.c.l.b16 %v4799
    %v4820 = vunpack.c.l.b16 %v4800
    %v4821 = vunpack.c.l.b16 %v4801
    %v4822 = vpack.c.b16 %v4815, %v4814
    %v4823 = vpack.c.b16 %v4817, %v4816
    %v4824 = vpack.c.b16 %v4819, %v4818
    %v4825 = vpack.c.b16 %v4821, %v4820
    %v4831 = vsel %vm4272, %v4793, 0
    %4833 = vmatpush.bf16.msra.mxu0 0
    %4834 = vmatpush.bf16.msra.mxu0 0
    %4835 = vmatpush.bf16.msra.mxu0 0
    %4836 = vmatpush.bf16.msra.mxu0 0
    %4837 = vmatpush.bf16.msra.mxu0 %v4825
    %4838 = vmatpush.bf16.msra.mxu0 %v4824
    %4839 = vmatpush.bf16.msra.mxu0 %v4823
    %4840 = vmatpush.bf16.msra.mxu0 %v4822
    %4841 = vmatmul.bf16.gmra.mxu0 %v4831
    %v4842 = vpop.f32.mrf.mxu0
    %v4843 = vadd.f32 %v4804, %v4842
    %v4844 = vpop.f32.mrf.mxu0
    %4845 = vdwg.mxu0
    %vm4846 = vcmask 254976
    %v4847 = vsel %vm4846, %v4843, 0.0
    %v4848 = vrot.slane %v4847, 4
    %v4849 = vadd.f32 %v4847, %v4848
    %v4850 = vrot.slane %v4849, 2
    %v4851 = vadd.f32 %v4849, %v4850
    %v4852 = vrot.slane %v4851, 1
    %v4853 = vadd.f32 %v4851, %v4852
    %v4854 = vmul.f32 %v4843, %v4843
    %v4855 = vsel %vm4846, %v4854, 0.0
    %v4856 = vrot.slane %v4855, 4
    %v4857 = vadd.f32 %v4855, %v4856
    %v4858 = vrot.slane %v4857, 2
    %v4859 = vadd.f32 %v4857, %v4858
    %v4860 = vrot.slane %v4859, 1
    %v4861 = vadd.f32 %v4859, %v4860
    %v4862 = vmul.f32 %v4853, 0.5
    %v4863 = vmul.f32 %v4861, 0.5
    %v4864 = vmul.f32 %v4862, %v4862
    %v4865 = vsub.f32 %v4863, %v4864
    %v4866 = vmax.f32 %v4865, 0.0
    %v4867 = vld [vmem:[%s75] sm:$0x1]
    %v4868 = vadd.f32 %v4866, 1e-05
    %v4869 = vrsqrt.pop %v4868
    %v4870 = vmul.f32 %v4869, %v4868
    %v4871 = vmul.f32 %v4870, %v4869
    %v4872 = vmul.f32 0.5, %v4871
    %v4873 = vsub.f32 1.5, %v4872
    %v4874 = vmul.f32 %v4869, %v4873
    %vm4875 = vweird.f32 %v4868
    %vm4876 = vweird.f32 %v4869
    %vm4877 = vmor %vm4875, %vm4876
    %v4878 = vsel %vm4877, %v4869, %v4874
    %v4879 = vmul.f32 %v4867, %v4878
    %v4880 = vld [vmem:[%s77] sm:$0x1]
    %v4881 = vmul.f32 %v4862, %v4879
    %v4882 = vsub.f32 %v4880, %v4881
    %v4884 = vperm.slane %v4879, 0
    %v4886 = vmul.f32 %v4843, %v4884
    %v4888 = vperm.slane %v4882, 0
    %v4890 = vadd.f32 %v4886, %v4888
    %v4891 = vld [vmem:[#allocation23] sm:$0xf]
    %v4892 = vld [vmem:[#allocation23 + $0x4] sm:$0xf]
    %v4893 = vld [vmem:[#allocation23 + $0x8] sm:$0xf]
    %v4894 = vld [vmem:[#allocation23 + $0xc] sm:$0xf]
    %v4895 = vld [vmem:[#allocation23 + $0x10] sm:$0xf]
    %v4896 = vld [vmem:[#allocation23 + $0x14] sm:$0xf]
    %v4897 = vld [vmem:[#allocation23 + $0x18] sm:$0xf]
    %v4898 = vld [vmem:[#allocation23 + $0x1c] sm:$0xf]
    %v4899 = vld [vmem:[#allocation25] sm:$0x1]
    %v4901 = vperm.slane %v4899, 0
    %v4911 = vunpack.c.l.b16 %v4891
    %v4912 = vunpack.c.l.b16 %v4892
    %v4913 = vunpack.c.l.b16 %v4893
    %v4914 = vunpack.c.l.b16 %v4894
    %v4915 = vunpack.c.l.b16 %v4895
    %v4916 = vunpack.c.l.b16 %v4896
    %v4917 = vunpack.c.l.b16 %v4897
    %v4918 = vunpack.c.l.b16 %v4898
    %v4919 = vpack.c.b16 %v4912, %v4911
    %v4920 = vpack.c.b16 %v4914, %v4913
    %v4921 = vpack.c.b16 %v4916, %v4915
    %v4922 = vpack.c.b16 %v4918, %v4917
    %4927 = vmatpush.bf16.msra.mxu0 0
    %4928 = vmatpush.bf16.msra.mxu0 0
    %4929 = vmatpush.bf16.msra.mxu0 0
    %4930 = vmatpush.bf16.msra.mxu0 0
    %4931 = vmatpush.bf16.msra.mxu0 %v4922
    %4932 = vmatpush.bf16.msra.mxu0 %v4921
    %4933 = vmatpush.bf16.msra.mxu0 %v4920
    %4934 = vmatpush.bf16.msra.mxu0 %v4919
    %4935 = vmatmul.bf16.gmra.mxu0 %v4831
    %v4936 = vpop.f32.mrf.mxu0
    %v4937 = vadd.f32 %v4901, %v4936
    %v4938 = vpop.f32.mrf.mxu0
    %4939 = vdwg.mxu0
    %v4940 = vsel %vm4846, %v4937, 0.0
    %v4941 = vrot.slane %v4940, 4
    %v4942 = vadd.f32 %v4940, %v4941
    %v4943 = vrot.slane %v4942, 2
    %v4944 = vadd.f32 %v4942, %v4943
    %v4945 = vrot.slane %v4944, 1
    %v4946 = vadd.f32 %v4944, %v4945
    %v4947 = vmul.f32 %v4937, %v4937
    %v4948 = vsel %vm4846, %v4947, 0.0
    %v4949 = vrot.slane %v4948, 4
    %v4950 = vadd.f32 %v4948, %v4949
    %v4951 = vrot.slane %v4950, 2
    %v4952 = vadd.f32 %v4950, %v4951
    %v4953 = vrot.slane %v4952, 1
    %v4954 = vadd.f32 %v4952, %v4953
    %v4955 = vmul.f32 %v4946, 0.5
    %v4956 = vmul.f32 %v4954, 0.5
    %v4957 = vmul.f32 %v4955, %v4955
    %v4958 = vsub.f32 %v4956, %v4957
    %v4959 = vmax.f32 %v4958, 0.0
    %v4960 = vld [vmem:[%s67] sm:$0x1]
    %v4961 = vadd.f32 %v4959, 1e-05
    %v4962 = vrsqrt.pop %v4961
    %v4963 = vmul.f32 %v4962, %v4961
    %v4964 = vmul.f32 %v4963, %v4962
    %v4965 = vmul.f32 0.5, %v4964
    %v4966 = vsub.f32 1.5, %v4965
    %v4967 = vmul.f32 %v4962, %v4966
    %vm4968 = vweird.f32 %v4961
    %vm4969 = vweird.f32 %v4962
    %vm4970 = vmor %vm4968, %vm4969
    %v4971 = vsel %vm4970, %v4962, %v4967
    %v4972 = vmul.f32 %v4960, %v4971
    %v4973 = vld [vmem:[%s69] sm:$0x1]
    %v4974 = vmul.f32 %v4955, %v4972
    %v4975 = vsub.f32 %v4973, %v4974
    %v4977 = vperm.slane %v4972, 0
    %v4979 = vmul.f32 %v4937, %v4977
    %v4981 = vperm.slane %v4975, 0
    %v4983 = vadd.f32 %v4979, %v4981
    %v4984 = vmax.f32 %v4983, 0.0
    %v4985 = vpack.c.bf16 %v4984, %v4984
    %v4986 = vld [vmem:[#allocation29] sm:$0xf]
    %v4987 = vld [vmem:[#allocation29 + $0x4] sm:$0xf]
    %v4988 = vld [vmem:[#allocation29 + $0x8] sm:$0xf]
    %v4989 = vld [vmem:[#allocation29 + $0xc] sm:$0xf]
    %v4990 = vld [vmem:[#allocation31] sm:$0x1]
    %v4992 = vperm.slane %v4990, 0
    %v4998 = vunpack.c.l.b16 %v4986
    %v4999 = vunpack.c.l.b16 %v4987
    %v5000 = vunpack.c.l.b16 %v4988
    %v5001 = vunpack.c.l.b16 %v4989
    %v5002 = vpack.c.b16 %v4999, %v4998
    %v5003 = vpack.c.b16 %v5001, %v5000
    %vm5006 = vcmask 261120
    %v5008 = vsel %vm5006, %v4985, 0
    %5010 = vmatpush.bf16.msra.mxu0 0
    %5011 = vmatpush.bf16.msra.mxu0 0
    %5012 = vmatpush.bf16.msra.mxu0 0
    %5013 = vmatpush.bf16.msra.mxu0 0
    %5014 = vmatpush.bf16.msra.mxu0 0
    %5015 = vmatpush.bf16.msra.mxu0 0
    %5016 = vmatpush.bf16.msra.mxu0 %v5003
    %5017 = vmatpush.bf16.msra.mxu0 %v5002
    %5018 = vmatmul.bf16.gmra.mxu0 %v5008
    %v5019 = vpop.f32.mrf.mxu0
    %v5020 = vadd.f32 %v4992, %v5019
    %v5021 = vpop.f32.mrf.mxu0
    %5022 = vdwg.mxu0
    %v5023 = vsel %vm4846, %v5020, 0.0
    %v5024 = vrot.slane %v5023, 4
    %v5025 = vadd.f32 %v5023, %v5024
    %v5026 = vrot.slane %v5025, 2
    %v5027 = vadd.f32 %v5025, %v5026
    %v5028 = vrot.slane %v5027, 1
    %v5029 = vadd.f32 %v5027, %v5028
    %v5030 = vmul.f32 %v5020, %v5020
    %v5031 = vsel %vm4846, %v5030, 0.0
    %v5032 = vrot.slane %v5031, 4
    %v5033 = vadd.f32 %v5031, %v5032
    %v5034 = vrot.slane %v5033, 2
    %v5035 = vadd.f32 %v5033, %v5034
    %v5036 = vrot.slane %v5035, 1
    %v5037 = vadd.f32 %v5035, %v5036
    %v5038 = vmul.f32 %v5029, 0.5
    %v5039 = vmul.f32 %v5037, 0.5
    %v5040 = vmul.f32 %v5038, %v5038
    %v5041 = vsub.f32 %v5039, %v5040
    %v5042 = vmax.f32 %v5041, 0.0
    %v5043 = vld [vmem:[%s83] sm:$0x1]
    %v5044 = vadd.f32 %v5042, 1e-05
    %v5045 = vrsqrt.pop %v5044
    %v5046 = vmul.f32 %v5045, %v5044
    %v5047 = vmul.f32 %v5046, %v5045
    %v5048 = vmul.f32 0.5, %v5047
    %v5049 = vsub.f32 1.5, %v5048
    %v5050 = vmul.f32 %v5045, %v5049
    %vm5051 = vweird.f32 %v5044
    %vm5052 = vweird.f32 %v5045
    %vm5053 = vmor %vm5051, %vm5052
    %v5054 = vsel %vm5053, %v5045, %v5050
    %v5055 = vmul.f32 %v5043, %v5054
    %v5056 = vld [vmem:[%s85] sm:$0x1]
    %v5057 = vmul.f32 %v5038, %v5055
    %v5058 = vsub.f32 %v5056, %v5057
    %v5060 = vperm.slane %v5055, 0
    %v5062 = vmul.f32 %v5020, %v5060
    %v5064 = vperm.slane %v5058, 0
    %v5066 = vadd.f32 %v5062, %v5064
    %v5067 = vadd.f32 %v4890, %v5066
    %5068 = vst.msk [vmem:[#allocation32] sm:$0x3] %vm4846, %v5067
    // Predicated region
    $region250: #{_lambda_.1} parent=1 // pred_check
      _
    $region251: #{_lambda_.1} parent=1 // pred_check_branch
      %5070 = sbr.rel (0) target = $region253
    $region252: #{_lambda_.1} parent=1 // pred_region
      %5072 = vsyncadd [#allocation4], 0
      %s5074 = sshll.u32 [#allocation32], 4
      %s5075 = int_to_ptr.vmem [resolvable:$true] %s5074
      %s5076 = sshll.u32 %s87, 4
      %s5077 = int_to_ptr.hbm [resolvable:$true] %s5076
      %5079 = dma.vmem_to_hbm [thread:$0]  %s5075, 32, %s5077, [#allocation4]
    $region253: #{_lambda_.1} parent=1 // pred_fallthru
      _
    // Predicated region
    $region254: #{_lambda_.1} parent=1 // pred_check
      _
    $region255: #{_lambda_.1} parent=1 // pred_check_branch
      %5081 = sbr.rel (0) target = $region257
    $region256: #{_lambda_.1} parent=1 // pred_region
      %5083 = dma.done [#allocation4], 32
    $region257: #{_lambda_.1} parent=1 // pred_fallthru
      _
    %5084 = vsyncpa [#allocation3], 1
    %5085 = vsyncpa [#allocation6], 1
    %5086 = vsyncpa [#allocation9], 1
    %5087 = vsyncpa [#allocation12], 1
    %5088 = vsyncpa [#allocation15], 1
    %5089 = vsyncpa [#allocation18], 1
    %5090 = vsyncpa [#allocation21], 1
    %5091 = vsyncpa [#allocation24], 1
    %5092 = vsyncpa [#allocation27], 1
    %5093 = vsyncpa [#allocation30], 1
    %5094 = vsyncpa [#allocation4], 1

</llo_original>
